<compile_context>
chip_gen: v7x
topology: tpu7x:2x2x1
jax: 0.10.0
libtpu: 0.0.40
codegen_flags: <defaults>
</compile_context>

<pallas_src>
import functools

import numpy as np
import jax
import jax.numpy as jnp
from jax.experimental import pallas as pl
from jax.experimental.pallas import tpu as pltpu


# ---------------------------------------------------------------------------
# Pallas kernel: fused nearest-upsample + 1x1 conv, NCHW-native
# ---------------------------------------------------------------------------

def _upsample_conv1x1_kernel(x_ref, w_ref, r_ref, b_ref, o_ref, *,
                             row_tile, width, s_h, s_w):
    # x_ref: (1, Cin, row_tile*W)             low-res input rows, flattened spatial (HBM dtype)
    # w_ref: (Cout, Cin)                      1x1 conv weight (compute dtype)
    # r_ref: (W, W*s_w)                       0/1 width-dilation matrix (compute dtype)
    # b_ref: (Cout, 1)                        bias, f32
    # o_ref: (1, Cout, row_tile*s_h*W*s_w)    hi-res output rows, flattened spatial (out dtype)
    n_wide = width * s_w
    cdt = w_ref.dtype
    for tr in range(row_tile):                                  # static unroll (row_tile <= 32)
        xr = x_ref[0, :, tr * width:(tr + 1) * width].astype(cdt)          # (Cin, W)
        yr = jnp.dot(w_ref[...], xr, preferred_element_type=jnp.float32)   # (Cout, W) f32
        yr = yr + b_ref[...]                                               # bias add (f32)
        if s_w > 1:
            # Width-direction nearest repeat as an exact 0/1 matmul (one 1 per column):
            #   yw[c, w*s_w + j] = yr[c, w]
            yw = jnp.dot(yr.astype(cdt), r_ref[...],
                         preferred_element_type=jnp.float32)               # (Cout, W*s_w)
        else:
            yw = yr
        yw = yw.astype(o_ref.dtype)
        base = tr * s_h * n_wide
        for i in range(s_h):   # height repeat = s_h contiguous, lane-dense re-stores
            o_ref[0, :, base + i * n_wide: base + (i + 1) * n_wide] = yw


# ---------------------------------------------------------------------------
# VMEM-aware row-tile picker
# ---------------------------------------------------------------------------

def _pick_row_tile(batch, h, w, c_in, c_out, s_h, s_w, in_bytes, out_bytes,
                   budget_bytes=24 << 20, max_rows=32):
    """Largest legal divisor of H (<= max_rows) whose padded, double-buffered tiles plus
    constants and f32 temporaries fit `budget_bytes`.  Keeps >=2 grid steps when possible."""
    def pad(v, m):
        return ((v + m - 1) // m) * m

    def fits(tr):
        in_blk = pad(c_in, 8) * pad(tr * w, 128) * in_bytes * 2            # double-buffered
        out_blk = pad(c_out, 8) * pad(tr * s_h * w * s_w, 128) * out_bytes * 2
        wgt = pad(c_out, 8) * pad(c_in, 128) * 4 * 2
        rmat = pad(w, 8) * pad(w * s_w, 128) * 4 * 2
        bias = pad(c_out, 8) * 128 * 4 * 2
        temps = pad(c_out, 8) * pad(w * s_w, 128) * 4 * 4                  # yr/yw f32 temporaries
        return in_blk + out_blk + wgt + rmat + bias + temps <= budget_bytes

    # Legal candidates: block lane dims (tr*W and tr*s_h*W*s_w) must be multiples of 128 or
    # equal the full array dim (tr == H).  TODO(synk): a cdiv grid with a masked tail would
    # also handle prime/awkward H without falling back to tr == H.
    cands = [d for d in range(1, h + 1)
             if h % d == 0 and ((d * w) % 128 == 0 or d == h)]
    good = [d for d in cands if d <= max_rows and fits(d)]
    tr = max(good) if good else min(cands)
    # v7x megacore: keep the parallel iteration space >= 2 when we can.
    while batch * (h // tr) < 2:
        smaller = [d for d in cands if d < tr]
        if not smaller:
            break
        tr = max(smaller)
    return tr


# ---------------------------------------------------------------------------
# Wrapper
# ---------------------------------------------------------------------------

def upsample_layer_forward(x_nchw, weight, bias, pool_op_kernel_size, *,
                           compute_dtype=jnp.bfloat16, out_dtype=None, row_tile=None):
    """Forward pass of UpsampleLayer: nearest-upsample by pool_op_kernel_size, then 1x1 conv.

    x_nchw : (B, Cin, H, W)
    weight : (Cout, Cin, 1, 1) or (Cout, Cin)
    bias   : (Cout,)
    Returns (B, Cout, H*s_h, W*s_w) in `out_dtype` (default: compute_dtype, i.e. bf16).
    """
    if isinstance(pool_op_kernel_size, int):
        s_h = s_w = int(pool_op_kernel_size)
    else:
        s_h, s_w = int(pool_op_kernel_size[0]), int(pool_op_kernel_size[1])
    assert s_h >= 1 and s_w >= 1

    B, c_in, H, W = x_nchw.shape
    c_out = weight.shape[0]
    n_wide = W * s_w
    out_dtype = compute_dtype if out_dtype is None else out_dtype

    # Small constant operands (built once in the wrapper).
    w2d = weight.reshape(c_out, c_in).astype(compute_dtype)                # (Cout, Cin)
    b2d = bias.astype(jnp.float32).reshape(c_out, 1)                       # (Cout, 1)
    if s_w > 1:
        col = np.arange(W * s_w) // s_w
        r_np = (col[None, :] == np.arange(W)[:, None]).astype(np.float32)  # (W, W*s_w) 0/1
    else:
        r_np = np.eye(W, dtype=np.float32)
    r2d = jnp.asarray(r_np, dtype=compute_dtype)

    if row_tile is None:
        row_tile = _pick_row_tile(B, H, W, c_in, c_out, s_h, s_w,
                                  jnp.dtype(x_nchw.dtype).itemsize,
                                  jnp.dtype(out_dtype).itemsize)
    assert H % row_tile == 0, "row_tile must divide H"

    # FREE row-major views (no data movement): flatten spatial for lane-dense blocks.
    x_flat = x_nchw.reshape(B, c_in, H * W)

    kernel = functools.partial(_upsample_conv1x1_kernel,
                               row_tile=row_tile, width=W, s_h=s_h, s_w=s_w)
    out_cols = row_tile * s_h * n_wide

    y_flat = pl.pallas_call(
        kernel,
        out_shape=jax.ShapeDtypeStruct((B, c_out, H * s_h * n_wide), out_dtype),
        grid=(B, H // row_tile),
        in_specs=[
            pl.BlockSpec((1, c_in, row_tile * W), lambda b, t: (b, 0, t)),
            pl.BlockSpec((c_out, c_in), lambda b, t: (0, 0)),
            pl.BlockSpec((W, n_wide), lambda b, t: (0, 0)),
            pl.BlockSpec((c_out, 1), lambda b, t: (0, 0)),
        ],
        out_specs=pl.BlockSpec((1, c_out, out_cols), lambda b, t: (b, 0, t)),
        compiler_params=pltpu.CompilerParams(
            dimension_semantics=("parallel", "parallel"),
            vmem_limit_bytes=48 << 20),
    )(x_flat, w2d, r2d, b2d)

    # FREE row-major view back to NCHW high-res.
    return y_flat.reshape(B, c_out, H * s_h, W * s_w)


# ---------------------------------------------------------------------------
# Pure-JAX reference (correctness check only)
# ---------------------------------------------------------------------------

def ref_forward(x_nchw, weight, bias, pool_op_kernel_size):
    if isinstance(pool_op_kernel_size, int):
        s_h = s_w = int(pool_op_kernel_size)
    else:
        s_h, s_w = int(pool_op_kernel_size[0]), int(pool_op_kernel_size[1])
    xu = jnp.repeat(jnp.repeat(x_nchw, s_h, axis=2), s_w, axis=3)          # nearest upsample
    c_out, c_in = weight.shape[0], weight.shape[1]
    w2d = weight.reshape(c_out, c_in)
    y = jnp.einsum('bchw,oc->bohw', xu, w2d)
    return y + bias[None, :, None, None]


# ---------------------------------------------------------------------------

if __name__ == "__main__":
    key = jax.random.PRNGKey(0)
    B, c_in, H, W = 2, 4, 16, 16
    c_out = 8
    scale = (2, 2)                       # pool_op_kernel_size

    kx, kw, kb = jax.random.split(key, 3)
    x = jax.random.normal(kx, (B, c_in, H, W), jnp.float32)
    weight = 0.3 * jax.random.normal(kw, (c_out, c_in, 1, 1), jnp.float32)
    bias = 0.1 * jax.random.normal(kb, (c_out,), jnp.float32)

    ref = ref_forward(x, weight, bias, scale)

    # f32 compute + f32 store: tight tolerance validates indexing / weight / dilation exactly.
    out_f32 = upsample_layer_forward(x, weight, bias, scale,
                                     compute_dtype=jnp.float32,
                                     out_dtype=jnp.float32)
    out_f32 = jax.block_until_ready(out_f32)
    assert out_f32.shape == (B, c_out, H * 2, W * 2)
    assert jnp.allclose(out_f32, ref, atol=1e-5, rtol=1e-5)

    # Default path: bf16 MXU compute, f32 accumulation, bf16 store (halved writeback bytes).
    out_bf16 = upsample_layer_forward(x, weight, bias, scale)
    out_bf16 = jax.block_until_ready(out_bf16)
    assert out_bf16.shape == (B, c_out, H * 2, W * 2)
    assert out_bf16.dtype == jnp.bfloat16
    assert jnp.allclose(out_bf16.astype(jnp.float32), ref, atol=5e-2, rtol=5e-2)

    print("KERNEL_OK")
</pallas_src>

<mosaic_0001>
module attributes {stable_mosaic.version = 11 : i64} {
  func.func @_upsample_conv1x1_kernel(%arg0: i32, %arg1: i32, %arg2: memref<1x4x256xf32, #tpu.memory_space<vmem>>, %arg3: memref<8x4xf32, #tpu.memory_space<vmem>>, %arg4: memref<16x32xf32, #tpu.memory_space<vmem>>, %arg5: memref<8x1xf32, #tpu.memory_space<vmem>>, %arg6: memref<1x8x1024xf32, #tpu.memory_space<vmem>>) attributes {dimension_semantics = [#tpu.dimension_semantics<parallel>, #tpu.dimension_semantics<parallel>], iteration_bounds = array<i64: 2, 1>, scalar_prefetch = 0 : i64, scratch_operands = 0 : i64, tpu.core_type = #tpu.core_type<tc>, window_params = [{transform_indices = @transform_0, window_bounds = array<i64: 1, 4, 256>}, {pipeline_mode = #tpu.pipeline_mode<synchronous>, transform_indices = @transform_1, window_bounds = array<i64: 8, 4>}, {pipeline_mode = #tpu.pipeline_mode<synchronous>, transform_indices = @transform_2, window_bounds = array<i64: 16, 32>}, {pipeline_mode = #tpu.pipeline_mode<synchronous>, transform_indices = @transform_3, window_bounds = array<i64: 8, 1>}, {transform_indices = @transform_4, window_bounds = array<i64: 1, 8, 1024>}]} {
    %c0 = arith.constant 0 : index
    %c0_0 = arith.constant 0 : index
    %c0_1 = arith.constant 0 : index
    %0 = vector.load %arg2[%c0, %c0_0, %c0_1] : memref<1x4x256xf32, #tpu.memory_space<vmem>>, vector<1x4x16xf32>
    %1 = vector.shape_cast %0 : vector<1x4x16xf32> to vector<4x16xf32>
    %c0_2 = arith.constant 0 : index
    %c0_3 = arith.constant 0 : index
    %2 = vector.load %arg3[%c0_2, %c0_3] : memref<8x4xf32, #tpu.memory_space<vmem>>, vector<8x4xf32>
    %cst = arith.constant dense<0.000000e+00> : vector<8x16xf32>
    %3 = tpu.matmul %2, %1, %cst {dimension_numbers = #tpu.dot_dimension_numbers<[1], [0], [0], [1], [0, 0, 1, 1], [], []>} : vector<8x4xf32>, vector<4x16xf32>, vector<8x16xf32> -> vector<8x16xf32>
    %c0_4 = arith.constant 0 : index
    %c0_5 = arith.constant 0 : index
    %4 = vector.load %arg5[%c0_4, %c0_5] : memref<8x1xf32, #tpu.memory_space<vmem>>, vector<8x1xf32>
    %5 = vector.broadcast %4 : vector<8x1xf32> to vector<8x16xf32>
    %6 = arith.addf %3, %5 : vector<8x16xf32>
    %c0_6 = arith.constant 0 : index
    %c0_7 = arith.constant 0 : index
    %7 = vector.load %arg4[%c0_6, %c0_7] : memref<16x32xf32, #tpu.memory_space<vmem>>, vector<16x32xf32>
    %cst_8 = arith.constant dense<0.000000e+00> : vector<8x32xf32>
    %8 = tpu.matmul %6, %7, %cst_8 {dimension_numbers = #tpu.dot_dimension_numbers<[1], [0], [0], [1], [0, 0, 1, 1], [], []>} : vector<8x16xf32>, vector<16x32xf32>, vector<8x32xf32> -> vector<8x32xf32>
    %c0_9 = arith.constant 0 : index
    %c0_10 = arith.constant 0 : index
    %c0_11 = arith.constant 0 : index
    %9 = vector.load %arg6[%c0_9, %c0_10, %c0_11] : memref<1x8x1024xf32, #tpu.memory_space<vmem>>, vector<1x8x32xf32>
    %10 = vector.shape_cast %9 : vector<1x8x32xf32> to vector<8x32xf32>
    %11 = vector.shape_cast %8 : vector<8x32xf32> to vector<1x8x32xf32>
    tpu.vector_store %arg6[%c0_9, %c0_10, %c0_11], %11 {strides = array<i32>} : memref<1x8x1024xf32, #tpu.memory_space<vmem>>, vector<1x8x32xf32>,
    %c0_12 = arith.constant 0 : index
    %c0_13 = arith.constant 0 : index
    %c32 = arith.constant 32 : index
    %12 = vector.load %arg6[%c0_12, %c0_13, %c32] : memref<1x8x1024xf32, #tpu.memory_space<vmem>>, vector<1x8x32xf32>
    %13 = vector.shape_cast %12 : vector<1x8x32xf32> to vector<8x32xf32>
    %14 = vector.shape_cast %8 : vector<8x32xf32> to vector<1x8x32xf32>
    tpu.vector_store %arg6[%c0_12, %c0_13, %c32], %14 {strides = array<i32>} : memref<1x8x1024xf32, #tpu.memory_space<vmem>>, vector<1x8x32xf32>,
    %c0_14 = arith.constant 0 : index
    %c0_15 = arith.constant 0 : index
    %c16 = arith.constant 16 : index
    %15 = vector.load %arg2[%c0_14, %c0_15, %c16] : memref<1x4x256xf32, #tpu.memory_space<vmem>>, vector<1x4x16xf32>
    %16 = vector.shape_cast %15 : vector<1x4x16xf32> to vector<4x16xf32>
    %c0_16 = arith.constant 0 : index
    %c0_17 = arith.constant 0 : index
    %17 = vector.load %arg3[%c0_16, %c0_17] : memref<8x4xf32, #tpu.memory_space<vmem>>, vector<8x4xf32>
    %cst_18 = arith.constant dense<0.000000e+00> : vector<8x16xf32>
    %18 = tpu.matmul %17, %16, %cst_18 {dimension_numbers = #tpu.dot_dimension_numbers<[1], [0], [0], [1], [0, 0, 1, 1], [], []>} : vector<8x4xf32>, vector<4x16xf32>, vector<8x16xf32> -> vector<8x16xf32>
    %c0_19 = arith.constant 0 : index
    %c0_20 = arith.constant 0 : index
    %19 = vector.load %arg5[%c0_19, %c0_20] : memref<8x1xf32, #tpu.memory_space<vmem>>, vector<8x1xf32>
    %20 = vector.broadcast %19 : vector<8x1xf32> to vector<8x16xf32>
    %21 = arith.addf %18, %20 : vector<8x16xf32>
    %c0_21 = arith.constant 0 : index
    %c0_22 = arith.constant 0 : index
    %22 = vector.load %arg4[%c0_21, %c0_22] : memref<16x32xf32, #tpu.memory_space<vmem>>, vector<16x32xf32>
    %cst_23 = arith.constant dense<0.000000e+00> : vector<8x32xf32>
    %23 = tpu.matmul %21, %22, %cst_23 {dimension_numbers = #tpu.dot_dimension_numbers<[1], [0], [0], [1], [0, 0, 1, 1], [], []>} : vector<8x16xf32>, vector<16x32xf32>, vector<8x32xf32> -> vector<8x32xf32>
    %c0_24 = arith.constant 0 : index
    %c0_25 = arith.constant 0 : index
    %c64 = arith.constant 64 : index
    %24 = vector.load %arg6[%c0_24, %c0_25, %c64] : memref<1x8x1024xf32, #tpu.memory_space<vmem>>, vector<1x8x32xf32>
    %25 = vector.shape_cast %24 : vector<1x8x32xf32> to vector<8x32xf32>
    %26 = vector.shape_cast %23 : vector<8x32xf32> to vector<1x8x32xf32>
    tpu.vector_store %arg6[%c0_24, %c0_25, %c64], %26 {strides = array<i32>} : memref<1x8x1024xf32, #tpu.memory_space<vmem>>, vector<1x8x32xf32>,
    %c0_26 = arith.constant 0 : index
    %c0_27 = arith.constant 0 : index
    %c96 = arith.constant 96 : index
    %27 = vector.load %arg6[%c0_26, %c0_27, %c96] : memref<1x8x1024xf32, #tpu.memory_space<vmem>>, vector<1x8x32xf32>
    %28 = vector.shape_cast %27 : vector<1x8x32xf32> to vector<8x32xf32>
    %29 = vector.shape_cast %23 : vector<8x32xf32> to vector<1x8x32xf32>
    tpu.vector_store %arg6[%c0_26, %c0_27, %c96], %29 {strides = array<i32>} : memref<1x8x1024xf32, #tpu.memory_space<vmem>>, vector<1x8x32xf32>,
    %c0_28 = arith.constant 0 : index
    %c0_29 = arith.constant 0 : index
    %c32_30 = arith.constant 32 : index
    %30 = vector.load %arg2[%c0_28, %c0_29, %c32_30] : memref<1x4x256xf32, #tpu.memory_space<vmem>>, vector<1x4x16xf32>
    %31 = vector.shape_cast %30 : vector<1x4x16xf32> to vector<4x16xf32>
    %c0_31 = arith.constant 0 : index
    %c0_32 = arith.constant 0 : index
    %32 = vector.load %arg3[%c0_31, %c0_32] : memref<8x4xf32, #tpu.memory_space<vmem>>, vector<8x4xf32>
    %cst_33 = arith.constant dense<0.000000e+00> : vector<8x16xf32>
    %33 = tpu.matmul %32, %31, %cst_33 {dimension_numbers = #tpu.dot_dimension_numbers<[1], [0], [0], [1], [0, 0, 1, 1], [], []>} : vector<8x4xf32>, vector<4x16xf32>, vector<8x16xf32> -> vector<8x16xf32>
    %c0_34 = arith.constant 0 : index
    %c0_35 = arith.constant 0 : index
    %34 = vector.load %arg5[%c0_34, %c0_35] : memref<8x1xf32, #tpu.memory_space<vmem>>, vector<8x1xf32>
    %35 = vector.broadcast %34 : vector<8x1xf32> to vector<8x16xf32>
    %36 = arith.addf %33, %35 : vector<8x16xf32>
    %c0_36 = arith.constant 0 : index
    %c0_37 = arith.constant 0 : index
    %37 = vector.load %arg4[%c0_36, %c0_37] : memref<16x32xf32, #tpu.memory_space<vmem>>, vector<16x32xf32>
    %cst_38 = arith.constant dense<0.000000e+00> : vector<8x32xf32>
    %38 = tpu.matmul %36, %37, %cst_38 {dimension_numbers = #tpu.dot_dimension_numbers<[1], [0], [0], [1], [0, 0, 1, 1], [], []>} : vector<8x16xf32>, vector<16x32xf32>, vector<8x32xf32> -> vector<8x32xf32>
    %c0_39 = arith.constant 0 : index
    %c0_40 = arith.constant 0 : index
    %c128 = arith.constant 128 : index
    %39 = vector.load %arg6[%c0_39, %c0_40, %c128] : memref<1x8x1024xf32, #tpu.memory_space<vmem>>, vector<1x8x32xf32>
    %40 = vector.shape_cast %39 : vector<1x8x32xf32> to vector<8x32xf32>
    %41 = vector.shape_cast %38 : vector<8x32xf32> to vector<1x8x32xf32>
    tpu.vector_store %arg6[%c0_39, %c0_40, %c128], %41 {strides = array<i32>} : memref<1x8x1024xf32, #tpu.memory_space<vmem>>, vector<1x8x32xf32>,
    %c0_41 = arith.constant 0 : index
    %c0_42 = arith.constant 0 : index
    %c160 = arith.constant 160 : index
    %42 = vector.load %arg6[%c0_41, %c0_42, %c160] : memref<1x8x1024xf32, #tpu.memory_space<vmem>>, vector<1x8x32xf32>
    %43 = vector.shape_cast %42 : vector<1x8x32xf32> to vector<8x32xf32>
    %44 = vector.shape_cast %38 : vector<8x32xf32> to vector<1x8x32xf32>
    tpu.vector_store %arg6[%c0_41, %c0_42, %c160], %44 {strides = array<i32>} : memref<1x8x1024xf32, #tpu.memory_space<vmem>>, vector<1x8x32xf32>,
    %c0_43 = arith.constant 0 : index
    %c0_44 = arith.constant 0 : index
    %c48 = arith.constant 48 : index
    %45 = vector.load %arg2[%c0_43, %c0_44, %c48] : memref<1x4x256xf32, #tpu.memory_space<vmem>>, vector<1x4x16xf32>
    %46 = vector.shape_cast %45 : vector<1x4x16xf32> to vector<4x16xf32>
    %c0_45 = arith.constant 0 : index
    %c0_46 = arith.constant 0 : index
    %47 = vector.load %arg3[%c0_45, %c0_46] : memref<8x4xf32, #tpu.memory_space<vmem>>, vector<8x4xf32>
    %cst_47 = arith.constant dense<0.000000e+00> : vector<8x16xf32>
    %48 = tpu.matmul %47, %46, %cst_47 {dimension_numbers = #tpu.dot_dimension_numbers<[1], [0], [0], [1], [0, 0, 1, 1], [], []>} : vector<8x4xf32>, vector<4x16xf32>, vector<8x16xf32> -> vector<8x16xf32>
    %c0_48 = arith.constant 0 : index
    %c0_49 = arith.constant 0 : index
    %49 = vector.load %arg5[%c0_48, %c0_49] : memref<8x1xf32, #tpu.memory_space<vmem>>, vector<8x1xf32>
    %50 = vector.broadcast %49 : vector<8x1xf32> to vector<8x16xf32>
    %51 = arith.addf %48, %50 : vector<8x16xf32>
    %c0_50 = arith.constant 0 : index
    %c0_51 = arith.constant 0 : index
    %52 = vector.load %arg4[%c0_50, %c0_51] : memref<16x32xf32, #tpu.memory_space<vmem>>, vector<16x32xf32>
    %cst_52 = arith.constant dense<0.000000e+00> : vector<8x32xf32>
    %53 = tpu.matmul %51, %52, %cst_52 {dimension_numbers = #tpu.dot_dimension_numbers<[1], [0], [0], [1], [0, 0, 1, 1], [], []>} : vector<8x16xf32>, vector<16x32xf32>, vector<8x32xf32> -> vector<8x32xf32>
    %c0_53 = arith.constant 0 : index
    %c0_54 = arith.constant 0 : index
    %c192 = arith.constant 192 : index
    %54 = vector.load %arg6[%c0_53, %c0_54, %c192] : memref<1x8x1024xf32, #tpu.memory_space<vmem>>, vector<1x8x32xf32>
    %55 = vector.shape_cast %54 : vector<1x8x32xf32> to vector<8x32xf32>
    %56 = vector.shape_cast %53 : vector<8x32xf32> to vector<1x8x32xf32>
    tpu.vector_store %arg6[%c0_53, %c0_54, %c192], %56 {strides = array<i32>} : memref<1x8x1024xf32, #tpu.memory_space<vmem>>, vector<1x8x32xf32>,
    %c0_55 = arith.constant 0 : index
    %c0_56 = arith.constant 0 : index
    %c224 = arith.constant 224 : index
    %57 = vector.load %arg6[%c0_55, %c0_56, %c224] : memref<1x8x1024xf32, #tpu.memory_space<vmem>>, vector<1x8x32xf32>
    %58 = vector.shape_cast %57 : vector<1x8x32xf32> to vector<8x32xf32>
    %59 = vector.shape_cast %53 : vector<8x32xf32> to vector<1x8x32xf32>
    tpu.vector_store %arg6[%c0_55, %c0_56, %c224], %59 {strides = array<i32>} : memref<1x8x1024xf32, #tpu.memory_space<vmem>>, vector<1x8x32xf32>,
    %c0_57 = arith.constant 0 : index
    %c0_58 = arith.constant 0 : index
    %c64_59 = arith.constant 64 : index
    %60 = vector.load %arg2[%c0_57, %c0_58, %c64_59] : memref<1x4x256xf32, #tpu.memory_space<vmem>>, vector<1x4x16xf32>
    %61 = vector.shape_cast %60 : vector<1x4x16xf32> to vector<4x16xf32>
    %c0_60 = arith.constant 0 : index
    %c0_61 = arith.constant 0 : index
    %62 = vector.load %arg3[%c0_60, %c0_61] : memref<8x4xf32, #tpu.memory_space<vmem>>, vector<8x4xf32>
    %cst_62 = arith.constant dense<0.000000e+00> : vector<8x16xf32>
    %63 = tpu.matmul %62, %61, %cst_62 {dimension_numbers = #tpu.dot_dimension_numbers<[1], [0], [0], [1], [0, 0, 1, 1], [], []>} : vector<8x4xf32>, vector<4x16xf32>, vector<8x16xf32> -> vector<8x16xf32>
    %c0_63 = arith.constant 0 : index
    %c0_64 = arith.constant 0 : index
    %64 = vector.load %arg5[%c0_63, %c0_64] : memref<8x1xf32, #tpu.memory_space<vmem>>, vector<8x1xf32>
    %65 = vector.broadcast %64 : vector<8x1xf32> to vector<8x16xf32>
    %66 = arith.addf %63, %65 : vector<8x16xf32>
    %c0_65 = arith.constant 0 : index
    %c0_66 = arith.constant 0 : index
    %67 = vector.load %arg4[%c0_65, %c0_66] : memref<16x32xf32, #tpu.memory_space<vmem>>, vector<16x32xf32>
    %cst_67 = arith.constant dense<0.000000e+00> : vector<8x32xf32>
    %68 = tpu.matmul %66, %67, %cst_67 {dimension_numbers = #tpu.dot_dimension_numbers<[1], [0], [0], [1], [0, 0, 1, 1], [], []>} : vector<8x16xf32>, vector<16x32xf32>, vector<8x32xf32> -> vector<8x32xf32>
    %c0_68 = arith.constant 0 : index
    %c0_69 = arith.constant 0 : index
    %c256 = arith.constant 256 : index
    %69 = vector.load %arg6[%c0_68, %c0_69, %c256] : memref<1x8x1024xf32, #tpu.memory_space<vmem>>, vector<1x8x32xf32>
    %70 = vector.shape_cast %69 : vector<1x8x32xf32> to vector<8x32xf32>
    %71 = vector.shape_cast %68 : vector<8x32xf32> to vector<1x8x32xf32>
    tpu.vector_store %arg6[%c0_68, %c0_69, %c256], %71 {strides = array<i32>} : memref<1x8x1024xf32, #tpu.memory_space<vmem>>, vector<1x8x32xf32>,
    %c0_70 = arith.constant 0 : index
    %c0_71 = arith.constant 0 : index
    %c288 = arith.constant 288 : index
    %72 = vector.load %arg6[%c0_70, %c0_71, %c288] : memref<1x8x1024xf32, #tpu.memory_space<vmem>>, vector<1x8x32xf32>
    %73 = vector.shape_cast %72 : vector<1x8x32xf32> to vector<8x32xf32>
    %74 = vector.shape_cast %68 : vector<8x32xf32> to vector<1x8x32xf32>
    tpu.vector_store %arg6[%c0_70, %c0_71, %c288], %74 {strides = array<i32>} : memref<1x8x1024xf32, #tpu.memory_space<vmem>>, vector<1x8x32xf32>,
    %c0_72 = arith.constant 0 : index
    %c0_73 = arith.constant 0 : index
    %c80 = arith.constant 80 : index
    %75 = vector.load %arg2[%c0_72, %c0_73, %c80] : memref<1x4x256xf32, #tpu.memory_space<vmem>>, vector<1x4x16xf32>
    %76 = vector.shape_cast %75 : vector<1x4x16xf32> to vector<4x16xf32>
    %c0_74 = arith.constant 0 : index
    %c0_75 = arith.constant 0 : index
    %77 = vector.load %arg3[%c0_74, %c0_75] : memref<8x4xf32, #tpu.memory_space<vmem>>, vector<8x4xf32>
    %cst_76 = arith.constant dense<0.000000e+00> : vector<8x16xf32>
    %78 = tpu.matmul %77, %76, %cst_76 {dimension_numbers = #tpu.dot_dimension_numbers<[1], [0], [0], [1], [0, 0, 1, 1], [], []>} : vector<8x4xf32>, vector<4x16xf32>, vector<8x16xf32> -> vector<8x16xf32>
    %c0_77 = arith.constant 0 : index
    %c0_78 = arith.constant 0 : index
    %79 = vector.load %arg5[%c0_77, %c0_78] : memref<8x1xf32, #tpu.memory_space<vmem>>, vector<8x1xf32>
    %80 = vector.broadcast %79 : vector<8x1xf32> to vector<8x16xf32>
    %81 = arith.addf %78, %80 : vector<8x16xf32>
    %c0_79 = arith.constant 0 : index
    %c0_80 = arith.constant 0 : index
    %82 = vector.load %arg4[%c0_79, %c0_80] : memref<16x32xf32, #tpu.memory_space<vmem>>, vector<16x32xf32>
    %cst_81 = arith.constant dense<0.000000e+00> : vector<8x32xf32>
    %83 = tpu.matmul %81, %82, %cst_81 {dimension_numbers = #tpu.dot_dimension_numbers<[1], [0], [0], [1], [0, 0, 1, 1], [], []>} : vector<8x16xf32>, vector<16x32xf32>, vector<8x32xf32> -> vector<8x32xf32>
    %c0_82 = arith.constant 0 : index
    %c0_83 = arith.constant 0 : index
    %c320 = arith.constant 320 : index
    %84 = vector.load %arg6[%c0_82, %c0_83, %c320] : memref<1x8x1024xf32, #tpu.memory_space<vmem>>, vector<1x8x32xf32>
    %85 = vector.shape_cast %84 : vector<1x8x32xf32> to vector<8x32xf32>
    %86 = vector.shape_cast %83 : vector<8x32xf32> to vector<1x8x32xf32>
    tpu.vector_store %arg6[%c0_82, %c0_83, %c320], %86 {strides = array<i32>} : memref<1x8x1024xf32, #tpu.memory_space<vmem>>, vector<1x8x32xf32>,
    %c0_84 = arith.constant 0 : index
    %c0_85 = arith.constant 0 : index
    %c352 = arith.constant 352 : index
    %87 = vector.load %arg6[%c0_84, %c0_85, %c352] : memref<1x8x1024xf32, #tpu.memory_space<vmem>>, vector<1x8x32xf32>
    %88 = vector.shape_cast %87 : vector<1x8x32xf32> to vector<8x32xf32>
    %89 = vector.shape_cast %83 : vector<8x32xf32> to vector<1x8x32xf32>
    tpu.vector_store %arg6[%c0_84, %c0_85, %c352], %89 {strides = array<i32>} : memref<1x8x1024xf32, #tpu.memory_space<vmem>>, vector<1x8x32xf32>,
    %c0_86 = arith.constant 0 : index
    %c0_87 = arith.constant 0 : index
    %c96_88 = arith.constant 96 : index
    %90 = vector.load %arg2[%c0_86, %c0_87, %c96_88] : memref<1x4x256xf32, #tpu.memory_space<vmem>>, vector<1x4x16xf32>
    %91 = vector.shape_cast %90 : vector<1x4x16xf32> to vector<4x16xf32>
    %c0_89 = arith.constant 0 : index
    %c0_90 = arith.constant 0 : index
    %92 = vector.load %arg3[%c0_89, %c0_90] : memref<8x4xf32, #tpu.memory_space<vmem>>, vector<8x4xf32>
    %cst_91 = arith.constant dense<0.000000e+00> : vector<8x16xf32>
    %93 = tpu.matmul %92, %91, %cst_91 {dimension_numbers = #tpu.dot_dimension_numbers<[1], [0], [0], [1], [0, 0, 1, 1], [], []>} : vector<8x4xf32>, vector<4x16xf32>, vector<8x16xf32> -> vector<8x16xf32>
    %c0_92 = arith.constant 0 : index
    %c0_93 = arith.constant 0 : index
    %94 = vector.load %arg5[%c0_92, %c0_93] : memref<8x1xf32, #tpu.memory_space<vmem>>, vector<8x1xf32>
    %95 = vector.broadcast %94 : vector<8x1xf32> to vector<8x16xf32>
    %96 = arith.addf %93, %95 : vector<8x16xf32>
    %c0_94 = arith.constant 0 : index
    %c0_95 = arith.constant 0 : index
    %97 = vector.load %arg4[%c0_94, %c0_95] : memref<16x32xf32, #tpu.memory_space<vmem>>, vector<16x32xf32>
    %cst_96 = arith.constant dense<0.000000e+00> : vector<8x32xf32>
    %98 = tpu.matmul %96, %97, %cst_96 {dimension_numbers = #tpu.dot_dimension_numbers<[1], [0], [0], [1], [0, 0, 1, 1], [], []>} : vector<8x16xf32>, vector<16x32xf32>, vector<8x32xf32> -> vector<8x32xf32>
    %c0_97 = arith.constant 0 : index
    %c0_98 = arith.constant 0 : index
    %c384 = arith.constant 384 : index
    %99 = vector.load %arg6[%c0_97, %c0_98, %c384] : memref<1x8x1024xf32, #tpu.memory_space<vmem>>, vector<1x8x32xf32>
    %100 = vector.shape_cast %99 : vector<1x8x32xf32> to vector<8x32xf32>
    %101 = vector.shape_cast %98 : vector<8x32xf32> to vector<1x8x32xf32>
    tpu.vector_store %arg6[%c0_97, %c0_98, %c384], %101 {strides = array<i32>} : memref<1x8x1024xf32, #tpu.memory_space<vmem>>, vector<1x8x32xf32>,
    %c0_99 = arith.constant 0 : index
    %c0_100 = arith.constant 0 : index
    %c416 = arith.constant 416 : index
    %102 = vector.load %arg6[%c0_99, %c0_100, %c416] : memref<1x8x1024xf32, #tpu.memory_space<vmem>>, vector<1x8x32xf32>
    %103 = vector.shape_cast %102 : vector<1x8x32xf32> to vector<8x32xf32>
    %104 = vector.shape_cast %98 : vector<8x32xf32> to vector<1x8x32xf32>
    tpu.vector_store %arg6[%c0_99, %c0_100, %c416], %104 {strides = array<i32>} : memref<1x8x1024xf32, #tpu.memory_space<vmem>>, vector<1x8x32xf32>,
    %c0_101 = arith.constant 0 : index
    %c0_102 = arith.constant 0 : index
    %c112 = arith.constant 112 : index
    %105 = vector.load %arg2[%c0_101, %c0_102, %c112] : memref<1x4x256xf32, #tpu.memory_space<vmem>>, vector<1x4x16xf32>
    %106 = vector.shape_cast %105 : vector<1x4x16xf32> to vector<4x16xf32>
    %c0_103 = arith.constant 0 : index
    %c0_104 = arith.constant 0 : index
    %107 = vector.load %arg3[%c0_103, %c0_104] : memref<8x4xf32, #tpu.memory_space<vmem>>, vector<8x4xf32>
    %cst_105 = arith.constant dense<0.000000e+00> : vector<8x16xf32>
    %108 = tpu.matmul %107, %106, %cst_105 {dimension_numbers = #tpu.dot_dimension_numbers<[1], [0], [0], [1], [0, 0, 1, 1], [], []>} : vector<8x4xf32>, vector<4x16xf32>, vector<8x16xf32> -> vector<8x16xf32>
    %c0_106 = arith.constant 0 : index
    %c0_107 = arith.constant 0 : index
    %109 = vector.load %arg5[%c0_106, %c0_107] : memref<8x1xf32, #tpu.memory_space<vmem>>, vector<8x1xf32>
    %110 = vector.broadcast %109 : vector<8x1xf32> to vector<8x16xf32>
    %111 = arith.addf %108, %110 : vector<8x16xf32>
    %c0_108 = arith.constant 0 : index
    %c0_109 = arith.constant 0 : index
    %112 = vector.load %arg4[%c0_108, %c0_109] : memref<16x32xf32, #tpu.memory_space<vmem>>, vector<16x32xf32>
    %cst_110 = arith.constant dense<0.000000e+00> : vector<8x32xf32>
    %113 = tpu.matmul %111, %112, %cst_110 {dimension_numbers = #tpu.dot_dimension_numbers<[1], [0], [0], [1], [0, 0, 1, 1], [], []>} : vector<8x16xf32>, vector<16x32xf32>, vector<8x32xf32> -> vector<8x32xf32>
    %c0_111 = arith.constant 0 : index
    %c0_112 = arith.constant 0 : index
    %c448 = arith.constant 448 : index
    %114 = vector.load %arg6[%c0_111, %c0_112, %c448] : memref<1x8x1024xf32, #tpu.memory_space<vmem>>, vector<1x8x32xf32>
    %115 = vector.shape_cast %114 : vector<1x8x32xf32> to vector<8x32xf32>
    %116 = vector.shape_cast %113 : vector<8x32xf32> to vector<1x8x32xf32>
    tpu.vector_store %arg6[%c0_111, %c0_112, %c448], %116 {strides = array<i32>} : memref<1x8x1024xf32, #tpu.memory_space<vmem>>, vector<1x8x32xf32>,
    %c0_113 = arith.constant 0 : index
    %c0_114 = arith.constant 0 : index
    %c480 = arith.constant 480 : index
    %117 = vector.load %arg6[%c0_113, %c0_114, %c480] : memref<1x8x1024xf32, #tpu.memory_space<vmem>>, vector<1x8x32xf32>
    %118 = vector.shape_cast %117 : vector<1x8x32xf32> to vector<8x32xf32>
    %119 = vector.shape_cast %113 : vector<8x32xf32> to vector<1x8x32xf32>
    tpu.vector_store %arg6[%c0_113, %c0_114, %c480], %119 {strides = array<i32>} : memref<1x8x1024xf32, #tpu.memory_space<vmem>>, vector<1x8x32xf32>,
    %c0_115 = arith.constant 0 : index
    %c0_116 = arith.constant 0 : index
    %c128_117 = arith.constant 128 : index
    %120 = vector.load %arg2[%c0_115, %c0_116, %c128_117] : memref<1x4x256xf32, #tpu.memory_space<vmem>>, vector<1x4x16xf32>
    %121 = vector.shape_cast %120 : vector<1x4x16xf32> to vector<4x16xf32>
    %c0_118 = arith.constant 0 : index
    %c0_119 = arith.constant 0 : index
    %122 = vector.load %arg3[%c0_118, %c0_119] : memref<8x4xf32, #tpu.memory_space<vmem>>, vector<8x4xf32>
    %cst_120 = arith.constant dense<0.000000e+00> : vector<8x16xf32>
    %123 = tpu.matmul %122, %121, %cst_120 {dimension_numbers = #tpu.dot_dimension_numbers<[1], [0], [0], [1], [0, 0, 1, 1], [], []>} : vector<8x4xf32>, vector<4x16xf32>, vector<8x16xf32> -> vector<8x16xf32>
    %c0_121 = arith.constant 0 : index
    %c0_122 = arith.constant 0 : index
    %124 = vector.load %arg5[%c0_121, %c0_122] : memref<8x1xf32, #tpu.memory_space<vmem>>, vector<8x1xf32>
    %125 = vector.broadcast %124 : vector<8x1xf32> to vector<8x16xf32>
    %126 = arith.addf %123, %125 : vector<8x16xf32>
    %c0_123 = arith.constant 0 : index
    %c0_124 = arith.constant 0 : index
    %127 = vector.load %arg4[%c0_123, %c0_124] : memref<16x32xf32, #tpu.memory_space<vmem>>, vector<16x32xf32>
    %cst_125 = arith.constant dense<0.000000e+00> : vector<8x32xf32>
    %128 = tpu.matmul %126, %127, %cst_125 {dimension_numbers = #tpu.dot_dimension_numbers<[1], [0], [0], [1], [0, 0, 1, 1], [], []>} : vector<8x16xf32>, vector<16x32xf32>, vector<8x32xf32> -> vector<8x32xf32>
    %c0_126 = arith.constant 0 : index
    %c0_127 = arith.constant 0 : index
    %c512 = arith.constant 512 : index
    %129 = vector.load %arg6[%c0_126, %c0_127, %c512] : memref<1x8x1024xf32, #tpu.memory_space<vmem>>, vector<1x8x32xf32>
    %130 = vector.shape_cast %129 : vector<1x8x32xf32> to vector<8x32xf32>
    %131 = vector.shape_cast %128 : vector<8x32xf32> to vector<1x8x32xf32>
    tpu.vector_store %arg6[%c0_126, %c0_127, %c512], %131 {strides = array<i32>} : memref<1x8x1024xf32, #tpu.memory_space<vmem>>, vector<1x8x32xf32>,
    %c0_128 = arith.constant 0 : index
    %c0_129 = arith.constant 0 : index
    %c544 = arith.constant 544 : index
    %132 = vector.load %arg6[%c0_128, %c0_129, %c544] : memref<1x8x1024xf32, #tpu.memory_space<vmem>>, vector<1x8x32xf32>
    %133 = vector.shape_cast %132 : vector<1x8x32xf32> to vector<8x32xf32>
    %134 = vector.shape_cast %128 : vector<8x32xf32> to vector<1x8x32xf32>
    tpu.vector_store %arg6[%c0_128, %c0_129, %c544], %134 {strides = array<i32>} : memref<1x8x1024xf32, #tpu.memory_space<vmem>>, vector<1x8x32xf32>,
    %c0_130 = arith.constant 0 : index
    %c0_131 = arith.constant 0 : index
    %c144 = arith.constant 144 : index
    %135 = vector.load %arg2[%c0_130, %c0_131, %c144] : memref<1x4x256xf32, #tpu.memory_space<vmem>>, vector<1x4x16xf32>
    %136 = vector.shape_cast %135 : vector<1x4x16xf32> to vector<4x16xf32>
    %c0_132 = arith.constant 0 : index
    %c0_133 = arith.constant 0 : index
    %137 = vector.load %arg3[%c0_132, %c0_133] : memref<8x4xf32, #tpu.memory_space<vmem>>, vector<8x4xf32>
    %cst_134 = arith.constant dense<0.000000e+00> : vector<8x16xf32>
    %138 = tpu.matmul %137, %136, %cst_134 {dimension_numbers = #tpu.dot_dimension_numbers<[1], [0], [0], [1], [0, 0, 1, 1], [], []>} : vector<8x4xf32>, vector<4x16xf32>, vector<8x16xf32> -> vector<8x16xf32>
    %c0_135 = arith.constant 0 : index
    %c0_136 = arith.constant 0 : index
    %139 = vector.load %arg5[%c0_135, %c0_136] : memref<8x1xf32, #tpu.memory_space<vmem>>, vector<8x1xf32>
    %140 = vector.broadcast %139 : vector<8x1xf32> to vector<8x16xf32>
    %141 = arith.addf %138, %140 : vector<8x16xf32>
    %c0_137 = arith.constant 0 : index
    %c0_138 = arith.constant 0 : index
    %142 = vector.load %arg4[%c0_137, %c0_138] : memref<16x32xf32, #tpu.memory_space<vmem>>, vector<16x32xf32>
    %cst_139 = arith.constant dense<0.000000e+00> : vector<8x32xf32>
    %143 = tpu.matmul %141, %142, %cst_139 {dimension_numbers = #tpu.dot_dimension_numbers<[1], [0], [0], [1], [0, 0, 1, 1], [], []>} : vector<8x16xf32>, vector<16x32xf32>, vector<8x32xf32> -> vector<8x32xf32>
    %c0_140 = arith.constant 0 : index
    %c0_141 = arith.constant 0 : index
    %c576 = arith.constant 576 : index
    %144 = vector.load %arg6[%c0_140, %c0_141, %c576] : memref<1x8x1024xf32, #tpu.memory_space<vmem>>, vector<1x8x32xf32>
    %145 = vector.shape_cast %144 : vector<1x8x32xf32> to vector<8x32xf32>
    %146 = vector.shape_cast %143 : vector<8x32xf32> to vector<1x8x32xf32>
    tpu.vector_store %arg6[%c0_140, %c0_141, %c576], %146 {strides = array<i32>} : memref<1x8x1024xf32, #tpu.memory_space<vmem>>, vector<1x8x32xf32>,
    %c0_142 = arith.constant 0 : index
    %c0_143 = arith.constant 0 : index
    %c608 = arith.constant 608 : index
    %147 = vector.load %arg6[%c0_142, %c0_143, %c608] : memref<1x8x1024xf32, #tpu.memory_space<vmem>>, vector<1x8x32xf32>
    %148 = vector.shape_cast %147 : vector<1x8x32xf32> to vector<8x32xf32>
    %149 = vector.shape_cast %143 : vector<8x32xf32> to vector<1x8x32xf32>
    tpu.vector_store %arg6[%c0_142, %c0_143, %c608], %149 {strides = array<i32>} : memref<1x8x1024xf32, #tpu.memory_space<vmem>>, vector<1x8x32xf32>,
    %c0_144 = arith.constant 0 : index
    %c0_145 = arith.constant 0 : index
    %c160_146 = arith.constant 160 : index
    %150 = vector.load %arg2[%c0_144, %c0_145, %c160_146] : memref<1x4x256xf32, #tpu.memory_space<vmem>>, vector<1x4x16xf32>
    %151 = vector.shape_cast %150 : vector<1x4x16xf32> to vector<4x16xf32>
    %c0_147 = arith.constant 0 : index
    %c0_148 = arith.constant 0 : index
    %152 = vector.load %arg3[%c0_147, %c0_148] : memref<8x4xf32, #tpu.memory_space<vmem>>, vector<8x4xf32>
    %cst_149 = arith.constant dense<0.000000e+00> : vector<8x16xf32>
    %153 = tpu.matmul %152, %151, %cst_149 {dimension_numbers = #tpu.dot_dimension_numbers<[1], [0], [0], [1], [0, 0, 1, 1], [], []>} : vector<8x4xf32>, vector<4x16xf32>, vector<8x16xf32> -> vector<8x16xf32>
    %c0_150 = arith.constant 0 : index
    %c0_151 = arith.constant 0 : index
    %154 = vector.load %arg5[%c0_150, %c0_151] : memref<8x1xf32, #tpu.memory_space<vmem>>, vector<8x1xf32>
    %155 = vector.broadcast %154 : vector<8x1xf32> to vector<8x16xf32>
    %156 = arith.addf %153, %155 : vector<8x16xf32>
    %c0_152 = arith.constant 0 : index
    %c0_153 = arith.constant 0 : index
    %157 = vector.load %arg4[%c0_152, %c0_153] : memref<16x32xf32, #tpu.memory_space<vmem>>, vector<16x32xf32>
    %cst_154 = arith.constant dense<0.000000e+00> : vector<8x32xf32>
    %158 = tpu.matmul %156, %157, %cst_154 {dimension_numbers = #tpu.dot_dimension_numbers<[1], [0], [0], [1], [0, 0, 1, 1], [], []>} : vector<8x16xf32>, vector<16x32xf32>, vector<8x32xf32> -> vector<8x32xf32>
    %c0_155 = arith.constant 0 : index
    %c0_156 = arith.constant 0 : index
    %c640 = arith.constant 640 : index
    %159 = vector.load %arg6[%c0_155, %c0_156, %c640] : memref<1x8x1024xf32, #tpu.memory_space<vmem>>, vector<1x8x32xf32>
    %160 = vector.shape_cast %159 : vector<1x8x32xf32> to vector<8x32xf32>
    %161 = vector.shape_cast %158 : vector<8x32xf32> to vector<1x8x32xf32>
    tpu.vector_store %arg6[%c0_155, %c0_156, %c640], %161 {strides = array<i32>} : memref<1x8x1024xf32, #tpu.memory_space<vmem>>, vector<1x8x32xf32>,
    %c0_157 = arith.constant 0 : index
    %c0_158 = arith.constant 0 : index
    %c672 = arith.constant 672 : index
    %162 = vector.load %arg6[%c0_157, %c0_158, %c672] : memref<1x8x1024xf32, #tpu.memory_space<vmem>>, vector<1x8x32xf32>
    %163 = vector.shape_cast %162 : vector<1x8x32xf32> to vector<8x32xf32>
    %164 = vector.shape_cast %158 : vector<8x32xf32> to vector<1x8x32xf32>
    tpu.vector_store %arg6[%c0_157, %c0_158, %c672], %164 {strides = array<i32>} : memref<1x8x1024xf32, #tpu.memory_space<vmem>>, vector<1x8x32xf32>,
    %c0_159 = arith.constant 0 : index
    %c0_160 = arith.constant 0 : index
    %c176 = arith.constant 176 : index
    %165 = vector.load %arg2[%c0_159, %c0_160, %c176] : memref<1x4x256xf32, #tpu.memory_space<vmem>>, vector<1x4x16xf32>
    %166 = vector.shape_cast %165 : vector<1x4x16xf32> to vector<4x16xf32>
    %c0_161 = arith.constant 0 : index
    %c0_162 = arith.constant 0 : index
    %167 = vector.load %arg3[%c0_161, %c0_162] : memref<8x4xf32, #tpu.memory_space<vmem>>, vector<8x4xf32>
    %cst_163 = arith.constant dense<0.000000e+00> : vector<8x16xf32>
    %168 = tpu.matmul %167, %166, %cst_163 {dimension_numbers = #tpu.dot_dimension_numbers<[1], [0], [0], [1], [0, 0, 1, 1], [], []>} : vector<8x4xf32>, vector<4x16xf32>, vector<8x16xf32> -> vector<8x16xf32>
    %c0_164 = arith.constant 0 : index
    %c0_165 = arith.constant 0 : index
    %169 = vector.load %arg5[%c0_164, %c0_165] : memref<8x1xf32, #tpu.memory_space<vmem>>, vector<8x1xf32>
    %170 = vector.broadcast %169 : vector<8x1xf32> to vector<8x16xf32>
    %171 = arith.addf %168, %170 : vector<8x16xf32>
    %c0_166 = arith.constant 0 : index
    %c0_167 = arith.constant 0 : index
    %172 = vector.load %arg4[%c0_166, %c0_167] : memref<16x32xf32, #tpu.memory_space<vmem>>, vector<16x32xf32>
    %cst_168 = arith.constant dense<0.000000e+00> : vector<8x32xf32>
    %173 = tpu.matmul %171, %172, %cst_168 {dimension_numbers = #tpu.dot_dimension_numbers<[1], [0], [0], [1], [0, 0, 1, 1], [], []>} : vector<8x16xf32>, vector<16x32xf32>, vector<8x32xf32> -> vector<8x32xf32>
    %c0_169 = arith.constant 0 : index
    %c0_170 = arith.constant 0 : index
    %c704 = arith.constant 704 : index
    %174 = vector.load %arg6[%c0_169, %c0_170, %c704] : memref<1x8x1024xf32, #tpu.memory_space<vmem>>, vector<1x8x32xf32>
    %175 = vector.shape_cast %174 : vector<1x8x32xf32> to vector<8x32xf32>
    %176 = vector.shape_cast %173 : vector<8x32xf32> to vector<1x8x32xf32>
    tpu.vector_store %arg6[%c0_169, %c0_170, %c704], %176 {strides = array<i32>} : memref<1x8x1024xf32, #tpu.memory_space<vmem>>, vector<1x8x32xf32>,
    %c0_171 = arith.constant 0 : index
    %c0_172 = arith.constant 0 : index
    %c736 = arith.constant 736 : index
    %177 = vector.load %arg6[%c0_171, %c0_172, %c736] : memref<1x8x1024xf32, #tpu.memory_space<vmem>>, vector<1x8x32xf32>
    %178 = vector.shape_cast %177 : vector<1x8x32xf32> to vector<8x32xf32>
    %179 = vector.shape_cast %173 : vector<8x32xf32> to vector<1x8x32xf32>
    tpu.vector_store %arg6[%c0_171, %c0_172, %c736], %179 {strides = array<i32>} : memref<1x8x1024xf32, #tpu.memory_space<vmem>>, vector<1x8x32xf32>,
    %c0_173 = arith.constant 0 : index
    %c0_174 = arith.constant 0 : index
    %c192_175 = arith.constant 192 : index
    %180 = vector.load %arg2[%c0_173, %c0_174, %c192_175] : memref<1x4x256xf32, #tpu.memory_space<vmem>>, vector<1x4x16xf32>
    %181 = vector.shape_cast %180 : vector<1x4x16xf32> to vector<4x16xf32>
    %c0_176 = arith.constant 0 : index
    %c0_177 = arith.constant 0 : index
    %182 = vector.load %arg3[%c0_176, %c0_177] : memref<8x4xf32, #tpu.memory_space<vmem>>, vector<8x4xf32>
    %cst_178 = arith.constant dense<0.000000e+00> : vector<8x16xf32>
    %183 = tpu.matmul %182, %181, %cst_178 {dimension_numbers = #tpu.dot_dimension_numbers<[1], [0], [0], [1], [0, 0, 1, 1], [], []>} : vector<8x4xf32>, vector<4x16xf32>, vector<8x16xf32> -> vector<8x16xf32>
    %c0_179 = arith.constant 0 : index
    %c0_180 = arith.constant 0 : index
    %184 = vector.load %arg5[%c0_179, %c0_180] : memref<8x1xf32, #tpu.memory_space<vmem>>, vector<8x1xf32>
    %185 = vector.broadcast %184 : vector<8x1xf32> to vector<8x16xf32>
    %186 = arith.addf %183, %185 : vector<8x16xf32>
    %c0_181 = arith.constant 0 : index
    %c0_182 = arith.constant 0 : index
    %187 = vector.load %arg4[%c0_181, %c0_182] : memref<16x32xf32, #tpu.memory_space<vmem>>, vector<16x32xf32>
    %cst_183 = arith.constant dense<0.000000e+00> : vector<8x32xf32>
    %188 = tpu.matmul %186, %187, %cst_183 {dimension_numbers = #tpu.dot_dimension_numbers<[1], [0], [0], [1], [0, 0, 1, 1], [], []>} : vector<8x16xf32>, vector<16x32xf32>, vector<8x32xf32> -> vector<8x32xf32>
    %c0_184 = arith.constant 0 : index
    %c0_185 = arith.constant 0 : index
    %c768 = arith.constant 768 : index
    %189 = vector.load %arg6[%c0_184, %c0_185, %c768] : memref<1x8x1024xf32, #tpu.memory_space<vmem>>, vector<1x8x32xf32>
    %190 = vector.shape_cast %189 : vector<1x8x32xf32> to vector<8x32xf32>
    %191 = vector.shape_cast %188 : vector<8x32xf32> to vector<1x8x32xf32>
    tpu.vector_store %arg6[%c0_184, %c0_185, %c768], %191 {strides = array<i32>} : memref<1x8x1024xf32, #tpu.memory_space<vmem>>, vector<1x8x32xf32>,
    %c0_186 = arith.constant 0 : index
    %c0_187 = arith.constant 0 : index
    %c800 = arith.constant 800 : index
    %192 = vector.load %arg6[%c0_186, %c0_187, %c800] : memref<1x8x1024xf32, #tpu.memory_space<vmem>>, vector<1x8x32xf32>
    %193 = vector.shape_cast %192 : vector<1x8x32xf32> to vector<8x32xf32>
    %194 = vector.shape_cast %188 : vector<8x32xf32> to vector<1x8x32xf32>
    tpu.vector_store %arg6[%c0_186, %c0_187, %c800], %194 {strides = array<i32>} : memref<1x8x1024xf32, #tpu.memory_space<vmem>>, vector<1x8x32xf32>,
    %c0_188 = arith.constant 0 : index
    %c0_189 = arith.constant 0 : index
    %c208 = arith.constant 208 : index
    %195 = vector.load %arg2[%c0_188, %c0_189, %c208] : memref<1x4x256xf32, #tpu.memory_space<vmem>>, vector<1x4x16xf32>
    %196 = vector.shape_cast %195 : vector<1x4x16xf32> to vector<4x16xf32>
    %c0_190 = arith.constant 0 : index
    %c0_191 = arith.constant 0 : index
    %197 = vector.load %arg3[%c0_190, %c0_191] : memref<8x4xf32, #tpu.memory_space<vmem>>, vector<8x4xf32>
    %cst_192 = arith.constant dense<0.000000e+00> : vector<8x16xf32>
    %198 = tpu.matmul %197, %196, %cst_192 {dimension_numbers = #tpu.dot_dimension_numbers<[1], [0], [0], [1], [0, 0, 1, 1], [], []>} : vector<8x4xf32>, vector<4x16xf32>, vector<8x16xf32> -> vector<8x16xf32>
    %c0_193 = arith.constant 0 : index
    %c0_194 = arith.constant 0 : index
    %199 = vector.load %arg5[%c0_193, %c0_194] : memref<8x1xf32, #tpu.memory_space<vmem>>, vector<8x1xf32>
    %200 = vector.broadcast %199 : vector<8x1xf32> to vector<8x16xf32>
    %201 = arith.addf %198, %200 : vector<8x16xf32>
    %c0_195 = arith.constant 0 : index
    %c0_196 = arith.constant 0 : index
    %202 = vector.load %arg4[%c0_195, %c0_196] : memref<16x32xf32, #tpu.memory_space<vmem>>, vector<16x32xf32>
    %cst_197 = arith.constant dense<0.000000e+00> : vector<8x32xf32>
    %203 = tpu.matmul %201, %202, %cst_197 {dimension_numbers = #tpu.dot_dimension_numbers<[1], [0], [0], [1], [0, 0, 1, 1], [], []>} : vector<8x16xf32>, vector<16x32xf32>, vector<8x32xf32> -> vector<8x32xf32>
    %c0_198 = arith.constant 0 : index
    %c0_199 = arith.constant 0 : index
    %c832 = arith.constant 832 : index
    %204 = vector.load %arg6[%c0_198, %c0_199, %c832] : memref<1x8x1024xf32, #tpu.memory_space<vmem>>, vector<1x8x32xf32>
    %205 = vector.shape_cast %204 : vector<1x8x32xf32> to vector<8x32xf32>
    %206 = vector.shape_cast %203 : vector<8x32xf32> to vector<1x8x32xf32>
    tpu.vector_store %arg6[%c0_198, %c0_199, %c832], %206 {strides = array<i32>} : memref<1x8x1024xf32, #tpu.memory_space<vmem>>, vector<1x8x32xf32>,
    %c0_200 = arith.constant 0 : index
    %c0_201 = arith.constant 0 : index
    %c864 = arith.constant 864 : index
    %207 = vector.load %arg6[%c0_200, %c0_201, %c864] : memref<1x8x1024xf32, #tpu.memory_space<vmem>>, vector<1x8x32xf32>
    %208 = vector.shape_cast %207 : vector<1x8x32xf32> to vector<8x32xf32>
    %209 = vector.shape_cast %203 : vector<8x32xf32> to vector<1x8x32xf32>
    tpu.vector_store %arg6[%c0_200, %c0_201, %c864], %209 {strides = array<i32>} : memref<1x8x1024xf32, #tpu.memory_space<vmem>>, vector<1x8x32xf32>,
    %c0_202 = arith.constant 0 : index
    %c0_203 = arith.constant 0 : index
    %c224_204 = arith.constant 224 : index
    %210 = vector.load %arg2[%c0_202, %c0_203, %c224_204] : memref<1x4x256xf32, #tpu.memory_space<vmem>>, vector<1x4x16xf32>
    %211 = vector.shape_cast %210 : vector<1x4x16xf32> to vector<4x16xf32>
    %c0_205 = arith.constant 0 : index
    %c0_206 = arith.constant 0 : index
    %212 = vector.load %arg3[%c0_205, %c0_206] : memref<8x4xf32, #tpu.memory_space<vmem>>, vector<8x4xf32>
    %cst_207 = arith.constant dense<0.000000e+00> : vector<8x16xf32>
    %213 = tpu.matmul %212, %211, %cst_207 {dimension_numbers = #tpu.dot_dimension_numbers<[1], [0], [0], [1], [0, 0, 1, 1], [], []>} : vector<8x4xf32>, vector<4x16xf32>, vector<8x16xf32> -> vector<8x16xf32>
    %c0_208 = arith.constant 0 : index
    %c0_209 = arith.constant 0 : index
    %214 = vector.load %arg5[%c0_208, %c0_209] : memref<8x1xf32, #tpu.memory_space<vmem>>, vector<8x1xf32>
    %215 = vector.broadcast %214 : vector<8x1xf32> to vector<8x16xf32>
    %216 = arith.addf %213, %215 : vector<8x16xf32>
    %c0_210 = arith.constant 0 : index
    %c0_211 = arith.constant 0 : index
    %217 = vector.load %arg4[%c0_210, %c0_211] : memref<16x32xf32, #tpu.memory_space<vmem>>, vector<16x32xf32>
    %cst_212 = arith.constant dense<0.000000e+00> : vector<8x32xf32>
    %218 = tpu.matmul %216, %217, %cst_212 {dimension_numbers = #tpu.dot_dimension_numbers<[1], [0], [0], [1], [0, 0, 1, 1], [], []>} : vector<8x16xf32>, vector<16x32xf32>, vector<8x32xf32> -> vector<8x32xf32>
    %c0_213 = arith.constant 0 : index
    %c0_214 = arith.constant 0 : index
    %c896 = arith.constant 896 : index
    %219 = vector.load %arg6[%c0_213, %c0_214, %c896] : memref<1x8x1024xf32, #tpu.memory_space<vmem>>, vector<1x8x32xf32>
    %220 = vector.shape_cast %219 : vector<1x8x32xf32> to vector<8x32xf32>
    %221 = vector.shape_cast %218 : vector<8x32xf32> to vector<1x8x32xf32>
    tpu.vector_store %arg6[%c0_213, %c0_214, %c896], %221 {strides = array<i32>} : memref<1x8x1024xf32, #tpu.memory_space<vmem>>, vector<1x8x32xf32>,
    %c0_215 = arith.constant 0 : index
    %c0_216 = arith.constant 0 : index
    %c928 = arith.constant 928 : index
    %222 = vector.load %arg6[%c0_215, %c0_216, %c928] : memref<1x8x1024xf32, #tpu.memory_space<vmem>>, vector<1x8x32xf32>
    %223 = vector.shape_cast %222 : vector<1x8x32xf32> to vector<8x32xf32>
    %224 = vector.shape_cast %218 : vector<8x32xf32> to vector<1x8x32xf32>
    tpu.vector_store %arg6[%c0_215, %c0_216, %c928], %224 {strides = array<i32>} : memref<1x8x1024xf32, #tpu.memory_space<vmem>>, vector<1x8x32xf32>,
    %c0_217 = arith.constant 0 : index
    %c0_218 = arith.constant 0 : index
    %c240 = arith.constant 240 : index
    %225 = vector.load %arg2[%c0_217, %c0_218, %c240] : memref<1x4x256xf32, #tpu.memory_space<vmem>>, vector<1x4x16xf32>
    %226 = vector.shape_cast %225 : vector<1x4x16xf32> to vector<4x16xf32>
    %c0_219 = arith.constant 0 : index
    %c0_220 = arith.constant 0 : index
    %227 = vector.load %arg3[%c0_219, %c0_220] : memref<8x4xf32, #tpu.memory_space<vmem>>, vector<8x4xf32>
    %cst_221 = arith.constant dense<0.000000e+00> : vector<8x16xf32>
    %228 = tpu.matmul %227, %226, %cst_221 {dimension_numbers = #tpu.dot_dimension_numbers<[1], [0], [0], [1], [0, 0, 1, 1], [], []>} : vector<8x4xf32>, vector<4x16xf32>, vector<8x16xf32> -> vector<8x16xf32>
    %c0_222 = arith.constant 0 : index
    %c0_223 = arith.constant 0 : index
    %229 = vector.load %arg5[%c0_222, %c0_223] : memref<8x1xf32, #tpu.memory_space<vmem>>, vector<8x1xf32>
    %230 = vector.broadcast %229 : vector<8x1xf32> to vector<8x16xf32>
    %231 = arith.addf %228, %230 : vector<8x16xf32>
    %c0_224 = arith.constant 0 : index
    %c0_225 = arith.constant 0 : index
    %232 = vector.load %arg4[%c0_224, %c0_225] : memref<16x32xf32, #tpu.memory_space<vmem>>, vector<16x32xf32>
    %cst_226 = arith.constant dense<0.000000e+00> : vector<8x32xf32>
    %233 = tpu.matmul %231, %232, %cst_226 {dimension_numbers = #tpu.dot_dimension_numbers<[1], [0], [0], [1], [0, 0, 1, 1], [], []>} : vector<8x16xf32>, vector<16x32xf32>, vector<8x32xf32> -> vector<8x32xf32>
    %c0_227 = arith.constant 0 : index
    %c0_228 = arith.constant 0 : index
    %c960 = arith.constant 960 : index
    %234 = vector.load %arg6[%c0_227, %c0_228, %c960] : memref<1x8x1024xf32, #tpu.memory_space<vmem>>, vector<1x8x32xf32>
    %235 = vector.shape_cast %234 : vector<1x8x32xf32> to vector<8x32xf32>
    %236 = vector.shape_cast %233 : vector<8x32xf32> to vector<1x8x32xf32>
    tpu.vector_store %arg6[%c0_227, %c0_228, %c960], %236 {strides = array<i32>} : memref<1x8x1024xf32, #tpu.memory_space<vmem>>, vector<1x8x32xf32>,
    %c0_229 = arith.constant 0 : index
    %c0_230 = arith.constant 0 : index
    %c992 = arith.constant 992 : index
    %237 = vector.load %arg6[%c0_229, %c0_230, %c992] : memref<1x8x1024xf32, #tpu.memory_space<vmem>>, vector<1x8x32xf32>
    %238 = vector.shape_cast %237 : vector<1x8x32xf32> to vector<8x32xf32>
    %239 = vector.shape_cast %233 : vector<8x32xf32> to vector<1x8x32xf32>
    tpu.vector_store %arg6[%c0_229, %c0_230, %c992], %239 {strides = array<i32>} : memref<1x8x1024xf32, #tpu.memory_space<vmem>>, vector<1x8x32xf32>,
    return
  }
  func.func @transform_0(%arg0: i32, %arg1: i32) -> (i32, i32, i32) {
    %c0_i32 = arith.constant 0 : i32
    %c0_i32_0 = arith.constant 0 : i32
    return %arg0, %c0_i32, %arg1 : i32, i32, i32
  }
  func.func @transform_1(%arg0: i32, %arg1: i32) -> (i32, i32) {
    %c0_i32 = arith.constant 0 : i32
    %c0_i32_0 = arith.constant 0 : i32
    %c0_i32_1 = arith.constant 0 : i32
    return %c0_i32, %c0_i32_0 : i32, i32
  }
  func.func @transform_2(%arg0: i32, %arg1: i32) -> (i32, i32) {
    %c0_i32 = arith.constant 0 : i32
    %c0_i32_0 = arith.constant 0 : i32
    %c0_i32_1 = arith.constant 0 : i32
    return %c0_i32, %c0_i32_0 : i32, i32
  }
  func.func @transform_3(%arg0: i32, %arg1: i32) -> (i32, i32) {
    %c0_i32 = arith.constant 0 : i32
    %c0_i32_0 = arith.constant 0 : i32
    %c0_i32_1 = arith.constant 0 : i32
    return %c0_i32, %c0_i32_0 : i32, i32
  }
  func.func @transform_4(%arg0: i32, %arg1: i32) -> (i32, i32, i32) {
    %c0_i32 = arith.constant 0 : i32
    %c0_i32_0 = arith.constant 0 : i32
    return %arg0, %c0_i32, %arg1 : i32, i32, i32
  }
}

</mosaic_0001>

<llo_original>
// kernel: tpu_custom_call.1
$region0: #{tpu_custom_call.1}
  #allocation0 [shape = 'u32[]', space=smem, size = 0x4, offset = 0x4, fixed_abs, tag = 'smem constant byte address 0x4 - core index']
  #allocation1 [shape = 'u32[144,128]{1,0:T(1,128)}', space=vmem, size = 0x12000, scoped, tag = 'internal scratch']
  %s0 = inlined_call_operand.vmem [shape: f32[2,4,256], index: 0, kind: input, shape index: {}]
  %s1 = inlined_call_operand.vmem [shape: f32[8,4], index: 1, kind: input, shape index: {}]
  %s2 = inlined_call_operand.hbm [shape: f32[16,32], index: 2, kind: input, shape index: {}]
  %s3 = inlined_call_operand.vmem [shape: f32[8,1], index: 3, kind: input, shape index: {}]
  %s4 = inlined_call_operand.hbm [shape: f32[2,8,1024], index: 4, kind: output, shape index: {}]
  %s5 = sld [smem:[#allocation0]]
  $region53: #{tpu_custom_call.1} parent=0
    _
  %s7 = ssub.s32 1, %s5
  %s8 = scalar_select 0, %s7, %s5
  $region1: #{tpu_custom_call.1} parent=0
    #allocation2 [shape = 'u8[8192]{0}', space=vmem, size = 0x2000, scoped, tag = 'input window, operand 2, single buffered']
    #allocation3 [shape = 's32[2]{0}', space=sflag, size = 0x8, scoped, tag = 'scoped memory for tpu_custom_call.1']
    #allocation4 [shape = 's32[2]{0}', space=sflag, size = 0x8, scoped, tag = 'scoped memory for tpu_custom_call.1']
    #allocation5 [shape = 'u8[65536]{0}', space=vmem, size = 0x10000, scoped, tag = 'output window, operand 0']
    %9 = vsyncpa [#allocation3], 0
    %10 = vsyncpa [#allocation4], 0
    %s11 = scalar_lea.sflag [#allocation4], 1
    %12 = vsyncpa %s11, 0
    loop: start=0, step=1, limit=4
    $region2: #{tpu_custom_call.1} parent=1 // loop_pre_header
      _
    $region3: #{tpu_custom_call.1} parent=1 // loop_header
      %s14 = sphi 0, %s18
      %p15 = scmp.ge.s32.totalorder %s14, 4
      %s21 = sphi 0, %s33
      %s22 = sphi 0, %s29
      %s23 = sphi 0, %s21
      %s24 = sphi 0, %s22
      %s25 = sphi 0, %s23
      %s26 = sphi 0, %s24
      %s38 = sphi 0, %s40
      %s41 = sphi 0, %s38
      %s42 = sphi 0, %s41
      %s58 = sphi 0, %s42
      %s62 = sphi 0, %s62
      %s64 = sphi 0, %s62
      %s65 = sphi 0, %s64
      %s79 = sphi 0, %s65
      %s83 = sphi 0, %s83
      %s85 = sphi 0, %s83
      %s86 = sphi 0, %s85
      %s100 = sphi 0, %s86
      %s104 = sphi 0, %s104
      %s106 = sphi 0, %s104
      %s107 = sphi 0, %s106
      %s121 = sphi 0, %s107
      %s129 = sphi 0, %s131
      %s132 = sphi 0, %s129
      %s133 = sphi 0, %s132
      %s149 = sphi 0, %s133
    $region4: #{tpu_custom_call.1} parent=1 // loop_header_branch
      %17 = sbr.rel (%p15) target = $region8
    $region5: #{tpu_custom_call.1} parent=1 // loop_body
      %s19 = ssub.s32 %s14, 1
      %s20 = ssub.s32 %s14, 2
      %s27 = sadd.s32 1, %s22
      %p28 = scmp.ge.s32.totalorder %s27, 1
      %s29 = scalar_select %p28, 0, %s27
      %s30 = sadd.s32 1, %s21
      %s31 = scalar_select %p28, %s30, %s21
      %p32 = scmp.ge.s32.totalorder %s31, 2
      %s33 = scalar_select %p32, 0, %s31
      %s34 = ssub.s32 %s21, %s33
      %s35 = ssub.s32 %s22, %s29
      %s36 = sor.u32 %s34, %s35
      %p37 = scmp.eq.s32.totalorder %s36, 0
      %s39 = sadd.s32 %s38, 1
      %s40 = scalar_select %p37, %s38, %s39
      %p43 = pneg %p37
      %p44 = scmp.eq.s32.totalorder %s14, 1
      %p45 = por %p43, %p44
      %p46 = scmp.ne.s32.totalorder %s38, %s41
      %p47 = scmp.eq.s32.totalorder %s14, 0
      %p48 = por %p46, %p47
      %p49 = scmp.ne.s32.totalorder %s38, %s41
      %p50 = scmp.eq.s32.totalorder %s19, 1
      %p51 = por %p49, %p50
      %p52 = scmp.ne.s32.totalorder %s41, %s42
      %p53 = scmp.eq.s32.totalorder %s19, 0
      %p54 = por %p52, %p53
      %p55 = scmp.ne.s32.totalorder %s41, %s42
      %p56 = scmp.eq.s32.totalorder %s20, 1
      %p57 = por %p55, %p56
      %p59 = scmp.ne.s32.totalorder %s42, %s58
      %p60 = scmp.eq.s32.totalorder %s20, 0
      %p61 = por %p59, %p60
      %s63 = sadd.s32 %s62, 1
      %p66 = scmp.eq.s32.totalorder %s14, 1
      %p67 = scmp.ne.s32.totalorder %s62, %s64
      %p68 = scmp.eq.s32.totalorder %s14, 0
      %p69 = por %p67, %p68
      %p70 = scmp.ne.s32.totalorder %s62, %s64
      %p71 = scmp.eq.s32.totalorder %s19, 1
      %p72 = por %p70, %p71
      %p73 = scmp.ne.s32.totalorder %s64, %s65
      %p74 = scmp.eq.s32.totalorder %s19, 0
      %p75 = por %p73, %p74
      %p76 = scmp.ne.s32.totalorder %s64, %s65
      %p77 = scmp.eq.s32.totalorder %s20, 1
      %p78 = por %p76, %p77
      %p80 = scmp.ne.s32.totalorder %s65, %s79
      %p81 = scmp.eq.s32.totalorder %s20, 0
      %p82 = por %p80, %p81
      %s84 = sadd.s32 %s83, 1
      %p87 = scmp.eq.s32.totalorder %s14, 1
      %p88 = scmp.ne.s32.totalorder %s83, %s85
      %p89 = scmp.eq.s32.totalorder %s14, 0
      %p90 = por %p88, %p89
      %p91 = scmp.ne.s32.totalorder %s83, %s85
      %p92 = scmp.eq.s32.totalorder %s19, 1
      %p93 = por %p91, %p92
      %p94 = scmp.ne.s32.totalorder %s85, %s86
      %p95 = scmp.eq.s32.totalorder %s19, 0
      %p96 = por %p94, %p95
      %p97 = scmp.ne.s32.totalorder %s85, %s86
      %p98 = scmp.eq.s32.totalorder %s20, 1
      %p99 = por %p97, %p98
      %p101 = scmp.ne.s32.totalorder %s86, %s100
      %p102 = scmp.eq.s32.totalorder %s20, 0
      %p103 = por %p101, %p102
      %s105 = sadd.s32 %s104, 1
      %p108 = scmp.eq.s32.totalorder %s14, 1
      %p109 = scmp.ne.s32.totalorder %s104, %s106
      %p110 = scmp.eq.s32.totalorder %s14, 0
      %p111 = por %p109, %p110
      %p112 = scmp.ne.s32.totalorder %s104, %s106
      %p113 = scmp.eq.s32.totalorder %s19, 1
      %p114 = por %p112, %p113
      %p115 = scmp.ne.s32.totalorder %s106, %s107
      %p116 = scmp.eq.s32.totalorder %s19, 0
      %p117 = por %p115, %p116
      %p118 = scmp.ne.s32.totalorder %s106, %s107
      %p119 = scmp.eq.s32.totalorder %s20, 1
      %p120 = por %p118, %p119
      %p122 = scmp.ne.s32.totalorder %s107, %s121
      %p123 = scmp.eq.s32.totalorder %s20, 0
      %p124 = por %p122, %p123
      %s125 = ssub.s32 %s21, %s33
      %s126 = ssub.s32 %s22, %s29
      %s127 = sor.u32 %s125, %s126
      %p128 = scmp.eq.s32.totalorder %s127, 0
      %s130 = sadd.s32 %s129, 1
      %s131 = scalar_select %p128, %s129, %s130
      %p134 = pneg %p128
      %p135 = scmp.eq.s32.totalorder %s14, 1
      %p136 = por %p134, %p135
      %p137 = scmp.ne.s32.totalorder %s129, %s132
      %p138 = scmp.eq.s32.totalorder %s14, 0
      %p139 = por %p137, %p138
      %p140 = scmp.ne.s32.totalorder %s129, %s132
      %p141 = scmp.eq.s32.totalorder %s19, 1
      %p142 = por %p140, %p141
      %p143 = scmp.ne.s32.totalorder %s132, %s133
      %p144 = scmp.eq.s32.totalorder %s19, 0
      %p145 = por %p143, %p144
      %p146 = scmp.ne.s32.totalorder %s132, %s133
      %p147 = scmp.eq.s32.totalorder %s20, 1
      %p148 = por %p146, %p147
      %p150 = scmp.ne.s32.totalorder %s133, %s149
      %p151 = scmp.eq.s32.totalorder %s20, 0
      %p152 = por %p150, %p151
      %p153 = scmp.le.s32.totalorder 1, %s14
      %p154 = scmp.lt.s32.totalorder %s14, 3
      %p155 = pnand %p153, %p154
      %p156 = pneg %p155
      // Predicated region
      $region9: #{tpu_custom_call.1} parent=5 // pred_check
        _
      $region10: #{tpu_custom_call.1} parent=5 // pred_check_branch
        %158 = sbr.rel (%p155) target = $region12
      $region11: #{tpu_custom_call.1} parent=5 // pred_region
        %s159 = ssub.s32 %s14, 1
        // Predicated region
        $region13: #{tpu_custom_call.1} parent=11 // pred_check
          %p160 = pneg %p75
        $region14: #{tpu_custom_call.1} parent=11 // pred_check_branch
          %162 = sbr.rel (%p160) target = $region16
        $region15: #{tpu_custom_call.1} parent=11 // pred_region
          _
        $region16: #{tpu_custom_call.1} parent=11 // pred_fallthru
          _
        // Predicated region
        $region17: #{tpu_custom_call.1} parent=11 // pred_check
          %p163 = pneg %p96
        $region18: #{tpu_custom_call.1} parent=11 // pred_check_branch
          %165 = sbr.rel (%p163) target = $region20
        $region19: #{tpu_custom_call.1} parent=11 // pred_region
          %s167 = ssub.s32 256, 256
          %168 = vsyncadd [#allocation3], %s167
          %s169 = sshll.u32 [#allocation2], 4
          %s170 = int_to_ptr.vmem [resolvable:$true] %s169
          %175 = dma.hbm_to_vmem [thread:$0]  %s2, 256, %s170, [#allocation3], 128, 128, 8
        $region20: #{tpu_custom_call.1} parent=11 // pred_fallthru
          _
        // Predicated region
        $region21: #{tpu_custom_call.1} parent=11 // pred_check
          %p176 = pneg %p117
        $region22: #{tpu_custom_call.1} parent=11 // pred_check_branch
          %178 = sbr.rel (%p176) target = $region24
        $region23: #{tpu_custom_call.1} parent=11 // pred_region
          _
        $region24: #{tpu_custom_call.1} parent=11 // pred_fallthru
          _
      $region12: #{tpu_custom_call.1} parent=5 // pred_fallthru
        _
      %p179 = scmp.lt.s32.totalorder %s14, 2
      // Predicated region
      $region25: #{tpu_custom_call.1} parent=5 // pred_check
        %p180 = pneg %p179
      $region26: #{tpu_custom_call.1} parent=5 // pred_check_branch
        %182 = sbr.rel (%p180) target = $region28
      $region27: #{tpu_custom_call.1} parent=5 // pred_region
        // Predicated region
        $region29: #{tpu_custom_call.1} parent=27 // pred_check
          %p183 = pneg %p48
        $region30: #{tpu_custom_call.1} parent=27 // pred_check_branch
          %185 = sbr.rel (%p183) target = $region32
        $region31: #{tpu_custom_call.1} parent=27 // pred_region
          %s186 = smul.u32 2, %s22
          %p187 = scmp.lt.s32.totalorder %s21, 1
          %s188 = scalar_select %p187, %s21, 1
          %p189 = scmp.lt.s32.totalorder %s186, 1
          %s190 = scalar_select %p189, %s186, 1
          %s191 = smul.addr %s188, 2
          %s192 = sadd.s32 %s190, %s191
          %s193 = smul.addr %s192, 4
          %s194 = scalar_lea.vmem %s0, %s193
          %s195 = smul.u32 2, %s22
        $region32: #{tpu_custom_call.1} parent=27 // pred_fallthru
          _
      $region28: #{tpu_custom_call.1} parent=5 // pred_fallthru
        _
      %p196 = scmp.le.s32.totalorder 1, %s14
      %p197 = scmp.lt.s32.totalorder %s14, 3
      %p198 = pnand %p196, %p197
      %p199 = pneg %p198
      // Predicated region
      $region33: #{tpu_custom_call.1} parent=5 // pred_check
        _
      $region34: #{tpu_custom_call.1} parent=5 // pred_check_branch
        %201 = sbr.rel (%p198) target = $region36
      $region35: #{tpu_custom_call.1} parent=5 // pred_region
        %s202 = ssub.s32 %s14, 1
        // Predicated region
        $region37: #{tpu_custom_call.1} parent=35 // pred_check
          %p203 = pneg %p96
        $region38: #{tpu_custom_call.1} parent=35 // pred_check_branch
          %205 = sbr.rel (%p203) target = $region40
        $region39: #{tpu_custom_call.1} parent=35 // pred_region
          %206 = dma.done [#allocation3], 256
        $region40: #{tpu_custom_call.1} parent=35 // pred_fallthru
          _
        %s207 = smul.u32 2, %s24
        %p208 = scmp.lt.s32.totalorder %s23, 1
        %s209 = scalar_select %p208, %s23, 1
        %p210 = scmp.lt.s32.totalorder %s207, 1
        %s211 = scalar_select %p210, %s207, 1
        %s212 = smul.addr %s209, 2
        %s213 = sadd.s32 %s211, %s212
        %s214 = smul.addr %s213, 4
        %s215 = scalar_lea.vmem %s0, %s214
        %p216 = pneg %p54
        %p217 = pneg %p51
        %p218 = pneg %p75
        %p219 = pneg %p72
        %p220 = pneg %p96
        %p221 = pneg %p93
        %p222 = pneg %p117
        %p223 = pneg %p114
        %p224 = pneg %p145
        %p225 = pneg %p142
        %s226 = sand.u32 %s132, 1
        %s227 = scalar_lea.sflag [#allocation4], %s226
        %s228 = sand.u32 %s132, 1
        %s229 = smul.addr %s228, 64
        %s230 = scalar_lea.vmem [#allocation5], %s229
        %s231 = smul.u32 2, %s24
        %p232 = scmp.lt.s32.totalorder %s23, 1
        %s233 = scalar_select %p232, %s23, 1
        %p234 = scmp.lt.s32.totalorder %s231, 1
        %s235 = scalar_select %p234, %s231, 1
        %s236 = smul.addr %s233, 2
        %s237 = sadd.s32 %s235, %s236
        %s238 = smul.addr %s237, 4
        %s239 = scalar_lea.vmem %s0, %s238
        %s240 = smul.u32 2, %s24
        %s241 = smul.u32 8, %s24
        %v242 = vld [vmem:[%s239] sm:$0xf]
        %v243 = vld [vmem:[%s1] sm:$0xff]
        %v244 = vld [vmem:[%s3] sm:$0xff]
        %246 = vset.pattern.permute.xlu0 0
        %247 = vperm.xlu0 %246, %v244
        %v248 = vpop.permute.xlu0 %247
        %vm250 = vcmask 31744
        %v252 = vsel %vm250, %v243, 0
        %vm254 = vcmask 1043456
        %v256 = vsel %vm254, %v242, 0
        %258 = vmatprep.subr.mxu0 0.0
        %259 = vmatpush1.msra.mxu0 %v256
        %260 = vmatprep.subr.mxu0 0.0
        %261 = vmatpush1.msra.mxu0 0.0
        %262 = vmatprep.subr.mxu0 0.0
        %263 = vmatpush1.msra.mxu0 0.0
        %264 = vmatprep.subr.mxu0 0.0
        %265 = vmatpush1.msra.mxu0 0.0
        %266 = vmatprep.subr.mxu0 0.0
        %267 = vmatpush1.msra.mxu0 0.0
        %268 = vmatprep.subr.mxu0 0.0
        %269 = vmatpush1.msra.mxu0 0.0
        %270 = vmatprep.subr.mxu0 0.0
        %271 = vmatpush1.msra.mxu0 0.0
        %272 = vmatprep.subr.mxu0 0.0
        %273 = vmatpush1.msra.mxu0 0.0
        %274 = vmatprep.subr.mxu0 0.0
        %275 = vmatpush1.msra.mxu0 0.0
        %276 = vmatprep.subr.mxu0 0.0
        %277 = vmatpush1.msra.mxu0 0.0
        %278 = vmatprep.subr.mxu0 0.0
        %279 = vmatpush1.msra.mxu0 0.0
        %280 = vmatprep.subr.mxu0 0.0
        %281 = vmatpush1.msra.mxu0 0.0
        %282 = vmatprep.subr.mxu0 0.0
        %283 = vmatpush1.msra.mxu0 0.0
        %284 = vmatprep.subr.mxu0 0.0
        %285 = vmatpush1.msra.mxu0 0.0
        %286 = vmatprep.subr.mxu0 0.0
        %287 = vmatpush1.msra.mxu0 0.0
        %288 = vmatprep.subr.mxu0 0.0
        %289 = vmatpush1.msra.mxu0 0.0
        %290 = vmatprep.subr.mxu0 0.0
        %291 = vmatpush1.msra.mxu0 0.0
        %292 = vmatprep.subr.mxu0 0.0
        %293 = vmatpush1.msra.mxu0 0.0
        %294 = vmatprep.subr.mxu0 0.0
        %295 = vmatpush1.msra.mxu0 0.0
        %296 = vmatprep.subr.mxu0 0.0
        %297 = vmatpush1.msra.mxu0 0.0
        %298 = vmatprep.subr.mxu0 0.0
        %299 = vmatpush1.msra.mxu0 0.0
        %300 = vmatprep.subr.mxu0 0.0
        %301 = vmatpush1.msra.mxu0 0.0
        %302 = vmatprep.subr.mxu0 0.0
        %303 = vmatpush1.msra.mxu0 0.0
        %304 = vmatprep.subr.mxu0 0.0
        %305 = vmatpush1.msra.mxu0 0.0
        %306 = vmatprep.subr.mxu0 0.0
        %307 = vmatpush1.msra.mxu0 0.0
        %308 = vmatprep.subr.mxu0 0.0
        %309 = vmatpush1.msra.mxu0 0.0
        %310 = vmatprep.subr.mxu0 0.0
        %311 = vmatpush1.msra.mxu0 0.0
        %312 = vmatprep.subr.mxu0 0.0
        %313 = vmatpush1.msra.mxu0 0.0
        %314 = vmatprep.subr.mxu0 0.0
        %315 = vmatpush1.msra.mxu0 0.0
        %316 = vmatprep.subr.mxu0 0.0
        %317 = vmatpush1.msra.mxu0 0.0
        %318 = vmatprep.subr.mxu0 0.0
        %319 = vmatpush1.msra.mxu0 0.0
        %320 = vmatprep.subr.mxu0 0.0
        %321 = vmatpush1.msra.mxu0 0.0
        %322 = vmatprep.mubr.f32.mxu0 0.0
        %323 = vmatmul.mubr.f32.gmra.mrb[0].mxu0 %v252
        %v324 = vpop.f32.mrb[0].mxu0
        %v325 = vadd.f32 %v248, %v324
        %v326 = vpop.f32.mrb[0].mxu0
        %327 = vdwg.mxu0
        %v328 = vld [vmem:[#allocation2] sm:$0xff]
        %v329 = vld [vmem:[#allocation2 + $0x8] sm:$0xff]
        %vm330 = vcmask 130048
        %v332 = vsel %vm330, %v325, 0
        %334 = vmatprep.subr.mxu0 0.0
        %335 = vmatpush1.msra.mxu0 %v328
        %336 = vmatprep.subr.mxu0 0.0
        %337 = vmatpush1.msra.mxu0 %v329
        %338 = vmatprep.subr.mxu0 0.0
        %339 = vmatpush1.msra.mxu0 0.0
        %340 = vmatprep.subr.mxu0 0.0
        %341 = vmatpush1.msra.mxu0 0.0
        %342 = vmatprep.subr.mxu0 0.0
        %343 = vmatpush1.msra.mxu0 0.0
        %344 = vmatprep.subr.mxu0 0.0
        %345 = vmatpush1.msra.mxu0 0.0
        %346 = vmatprep.subr.mxu0 0.0
        %347 = vmatpush1.msra.mxu0 0.0
        %348 = vmatprep.subr.mxu0 0.0
        %349 = vmatpush1.msra.mxu0 0.0
        %350 = vmatprep.subr.mxu0 0.0
        %351 = vmatpush1.msra.mxu0 0.0
        %352 = vmatprep.subr.mxu0 0.0
        %353 = vmatpush1.msra.mxu0 0.0
        %354 = vmatprep.subr.mxu0 0.0
        %355 = vmatpush1.msra.mxu0 0.0
        %356 = vmatprep.subr.mxu0 0.0
        %357 = vmatpush1.msra.mxu0 0.0
        %358 = vmatprep.subr.mxu0 0.0
        %359 = vmatpush1.msra.mxu0 0.0
        %360 = vmatprep.subr.mxu0 0.0
        %361 = vmatpush1.msra.mxu0 0.0
        %362 = vmatprep.subr.mxu0 0.0
        %363 = vmatpush1.msra.mxu0 0.0
        %364 = vmatprep.subr.mxu0 0.0
        %365 = vmatpush1.msra.mxu0 0.0
        %366 = vmatprep.subr.mxu0 0.0
        %367 = vmatpush1.msra.mxu0 0.0
        %368 = vmatprep.subr.mxu0 0.0
        %369 = vmatpush1.msra.mxu0 0.0
        %370 = vmatprep.subr.mxu0 0.0
        %371 = vmatpush1.msra.mxu0 0.0
        %372 = vmatprep.subr.mxu0 0.0
        %373 = vmatpush1.msra.mxu0 0.0
        %374 = vmatprep.subr.mxu0 0.0
        %375 = vmatpush1.msra.mxu0 0.0
        %376 = vmatprep.subr.mxu0 0.0
        %377 = vmatpush1.msra.mxu0 0.0
        %378 = vmatprep.subr.mxu0 0.0
        %379 = vmatpush1.msra.mxu0 0.0
        %380 = vmatprep.subr.mxu0 0.0
        %381 = vmatpush1.msra.mxu0 0.0
        %382 = vmatprep.subr.mxu0 0.0
        %383 = vmatpush1.msra.mxu0 0.0
        %384 = vmatprep.subr.mxu0 0.0
        %385 = vmatpush1.msra.mxu0 0.0
        %386 = vmatprep.subr.mxu0 0.0
        %387 = vmatpush1.msra.mxu0 0.0
        %388 = vmatprep.subr.mxu0 0.0
        %389 = vmatpush1.msra.mxu0 0.0
        %390 = vmatprep.subr.mxu0 0.0
        %391 = vmatpush1.msra.mxu0 0.0
        %392 = vmatprep.subr.mxu0 0.0
        %393 = vmatpush1.msra.mxu0 0.0
        %394 = vmatprep.subr.mxu0 0.0
        %395 = vmatpush1.msra.mxu0 0.0
        %396 = vmatprep.subr.mxu0 0.0
        %397 = vmatpush1.msra.mxu0 0.0
        %398 = vmatprep.mubr.f32.mxu0 0.0
        %399 = vmatmul.mubr.f32.gmra.mrb[0].mxu0 %v332
        %v400 = vpop.f32.mrb[0].mxu0
        %v401 = vadd.f32 0.0, %v400
        %v402 = vpop.f32.mrb[0].mxu0
        %403 = vdwg.mxu0
        %vm404 = vcmask 261120
        %405 = vst.msk [vmem:[%s230] sm:$0xff] %vm404, %v401
        %407 = vrot.lane.b32.xlu0 %v401, 32
        %v408 = vpop.permute.xlu0 %407
        %vm410 = vcmask 523520
        %411 = vst.msk [vmem:[%s230] sm:$0xff] %vm410, %v408
        %v412 = vld [vmem:[%s239] sm:$0xf]
        %v413 = vld [vmem:[%s1] sm:$0xff]
        %v414 = vld [vmem:[%s3] sm:$0xff]
        %416 = vset.pattern.permute.xlu0 0
        %417 = vperm.xlu0 %416, %v414
        %v418 = vpop.permute.xlu0 %417
        %421 = vrot.lane.b32.xlu0 %v412, 112
        %v422 = vpop.permute.xlu0 %421
        %v424 = vsel %vm250, %v413, 0
        %v426 = vsel %vm254, %v422, 0
        %428 = vmatprep.subr.mxu0 0.0
        %429 = vmatpush1.msra.mxu0 %v426
        %430 = vmatprep.subr.mxu0 0.0
        %431 = vmatpush1.msra.mxu0 0.0
        %432 = vmatprep.subr.mxu0 0.0
        %433 = vmatpush1.msra.mxu0 0.0
        %434 = vmatprep.subr.mxu0 0.0
        %435 = vmatpush1.msra.mxu0 0.0
        %436 = vmatprep.subr.mxu0 0.0
        %437 = vmatpush1.msra.mxu0 0.0
        %438 = vmatprep.subr.mxu0 0.0
        %439 = vmatpush1.msra.mxu0 0.0
        %440 = vmatprep.subr.mxu0 0.0
        %441 = vmatpush1.msra.mxu0 0.0
        %442 = vmatprep.subr.mxu0 0.0
        %443 = vmatpush1.msra.mxu0 0.0
        %444 = vmatprep.subr.mxu0 0.0
        %445 = vmatpush1.msra.mxu0 0.0
        %446 = vmatprep.subr.mxu0 0.0
        %447 = vmatpush1.msra.mxu0 0.0
        %448 = vmatprep.subr.mxu0 0.0
        %449 = vmatpush1.msra.mxu0 0.0
        %450 = vmatprep.subr.mxu0 0.0
        %451 = vmatpush1.msra.mxu0 0.0
        %452 = vmatprep.subr.mxu0 0.0
        %453 = vmatpush1.msra.mxu0 0.0
        %454 = vmatprep.subr.mxu0 0.0
        %455 = vmatpush1.msra.mxu0 0.0
        %456 = vmatprep.subr.mxu0 0.0
        %457 = vmatpush1.msra.mxu0 0.0
        %458 = vmatprep.subr.mxu0 0.0
        %459 = vmatpush1.msra.mxu0 0.0
        %460 = vmatprep.subr.mxu0 0.0
        %461 = vmatpush1.msra.mxu0 0.0
        %462 = vmatprep.subr.mxu0 0.0
        %463 = vmatpush1.msra.mxu0 0.0
        %464 = vmatprep.subr.mxu0 0.0
        %465 = vmatpush1.msra.mxu0 0.0
        %466 = vmatprep.subr.mxu0 0.0
        %467 = vmatpush1.msra.mxu0 0.0
        %468 = vmatprep.subr.mxu0 0.0
        %469 = vmatpush1.msra.mxu0 0.0
        %470 = vmatprep.subr.mxu0 0.0
        %471 = vmatpush1.msra.mxu0 0.0
        %472 = vmatprep.subr.mxu0 0.0
        %473 = vmatpush1.msra.mxu0 0.0
        %474 = vmatprep.subr.mxu0 0.0
        %475 = vmatpush1.msra.mxu0 0.0
        %476 = vmatprep.subr.mxu0 0.0
        %477 = vmatpush1.msra.mxu0 0.0
        %478 = vmatprep.subr.mxu0 0.0
        %479 = vmatpush1.msra.mxu0 0.0
        %480 = vmatprep.subr.mxu0 0.0
        %481 = vmatpush1.msra.mxu0 0.0
        %482 = vmatprep.subr.mxu0 0.0
        %483 = vmatpush1.msra.mxu0 0.0
        %484 = vmatprep.subr.mxu0 0.0
        %485 = vmatpush1.msra.mxu0 0.0
        %486 = vmatprep.subr.mxu0 0.0
        %487 = vmatpush1.msra.mxu0 0.0
        %488 = vmatprep.subr.mxu0 0.0
        %489 = vmatpush1.msra.mxu0 0.0
        %490 = vmatprep.subr.mxu0 0.0
        %491 = vmatpush1.msra.mxu0 0.0
        %492 = vmatprep.mubr.f32.mxu0 0.0
        %493 = vmatmul.mubr.f32.gmra.mrb[0].mxu0 %v424
        %v494 = vpop.f32.mrb[0].mxu0
        %v495 = vadd.f32 %v418, %v494
        %v496 = vpop.f32.mrb[0].mxu0
        %497 = vdwg.mxu0
        %v498 = vld [vmem:[#allocation2] sm:$0xff]
        %v499 = vld [vmem:[#allocation2 + $0x8] sm:$0xff]
        %v501 = vsel %vm330, %v495, 0
        %503 = vmatprep.subr.mxu0 0.0
        %504 = vmatpush1.msra.mxu0 %v498
        %505 = vmatprep.subr.mxu0 0.0
        %506 = vmatpush1.msra.mxu0 %v499
        %507 = vmatprep.subr.mxu0 0.0
        %508 = vmatpush1.msra.mxu0 0.0
        %509 = vmatprep.subr.mxu0 0.0
        %510 = vmatpush1.msra.mxu0 0.0
        %511 = vmatprep.subr.mxu0 0.0
        %512 = vmatpush1.msra.mxu0 0.0
        %513 = vmatprep.subr.mxu0 0.0
        %514 = vmatpush1.msra.mxu0 0.0
        %515 = vmatprep.subr.mxu0 0.0
        %516 = vmatpush1.msra.mxu0 0.0
        %517 = vmatprep.subr.mxu0 0.0
        %518 = vmatpush1.msra.mxu0 0.0
        %519 = vmatprep.subr.mxu0 0.0
        %520 = vmatpush1.msra.mxu0 0.0
        %521 = vmatprep.subr.mxu0 0.0
        %522 = vmatpush1.msra.mxu0 0.0
        %523 = vmatprep.subr.mxu0 0.0
        %524 = vmatpush1.msra.mxu0 0.0
        %525 = vmatprep.subr.mxu0 0.0
        %526 = vmatpush1.msra.mxu0 0.0
        %527 = vmatprep.subr.mxu0 0.0
        %528 = vmatpush1.msra.mxu0 0.0
        %529 = vmatprep.subr.mxu0 0.0
        %530 = vmatpush1.msra.mxu0 0.0
        %531 = vmatprep.subr.mxu0 0.0
        %532 = vmatpush1.msra.mxu0 0.0
        %533 = vmatprep.subr.mxu0 0.0
        %534 = vmatpush1.msra.mxu0 0.0
        %535 = vmatprep.subr.mxu0 0.0
        %536 = vmatpush1.msra.mxu0 0.0
        %537 = vmatprep.subr.mxu0 0.0
        %538 = vmatpush1.msra.mxu0 0.0
        %539 = vmatprep.subr.mxu0 0.0
        %540 = vmatpush1.msra.mxu0 0.0
        %541 = vmatprep.subr.mxu0 0.0
        %542 = vmatpush1.msra.mxu0 0.0
        %543 = vmatprep.subr.mxu0 0.0
        %544 = vmatpush1.msra.mxu0 0.0
        %545 = vmatprep.subr.mxu0 0.0
        %546 = vmatpush1.msra.mxu0 0.0
        %547 = vmatprep.subr.mxu0 0.0
        %548 = vmatpush1.msra.mxu0 0.0
        %549 = vmatprep.subr.mxu0 0.0
        %550 = vmatpush1.msra.mxu0 0.0
        %551 = vmatprep.subr.mxu0 0.0
        %552 = vmatpush1.msra.mxu0 0.0
        %553 = vmatprep.subr.mxu0 0.0
        %554 = vmatpush1.msra.mxu0 0.0
        %555 = vmatprep.subr.mxu0 0.0
        %556 = vmatpush1.msra.mxu0 0.0
        %557 = vmatprep.subr.mxu0 0.0
        %558 = vmatpush1.msra.mxu0 0.0
        %559 = vmatprep.subr.mxu0 0.0
        %560 = vmatpush1.msra.mxu0 0.0
        %561 = vmatprep.subr.mxu0 0.0
        %562 = vmatpush1.msra.mxu0 0.0
        %563 = vmatprep.subr.mxu0 0.0
        %564 = vmatpush1.msra.mxu0 0.0
        %565 = vmatprep.subr.mxu0 0.0
        %566 = vmatpush1.msra.mxu0 0.0
        %567 = vmatprep.mubr.f32.mxu0 0.0
        %568 = vmatmul.mubr.f32.gmra.mrb[0].mxu0 %v501
        %v569 = vpop.f32.mrb[0].mxu0
        %v570 = vadd.f32 0.0, %v569
        %v571 = vpop.f32.mrb[0].mxu0
        %572 = vdwg.mxu0
        %574 = vrot.lane.b32.xlu0 %v570, 64
        %v575 = vpop.permute.xlu0 %574
        %vm577 = vcmask 785920
        %578 = vst.msk [vmem:[%s230] sm:$0xff] %vm577, %v575
        %579 = vrot.lane.b32.xlu0 %v570, 96
        %v580 = vpop.permute.xlu0 %579
        %vm582 = vcmask 1048320
        %583 = vst.msk [vmem:[%s230] sm:$0xff] %vm582, %v580
        %v584 = vld [vmem:[%s239] sm:$0xf]
        %v585 = vld [vmem:[%s1] sm:$0xff]
        %v586 = vld [vmem:[%s3] sm:$0xff]
        %588 = vset.pattern.permute.xlu0 0
        %589 = vperm.xlu0 %588, %v586
        %v590 = vpop.permute.xlu0 %589
        %593 = vrot.lane.b32.xlu0 %v584, 96
        %v594 = vpop.permute.xlu0 %593
        %v596 = vsel %vm250, %v585, 0
        %v598 = vsel %vm254, %v594, 0
        %600 = vmatprep.subr.mxu0 0.0
        %601 = vmatpush1.msra.mxu0 %v598
        %602 = vmatprep.subr.mxu0 0.0
        %603 = vmatpush1.msra.mxu0 0.0
        %604 = vmatprep.subr.mxu0 0.0
        %605 = vmatpush1.msra.mxu0 0.0
        %606 = vmatprep.subr.mxu0 0.0
        %607 = vmatpush1.msra.mxu0 0.0
        %608 = vmatprep.subr.mxu0 0.0
        %609 = vmatpush1.msra.mxu0 0.0
        %610 = vmatprep.subr.mxu0 0.0
        %611 = vmatpush1.msra.mxu0 0.0
        %612 = vmatprep.subr.mxu0 0.0
        %613 = vmatpush1.msra.mxu0 0.0
        %614 = vmatprep.subr.mxu0 0.0
        %615 = vmatpush1.msra.mxu0 0.0
        %616 = vmatprep.subr.mxu0 0.0
        %617 = vmatpush1.msra.mxu0 0.0
        %618 = vmatprep.subr.mxu0 0.0
        %619 = vmatpush1.msra.mxu0 0.0
        %620 = vmatprep.subr.mxu0 0.0
        %621 = vmatpush1.msra.mxu0 0.0
        %622 = vmatprep.subr.mxu0 0.0
        %623 = vmatpush1.msra.mxu0 0.0
        %624 = vmatprep.subr.mxu0 0.0
        %625 = vmatpush1.msra.mxu0 0.0
        %626 = vmatprep.subr.mxu0 0.0
        %627 = vmatpush1.msra.mxu0 0.0
        %628 = vmatprep.subr.mxu0 0.0
        %629 = vmatpush1.msra.mxu0 0.0
        %630 = vmatprep.subr.mxu0 0.0
        %631 = vmatpush1.msra.mxu0 0.0
        %632 = vmatprep.subr.mxu0 0.0
        %633 = vmatpush1.msra.mxu0 0.0
        %634 = vmatprep.subr.mxu0 0.0
        %635 = vmatpush1.msra.mxu0 0.0
        %636 = vmatprep.subr.mxu0 0.0
        %637 = vmatpush1.msra.mxu0 0.0
        %638 = vmatprep.subr.mxu0 0.0
        %639 = vmatpush1.msra.mxu0 0.0
        %640 = vmatprep.subr.mxu0 0.0
        %641 = vmatpush1.msra.mxu0 0.0
        %642 = vmatprep.subr.mxu0 0.0
        %643 = vmatpush1.msra.mxu0 0.0
        %644 = vmatprep.subr.mxu0 0.0
        %645 = vmatpush1.msra.mxu0 0.0
        %646 = vmatprep.subr.mxu0 0.0
        %647 = vmatpush1.msra.mxu0 0.0
        %648 = vmatprep.subr.mxu0 0.0
        %649 = vmatpush1.msra.mxu0 0.0
        %650 = vmatprep.subr.mxu0 0.0
        %651 = vmatpush1.msra.mxu0 0.0
        %652 = vmatprep.subr.mxu0 0.0
        %653 = vmatpush1.msra.mxu0 0.0
        %654 = vmatprep.subr.mxu0 0.0
        %655 = vmatpush1.msra.mxu0 0.0
        %656 = vmatprep.subr.mxu0 0.0
        %657 = vmatpush1.msra.mxu0 0.0
        %658 = vmatprep.subr.mxu0 0.0
        %659 = vmatpush1.msra.mxu0 0.0
        %660 = vmatprep.subr.mxu0 0.0
        %661 = vmatpush1.msra.mxu0 0.0
        %662 = vmatprep.subr.mxu0 0.0
        %663 = vmatpush1.msra.mxu0 0.0
        %664 = vmatprep.mubr.f32.mxu0 0.0
        %665 = vmatmul.mubr.f32.gmra.mrb[0].mxu0 %v596
        %v666 = vpop.f32.mrb[0].mxu0
        %v667 = vadd.f32 %v590, %v666
        %v668 = vpop.f32.mrb[0].mxu0
        %669 = vdwg.mxu0
        %v670 = vld [vmem:[#allocation2] sm:$0xff]
        %v671 = vld [vmem:[#allocation2 + $0x8] sm:$0xff]
        %v673 = vsel %vm330, %v667, 0
        %675 = vmatprep.subr.mxu0 0.0
        %676 = vmatpush1.msra.mxu0 %v670
        %677 = vmatprep.subr.mxu0 0.0
        %678 = vmatpush1.msra.mxu0 %v671
        %679 = vmatprep.subr.mxu0 0.0
        %680 = vmatpush1.msra.mxu0 0.0
        %681 = vmatprep.subr.mxu0 0.0
        %682 = vmatpush1.msra.mxu0 0.0
        %683 = vmatprep.subr.mxu0 0.0
        %684 = vmatpush1.msra.mxu0 0.0
        %685 = vmatprep.subr.mxu0 0.0
        %686 = vmatpush1.msra.mxu0 0.0
        %687 = vmatprep.subr.mxu0 0.0
        %688 = vmatpush1.msra.mxu0 0.0
        %689 = vmatprep.subr.mxu0 0.0
        %690 = vmatpush1.msra.mxu0 0.0
        %691 = vmatprep.subr.mxu0 0.0
        %692 = vmatpush1.msra.mxu0 0.0
        %693 = vmatprep.subr.mxu0 0.0
        %694 = vmatpush1.msra.mxu0 0.0
        %695 = vmatprep.subr.mxu0 0.0
        %696 = vmatpush1.msra.mxu0 0.0
        %697 = vmatprep.subr.mxu0 0.0
        %698 = vmatpush1.msra.mxu0 0.0
        %699 = vmatprep.subr.mxu0 0.0
        %700 = vmatpush1.msra.mxu0 0.0
        %701 = vmatprep.subr.mxu0 0.0
        %702 = vmatpush1.msra.mxu0 0.0
        %703 = vmatprep.subr.mxu0 0.0
        %704 = vmatpush1.msra.mxu0 0.0
        %705 = vmatprep.subr.mxu0 0.0
        %706 = vmatpush1.msra.mxu0 0.0
        %707 = vmatprep.subr.mxu0 0.0
        %708 = vmatpush1.msra.mxu0 0.0
        %709 = vmatprep.subr.mxu0 0.0
        %710 = vmatpush1.msra.mxu0 0.0
        %711 = vmatprep.subr.mxu0 0.0
        %712 = vmatpush1.msra.mxu0 0.0
        %713 = vmatprep.subr.mxu0 0.0
        %714 = vmatpush1.msra.mxu0 0.0
        %715 = vmatprep.subr.mxu0 0.0
        %716 = vmatpush1.msra.mxu0 0.0
        %717 = vmatprep.subr.mxu0 0.0
        %718 = vmatpush1.msra.mxu0 0.0
        %719 = vmatprep.subr.mxu0 0.0
        %720 = vmatpush1.msra.mxu0 0.0
        %721 = vmatprep.subr.mxu0 0.0
        %722 = vmatpush1.msra.mxu0 0.0
        %723 = vmatprep.subr.mxu0 0.0
        %724 = vmatpush1.msra.mxu0 0.0
        %725 = vmatprep.subr.mxu0 0.0
        %726 = vmatpush1.msra.mxu0 0.0
        %727 = vmatprep.subr.mxu0 0.0
        %728 = vmatpush1.msra.mxu0 0.0
        %729 = vmatprep.subr.mxu0 0.0
        %730 = vmatpush1.msra.mxu0 0.0
        %731 = vmatprep.subr.mxu0 0.0
        %732 = vmatpush1.msra.mxu0 0.0
        %733 = vmatprep.subr.mxu0 0.0
        %734 = vmatpush1.msra.mxu0 0.0
        %735 = vmatprep.subr.mxu0 0.0
        %736 = vmatpush1.msra.mxu0 0.0
        %737 = vmatprep.subr.mxu0 0.0
        %738 = vmatpush1.msra.mxu0 0.0
        %739 = vmatprep.mubr.f32.mxu0 0.0
        %740 = vmatmul.mubr.f32.gmra.mrb[0].mxu0 %v673
        %v741 = vpop.f32.mrb[0].mxu0
        %v742 = vadd.f32 0.0, %v741
        %v743 = vpop.f32.mrb[0].mxu0
        %744 = vdwg.mxu0
        %745 = vst.msk [vmem:[%s230 + $0x8] sm:$0xff] %vm404, %v742
        %747 = vrot.lane.b32.xlu0 %v742, 32
        %v748 = vpop.permute.xlu0 %747
        %750 = vst.msk [vmem:[%s230 + $0x8] sm:$0xff] %vm410, %v748
        %v751 = vld [vmem:[%s239] sm:$0xf]
        %v752 = vld [vmem:[%s1] sm:$0xff]
        %v753 = vld [vmem:[%s3] sm:$0xff]
        %755 = vset.pattern.permute.xlu0 0
        %756 = vperm.xlu0 %755, %v753
        %v757 = vpop.permute.xlu0 %756
        %760 = vrot.lane.b32.xlu0 %v751, 80
        %v761 = vpop.permute.xlu0 %760
        %v763 = vsel %vm250, %v752, 0
        %v765 = vsel %vm254, %v761, 0
        %767 = vmatprep.subr.mxu0 0.0
        %768 = vmatpush1.msra.mxu0 %v765
        %769 = vmatprep.subr.mxu0 0.0
        %770 = vmatpush1.msra.mxu0 0.0
        %771 = vmatprep.subr.mxu0 0.0
        %772 = vmatpush1.msra.mxu0 0.0
        %773 = vmatprep.subr.mxu0 0.0
        %774 = vmatpush1.msra.mxu0 0.0
        %775 = vmatprep.subr.mxu0 0.0
        %776 = vmatpush1.msra.mxu0 0.0
        %777 = vmatprep.subr.mxu0 0.0
        %778 = vmatpush1.msra.mxu0 0.0
        %779 = vmatprep.subr.mxu0 0.0
        %780 = vmatpush1.msra.mxu0 0.0
        %781 = vmatprep.subr.mxu0 0.0
        %782 = vmatpush1.msra.mxu0 0.0
        %783 = vmatprep.subr.mxu0 0.0
        %784 = vmatpush1.msra.mxu0 0.0
        %785 = vmatprep.subr.mxu0 0.0
        %786 = vmatpush1.msra.mxu0 0.0
        %787 = vmatprep.subr.mxu0 0.0
        %788 = vmatpush1.msra.mxu0 0.0
        %789 = vmatprep.subr.mxu0 0.0
        %790 = vmatpush1.msra.mxu0 0.0
        %791 = vmatprep.subr.mxu0 0.0
        %792 = vmatpush1.msra.mxu0 0.0
        %793 = vmatprep.subr.mxu0 0.0
        %794 = vmatpush1.msra.mxu0 0.0
        %795 = vmatprep.subr.mxu0 0.0
        %796 = vmatpush1.msra.mxu0 0.0
        %797 = vmatprep.subr.mxu0 0.0
        %798 = vmatpush1.msra.mxu0 0.0
        %799 = vmatprep.subr.mxu0 0.0
        %800 = vmatpush1.msra.mxu0 0.0
        %801 = vmatprep.subr.mxu0 0.0
        %802 = vmatpush1.msra.mxu0 0.0
        %803 = vmatprep.subr.mxu0 0.0
        %804 = vmatpush1.msra.mxu0 0.0
        %805 = vmatprep.subr.mxu0 0.0
        %806 = vmatpush1.msra.mxu0 0.0
        %807 = vmatprep.subr.mxu0 0.0
        %808 = vmatpush1.msra.mxu0 0.0
        %809 = vmatprep.subr.mxu0 0.0
        %810 = vmatpush1.msra.mxu0 0.0
        %811 = vmatprep.subr.mxu0 0.0
        %812 = vmatpush1.msra.mxu0 0.0
        %813 = vmatprep.subr.mxu0 0.0
        %814 = vmatpush1.msra.mxu0 0.0
        %815 = vmatprep.subr.mxu0 0.0
        %816 = vmatpush1.msra.mxu0 0.0
        %817 = vmatprep.subr.mxu0 0.0
        %818 = vmatpush1.msra.mxu0 0.0
        %819 = vmatprep.subr.mxu0 0.0
        %820 = vmatpush1.msra.mxu0 0.0
        %821 = vmatprep.subr.mxu0 0.0
        %822 = vmatpush1.msra.mxu0 0.0
        %823 = vmatprep.subr.mxu0 0.0
        %824 = vmatpush1.msra.mxu0 0.0
        %825 = vmatprep.subr.mxu0 0.0
        %826 = vmatpush1.msra.mxu0 0.0
        %827 = vmatprep.subr.mxu0 0.0
        %828 = vmatpush1.msra.mxu0 0.0
        %829 = vmatprep.subr.mxu0 0.0
        %830 = vmatpush1.msra.mxu0 0.0
        %831 = vmatprep.mubr.f32.mxu0 0.0
        %832 = vmatmul.mubr.f32.gmra.mrb[0].mxu0 %v763
        %v833 = vpop.f32.mrb[0].mxu0
        %v834 = vadd.f32 %v757, %v833
        %v835 = vpop.f32.mrb[0].mxu0
        %836 = vdwg.mxu0
        %v837 = vld [vmem:[#allocation2] sm:$0xff]
        %v838 = vld [vmem:[#allocation2 + $0x8] sm:$0xff]
        %v840 = vsel %vm330, %v834, 0
        %842 = vmatprep.subr.mxu0 0.0
        %843 = vmatpush1.msra.mxu0 %v837
        %844 = vmatprep.subr.mxu0 0.0
        %845 = vmatpush1.msra.mxu0 %v838
        %846 = vmatprep.subr.mxu0 0.0
        %847 = vmatpush1.msra.mxu0 0.0
        %848 = vmatprep.subr.mxu0 0.0
        %849 = vmatpush1.msra.mxu0 0.0
        %850 = vmatprep.subr.mxu0 0.0
        %851 = vmatpush1.msra.mxu0 0.0
        %852 = vmatprep.subr.mxu0 0.0
        %853 = vmatpush1.msra.mxu0 0.0
        %854 = vmatprep.subr.mxu0 0.0
        %855 = vmatpush1.msra.mxu0 0.0
        %856 = vmatprep.subr.mxu0 0.0
        %857 = vmatpush1.msra.mxu0 0.0
        %858 = vmatprep.subr.mxu0 0.0
        %859 = vmatpush1.msra.mxu0 0.0
        %860 = vmatprep.subr.mxu0 0.0
        %861 = vmatpush1.msra.mxu0 0.0
        %862 = vmatprep.subr.mxu0 0.0
        %863 = vmatpush1.msra.mxu0 0.0
        %864 = vmatprep.subr.mxu0 0.0
        %865 = vmatpush1.msra.mxu0 0.0
        %866 = vmatprep.subr.mxu0 0.0
        %867 = vmatpush1.msra.mxu0 0.0
        %868 = vmatprep.subr.mxu0 0.0
        %869 = vmatpush1.msra.mxu0 0.0
        %870 = vmatprep.subr.mxu0 0.0
        %871 = vmatpush1.msra.mxu0 0.0
        %872 = vmatprep.subr.mxu0 0.0
        %873 = vmatpush1.msra.mxu0 0.0
        %874 = vmatprep.subr.mxu0 0.0
        %875 = vmatpush1.msra.mxu0 0.0
        %876 = vmatprep.subr.mxu0 0.0
        %877 = vmatpush1.msra.mxu0 0.0
        %878 = vmatprep.subr.mxu0 0.0
        %879 = vmatpush1.msra.mxu0 0.0
        %880 = vmatprep.subr.mxu0 0.0
        %881 = vmatpush1.msra.mxu0 0.0
        %882 = vmatprep.subr.mxu0 0.0
        %883 = vmatpush1.msra.mxu0 0.0
        %884 = vmatprep.subr.mxu0 0.0
        %885 = vmatpush1.msra.mxu0 0.0
        %886 = vmatprep.subr.mxu0 0.0
        %887 = vmatpush1.msra.mxu0 0.0
        %888 = vmatprep.subr.mxu0 0.0
        %889 = vmatpush1.msra.mxu0 0.0
        %890 = vmatprep.subr.mxu0 0.0
        %891 = vmatpush1.msra.mxu0 0.0
        %892 = vmatprep.subr.mxu0 0.0
        %893 = vmatpush1.msra.mxu0 0.0
        %894 = vmatprep.subr.mxu0 0.0
        %895 = vmatpush1.msra.mxu0 0.0
        %896 = vmatprep.subr.mxu0 0.0
        %897 = vmatpush1.msra.mxu0 0.0
        %898 = vmatprep.subr.mxu0 0.0
        %899 = vmatpush1.msra.mxu0 0.0
        %900 = vmatprep.subr.mxu0 0.0
        %901 = vmatpush1.msra.mxu0 0.0
        %902 = vmatprep.subr.mxu0 0.0
        %903 = vmatpush1.msra.mxu0 0.0
        %904 = vmatprep.subr.mxu0 0.0
        %905 = vmatpush1.msra.mxu0 0.0
        %906 = vmatprep.mubr.f32.mxu0 0.0
        %907 = vmatmul.mubr.f32.gmra.mrb[0].mxu0 %v840
        %v908 = vpop.f32.mrb[0].mxu0
        %v909 = vadd.f32 0.0, %v908
        %v910 = vpop.f32.mrb[0].mxu0
        %911 = vdwg.mxu0
        %913 = vrot.lane.b32.xlu0 %v909, 64
        %v914 = vpop.permute.xlu0 %913
        %916 = vst.msk [vmem:[%s230 + $0x8] sm:$0xff] %vm577, %v914
        %917 = vrot.lane.b32.xlu0 %v909, 96
        %v918 = vpop.permute.xlu0 %917
        %920 = vst.msk [vmem:[%s230 + $0x8] sm:$0xff] %vm582, %v918
        %v921 = vld [vmem:[%s239] sm:$0xf]
        %v922 = vld [vmem:[%s1] sm:$0xff]
        %v923 = vld [vmem:[%s3] sm:$0xff]
        %925 = vset.pattern.permute.xlu0 0
        %926 = vperm.xlu0 %925, %v923
        %v927 = vpop.permute.xlu0 %926
        %930 = vrot.lane.b32.xlu0 %v921, 64
        %v931 = vpop.permute.xlu0 %930
        %v933 = vsel %vm250, %v922, 0
        %v935 = vsel %vm254, %v931, 0
        %937 = vmatprep.subr.mxu0 0.0
        %938 = vmatpush1.msra.mxu0 %v935
        %939 = vmatprep.subr.mxu0 0.0
        %940 = vmatpush1.msra.mxu0 0.0
        %941 = vmatprep.subr.mxu0 0.0
        %942 = vmatpush1.msra.mxu0 0.0
        %943 = vmatprep.subr.mxu0 0.0
        %944 = vmatpush1.msra.mxu0 0.0
        %945 = vmatprep.subr.mxu0 0.0
        %946 = vmatpush1.msra.mxu0 0.0
        %947 = vmatprep.subr.mxu0 0.0
        %948 = vmatpush1.msra.mxu0 0.0
        %949 = vmatprep.subr.mxu0 0.0
        %950 = vmatpush1.msra.mxu0 0.0
        %951 = vmatprep.subr.mxu0 0.0
        %952 = vmatpush1.msra.mxu0 0.0
        %953 = vmatprep.subr.mxu0 0.0
        %954 = vmatpush1.msra.mxu0 0.0
        %955 = vmatprep.subr.mxu0 0.0
        %956 = vmatpush1.msra.mxu0 0.0
        %957 = vmatprep.subr.mxu0 0.0
        %958 = vmatpush1.msra.mxu0 0.0
        %959 = vmatprep.subr.mxu0 0.0
        %960 = vmatpush1.msra.mxu0 0.0
        %961 = vmatprep.subr.mxu0 0.0
        %962 = vmatpush1.msra.mxu0 0.0
        %963 = vmatprep.subr.mxu0 0.0
        %964 = vmatpush1.msra.mxu0 0.0
        %965 = vmatprep.subr.mxu0 0.0
        %966 = vmatpush1.msra.mxu0 0.0
        %967 = vmatprep.subr.mxu0 0.0
        %968 = vmatpush1.msra.mxu0 0.0
        %969 = vmatprep.subr.mxu0 0.0
        %970 = vmatpush1.msra.mxu0 0.0
        %971 = vmatprep.subr.mxu0 0.0
        %972 = vmatpush1.msra.mxu0 0.0
        %973 = vmatprep.subr.mxu0 0.0
        %974 = vmatpush1.msra.mxu0 0.0
        %975 = vmatprep.subr.mxu0 0.0
        %976 = vmatpush1.msra.mxu0 0.0
        %977 = vmatprep.subr.mxu0 0.0
        %978 = vmatpush1.msra.mxu0 0.0
        %979 = vmatprep.subr.mxu0 0.0
        %980 = vmatpush1.msra.mxu0 0.0
        %981 = vmatprep.subr.mxu0 0.0
        %982 = vmatpush1.msra.mxu0 0.0
        %983 = vmatprep.subr.mxu0 0.0
        %984 = vmatpush1.msra.mxu0 0.0
        %985 = vmatprep.subr.mxu0 0.0
        %986 = vmatpush1.msra.mxu0 0.0
        %987 = vmatprep.subr.mxu0 0.0
        %988 = vmatpush1.msra.mxu0 0.0
        %989 = vmatprep.subr.mxu0 0.0
        %990 = vmatpush1.msra.mxu0 0.0
        %991 = vmatprep.subr.mxu0 0.0
        %992 = vmatpush1.msra.mxu0 0.0
        %993 = vmatprep.subr.mxu0 0.0
        %994 = vmatpush1.msra.mxu0 0.0
        %995 = vmatprep.subr.mxu0 0.0
        %996 = vmatpush1.msra.mxu0 0.0
        %997 = vmatprep.subr.mxu0 0.0
        %998 = vmatpush1.msra.mxu0 0.0
        %999 = vmatprep.subr.mxu0 0.0
        %1000 = vmatpush1.msra.mxu0 0.0
        %1001 = vmatprep.mubr.f32.mxu0 0.0
        %1002 = vmatmul.mubr.f32.gmra.mrb[0].mxu0 %v933
        %v1003 = vpop.f32.mrb[0].mxu0
        %v1004 = vadd.f32 %v927, %v1003
        %v1005 = vpop.f32.mrb[0].mxu0
        %1006 = vdwg.mxu0
        %v1007 = vld [vmem:[#allocation2] sm:$0xff]
        %v1008 = vld [vmem:[#allocation2 + $0x8] sm:$0xff]
        %v1010 = vsel %vm330, %v1004, 0
        %1012 = vmatprep.subr.mxu0 0.0
        %1013 = vmatpush1.msra.mxu0 %v1007
        %1014 = vmatprep.subr.mxu0 0.0
        %1015 = vmatpush1.msra.mxu0 %v1008
        %1016 = vmatprep.subr.mxu0 0.0
        %1017 = vmatpush1.msra.mxu0 0.0
        %1018 = vmatprep.subr.mxu0 0.0
        %1019 = vmatpush1.msra.mxu0 0.0
        %1020 = vmatprep.subr.mxu0 0.0
        %1021 = vmatpush1.msra.mxu0 0.0
        %1022 = vmatprep.subr.mxu0 0.0
        %1023 = vmatpush1.msra.mxu0 0.0
        %1024 = vmatprep.subr.mxu0 0.0
        %1025 = vmatpush1.msra.mxu0 0.0
        %1026 = vmatprep.subr.mxu0 0.0
        %1027 = vmatpush1.msra.mxu0 0.0
        %1028 = vmatprep.subr.mxu0 0.0
        %1029 = vmatpush1.msra.mxu0 0.0
        %1030 = vmatprep.subr.mxu0 0.0
        %1031 = vmatpush1.msra.mxu0 0.0
        %1032 = vmatprep.subr.mxu0 0.0
        %1033 = vmatpush1.msra.mxu0 0.0
        %1034 = vmatprep.subr.mxu0 0.0
        %1035 = vmatpush1.msra.mxu0 0.0
        %1036 = vmatprep.subr.mxu0 0.0
        %1037 = vmatpush1.msra.mxu0 0.0
        %1038 = vmatprep.subr.mxu0 0.0
        %1039 = vmatpush1.msra.mxu0 0.0
        %1040 = vmatprep.subr.mxu0 0.0
        %1041 = vmatpush1.msra.mxu0 0.0
        %1042 = vmatprep.subr.mxu0 0.0
        %1043 = vmatpush1.msra.mxu0 0.0
        %1044 = vmatprep.subr.mxu0 0.0
        %1045 = vmatpush1.msra.mxu0 0.0
        %1046 = vmatprep.subr.mxu0 0.0
        %1047 = vmatpush1.msra.mxu0 0.0
        %1048 = vmatprep.subr.mxu0 0.0
        %1049 = vmatpush1.msra.mxu0 0.0
        %1050 = vmatprep.subr.mxu0 0.0
        %1051 = vmatpush1.msra.mxu0 0.0
        %1052 = vmatprep.subr.mxu0 0.0
        %1053 = vmatpush1.msra.mxu0 0.0
        %1054 = vmatprep.subr.mxu0 0.0
        %1055 = vmatpush1.msra.mxu0 0.0
        %1056 = vmatprep.subr.mxu0 0.0
        %1057 = vmatpush1.msra.mxu0 0.0
        %1058 = vmatprep.subr.mxu0 0.0
        %1059 = vmatpush1.msra.mxu0 0.0
        %1060 = vmatprep.subr.mxu0 0.0
        %1061 = vmatpush1.msra.mxu0 0.0
        %1062 = vmatprep.subr.mxu0 0.0
        %1063 = vmatpush1.msra.mxu0 0.0
        %1064 = vmatprep.subr.mxu0 0.0
        %1065 = vmatpush1.msra.mxu0 0.0
        %1066 = vmatprep.subr.mxu0 0.0
        %1067 = vmatpush1.msra.mxu0 0.0
        %1068 = vmatprep.subr.mxu0 0.0
        %1069 = vmatpush1.msra.mxu0 0.0
        %1070 = vmatprep.subr.mxu0 0.0
        %1071 = vmatpush1.msra.mxu0 0.0
        %1072 = vmatprep.subr.mxu0 0.0
        %1073 = vmatpush1.msra.mxu0 0.0
        %1074 = vmatprep.subr.mxu0 0.0
        %1075 = vmatpush1.msra.mxu0 0.0
        %1076 = vmatprep.mubr.f32.mxu0 0.0
        %1077 = vmatmul.mubr.f32.gmra.mrb[0].mxu0 %v1010
        %v1078 = vpop.f32.mrb[0].mxu0
        %v1079 = vadd.f32 0.0, %v1078
        %v1080 = vpop.f32.mrb[0].mxu0
        %1081 = vdwg.mxu0
        %1082 = vst.msk [vmem:[%s230 + $0x10] sm:$0xff] %vm404, %v1079
        %1084 = vrot.lane.b32.xlu0 %v1079, 32
        %v1085 = vpop.permute.xlu0 %1084
        %1087 = vst.msk [vmem:[%s230 + $0x10] sm:$0xff] %vm410, %v1085
        %v1088 = vld [vmem:[%s239] sm:$0xf]
        %v1089 = vld [vmem:[%s1] sm:$0xff]
        %v1090 = vld [vmem:[%s3] sm:$0xff]
        %1092 = vset.pattern.permute.xlu0 0
        %1093 = vperm.xlu0 %1092, %v1090
        %v1094 = vpop.permute.xlu0 %1093
        %1097 = vrot.lane.b32.xlu0 %v1088, 48
        %v1098 = vpop.permute.xlu0 %1097
        %v1100 = vsel %vm250, %v1089, 0
        %v1102 = vsel %vm254, %v1098, 0
        %1104 = vmatprep.subr.mxu0 0.0
        %1105 = vmatpush1.msra.mxu0 %v1102
        %1106 = vmatprep.subr.mxu0 0.0
        %1107 = vmatpush1.msra.mxu0 0.0
        %1108 = vmatprep.subr.mxu0 0.0
        %1109 = vmatpush1.msra.mxu0 0.0
        %1110 = vmatprep.subr.mxu0 0.0
        %1111 = vmatpush1.msra.mxu0 0.0
        %1112 = vmatprep.subr.mxu0 0.0
        %1113 = vmatpush1.msra.mxu0 0.0
        %1114 = vmatprep.subr.mxu0 0.0
        %1115 = vmatpush1.msra.mxu0 0.0
        %1116 = vmatprep.subr.mxu0 0.0
        %1117 = vmatpush1.msra.mxu0 0.0
        %1118 = vmatprep.subr.mxu0 0.0
        %1119 = vmatpush1.msra.mxu0 0.0
        %1120 = vmatprep.subr.mxu0 0.0
        %1121 = vmatpush1.msra.mxu0 0.0
        %1122 = vmatprep.subr.mxu0 0.0
        %1123 = vmatpush1.msra.mxu0 0.0
        %1124 = vmatprep.subr.mxu0 0.0
        %1125 = vmatpush1.msra.mxu0 0.0
        %1126 = vmatprep.subr.mxu0 0.0
        %1127 = vmatpush1.msra.mxu0 0.0
        %1128 = vmatprep.subr.mxu0 0.0
        %1129 = vmatpush1.msra.mxu0 0.0
        %1130 = vmatprep.subr.mxu0 0.0
        %1131 = vmatpush1.msra.mxu0 0.0
        %1132 = vmatprep.subr.mxu0 0.0
        %1133 = vmatpush1.msra.mxu0 0.0
        %1134 = vmatprep.subr.mxu0 0.0
        %1135 = vmatpush1.msra.mxu0 0.0
        %1136 = vmatprep.subr.mxu0 0.0
        %1137 = vmatpush1.msra.mxu0 0.0
        %1138 = vmatprep.subr.mxu0 0.0
        %1139 = vmatpush1.msra.mxu0 0.0
        %1140 = vmatprep.subr.mxu0 0.0
        %1141 = vmatpush1.msra.mxu0 0.0
        %1142 = vmatprep.subr.mxu0 0.0
        %1143 = vmatpush1.msra.mxu0 0.0
        %1144 = vmatprep.subr.mxu0 0.0
        %1145 = vmatpush1.msra.mxu0 0.0
        %1146 = vmatprep.subr.mxu0 0.0
        %1147 = vmatpush1.msra.mxu0 0.0
        %1148 = vmatprep.subr.mxu0 0.0
        %1149 = vmatpush1.msra.mxu0 0.0
        %1150 = vmatprep.subr.mxu0 0.0
        %1151 = vmatpush1.msra.mxu0 0.0
        %1152 = vmatprep.subr.mxu0 0.0
        %1153 = vmatpush1.msra.mxu0 0.0
        %1154 = vmatprep.subr.mxu0 0.0
        %1155 = vmatpush1.msra.mxu0 0.0
        %1156 = vmatprep.subr.mxu0 0.0
        %1157 = vmatpush1.msra.mxu0 0.0
        %1158 = vmatprep.subr.mxu0 0.0
        %1159 = vmatpush1.msra.mxu0 0.0
        %1160 = vmatprep.subr.mxu0 0.0
        %1161 = vmatpush1.msra.mxu0 0.0
        %1162 = vmatprep.subr.mxu0 0.0
        %1163 = vmatpush1.msra.mxu0 0.0
        %1164 = vmatprep.subr.mxu0 0.0
        %1165 = vmatpush1.msra.mxu0 0.0
        %1166 = vmatprep.subr.mxu0 0.0
        %1167 = vmatpush1.msra.mxu0 0.0
        %1168 = vmatprep.mubr.f32.mxu0 0.0
        %1169 = vmatmul.mubr.f32.gmra.mrb[0].mxu0 %v1100
        %v1170 = vpop.f32.mrb[0].mxu0
        %v1171 = vadd.f32 %v1094, %v1170
        %v1172 = vpop.f32.mrb[0].mxu0
        %1173 = vdwg.mxu0
        %v1174 = vld [vmem:[#allocation2] sm:$0xff]
        %v1175 = vld [vmem:[#allocation2 + $0x8] sm:$0xff]
        %v1177 = vsel %vm330, %v1171, 0
        %1179 = vmatprep.subr.mxu0 0.0
        %1180 = vmatpush1.msra.mxu0 %v1174
        %1181 = vmatprep.subr.mxu0 0.0
        %1182 = vmatpush1.msra.mxu0 %v1175
        %1183 = vmatprep.subr.mxu0 0.0
        %1184 = vmatpush1.msra.mxu0 0.0
        %1185 = vmatprep.subr.mxu0 0.0
        %1186 = vmatpush1.msra.mxu0 0.0
        %1187 = vmatprep.subr.mxu0 0.0
        %1188 = vmatpush1.msra.mxu0 0.0
        %1189 = vmatprep.subr.mxu0 0.0
        %1190 = vmatpush1.msra.mxu0 0.0
        %1191 = vmatprep.subr.mxu0 0.0
        %1192 = vmatpush1.msra.mxu0 0.0
        %1193 = vmatprep.subr.mxu0 0.0
        %1194 = vmatpush1.msra.mxu0 0.0
        %1195 = vmatprep.subr.mxu0 0.0
        %1196 = vmatpush1.msra.mxu0 0.0
        %1197 = vmatprep.subr.mxu0 0.0
        %1198 = vmatpush1.msra.mxu0 0.0
        %1199 = vmatprep.subr.mxu0 0.0
        %1200 = vmatpush1.msra.mxu0 0.0
        %1201 = vmatprep.subr.mxu0 0.0
        %1202 = vmatpush1.msra.mxu0 0.0
        %1203 = vmatprep.subr.mxu0 0.0
        %1204 = vmatpush1.msra.mxu0 0.0
        %1205 = vmatprep.subr.mxu0 0.0
        %1206 = vmatpush1.msra.mxu0 0.0
        %1207 = vmatprep.subr.mxu0 0.0
        %1208 = vmatpush1.msra.mxu0 0.0
        %1209 = vmatprep.subr.mxu0 0.0
        %1210 = vmatpush1.msra.mxu0 0.0
        %1211 = vmatprep.subr.mxu0 0.0
        %1212 = vmatpush1.msra.mxu0 0.0
        %1213 = vmatprep.subr.mxu0 0.0
        %1214 = vmatpush1.msra.mxu0 0.0
        %1215 = vmatprep.subr.mxu0 0.0
        %1216 = vmatpush1.msra.mxu0 0.0
        %1217 = vmatprep.subr.mxu0 0.0
        %1218 = vmatpush1.msra.mxu0 0.0
        %1219 = vmatprep.subr.mxu0 0.0
        %1220 = vmatpush1.msra.mxu0 0.0
        %1221 = vmatprep.subr.mxu0 0.0
        %1222 = vmatpush1.msra.mxu0 0.0
        %1223 = vmatprep.subr.mxu0 0.0
        %1224 = vmatpush1.msra.mxu0 0.0
        %1225 = vmatprep.subr.mxu0 0.0
        %1226 = vmatpush1.msra.mxu0 0.0
        %1227 = vmatprep.subr.mxu0 0.0
        %1228 = vmatpush1.msra.mxu0 0.0
        %1229 = vmatprep.subr.mxu0 0.0
        %1230 = vmatpush1.msra.mxu0 0.0
        %1231 = vmatprep.subr.mxu0 0.0
        %1232 = vmatpush1.msra.mxu0 0.0
        %1233 = vmatprep.subr.mxu0 0.0
        %1234 = vmatpush1.msra.mxu0 0.0
        %1235 = vmatprep.subr.mxu0 0.0
        %1236 = vmatpush1.msra.mxu0 0.0
        %1237 = vmatprep.subr.mxu0 0.0
        %1238 = vmatpush1.msra.mxu0 0.0
        %1239 = vmatprep.subr.mxu0 0.0
        %1240 = vmatpush1.msra.mxu0 0.0
        %1241 = vmatprep.subr.mxu0 0.0
        %1242 = vmatpush1.msra.mxu0 0.0
        %1243 = vmatprep.mubr.f32.mxu0 0.0
        %1244 = vmatmul.mubr.f32.gmra.mrb[0].mxu0 %v1177
        %v1245 = vpop.f32.mrb[0].mxu0
        %v1246 = vadd.f32 0.0, %v1245
        %v1247 = vpop.f32.mrb[0].mxu0
        %1248 = vdwg.mxu0
        %1250 = vrot.lane.b32.xlu0 %v1246, 64
        %v1251 = vpop.permute.xlu0 %1250
        %1253 = vst.msk [vmem:[%s230 + $0x10] sm:$0xff] %vm577, %v1251
        %1254 = vrot.lane.b32.xlu0 %v1246, 96
        %v1255 = vpop.permute.xlu0 %1254
        %1257 = vst.msk [vmem:[%s230 + $0x10] sm:$0xff] %vm582, %v1255
        %v1258 = vld [vmem:[%s239] sm:$0xf]
        %v1259 = vld [vmem:[%s1] sm:$0xff]
        %v1260 = vld [vmem:[%s3] sm:$0xff]
        %1262 = vset.pattern.permute.xlu0 0
        %1263 = vperm.xlu0 %1262, %v1260
        %v1264 = vpop.permute.xlu0 %1263
        %1267 = vrot.lane.b32.xlu0 %v1258, 32
        %v1268 = vpop.permute.xlu0 %1267
        %v1270 = vsel %vm250, %v1259, 0
        %v1272 = vsel %vm254, %v1268, 0
        %1274 = vmatprep.subr.mxu0 0.0
        %1275 = vmatpush1.msra.mxu0 %v1272
        %1276 = vmatprep.subr.mxu0 0.0
        %1277 = vmatpush1.msra.mxu0 0.0
        %1278 = vmatprep.subr.mxu0 0.0
        %1279 = vmatpush1.msra.mxu0 0.0
        %1280 = vmatprep.subr.mxu0 0.0
        %1281 = vmatpush1.msra.mxu0 0.0
        %1282 = vmatprep.subr.mxu0 0.0
        %1283 = vmatpush1.msra.mxu0 0.0
        %1284 = vmatprep.subr.mxu0 0.0
        %1285 = vmatpush1.msra.mxu0 0.0
        %1286 = vmatprep.subr.mxu0 0.0
        %1287 = vmatpush1.msra.mxu0 0.0
        %1288 = vmatprep.subr.mxu0 0.0
        %1289 = vmatpush1.msra.mxu0 0.0
        %1290 = vmatprep.subr.mxu0 0.0
        %1291 = vmatpush1.msra.mxu0 0.0
        %1292 = vmatprep.subr.mxu0 0.0
        %1293 = vmatpush1.msra.mxu0 0.0
        %1294 = vmatprep.subr.mxu0 0.0
        %1295 = vmatpush1.msra.mxu0 0.0
        %1296 = vmatprep.subr.mxu0 0.0
        %1297 = vmatpush1.msra.mxu0 0.0
        %1298 = vmatprep.subr.mxu0 0.0
        %1299 = vmatpush1.msra.mxu0 0.0
        %1300 = vmatprep.subr.mxu0 0.0
        %1301 = vmatpush1.msra.mxu0 0.0
        %1302 = vmatprep.subr.mxu0 0.0
        %1303 = vmatpush1.msra.mxu0 0.0
        %1304 = vmatprep.subr.mxu0 0.0
        %1305 = vmatpush1.msra.mxu0 0.0
        %1306 = vmatprep.subr.mxu0 0.0
        %1307 = vmatpush1.msra.mxu0 0.0
        %1308 = vmatprep.subr.mxu0 0.0
        %1309 = vmatpush1.msra.mxu0 0.0
        %1310 = vmatprep.subr.mxu0 0.0
        %1311 = vmatpush1.msra.mxu0 0.0
        %1312 = vmatprep.subr.mxu0 0.0
        %1313 = vmatpush1.msra.mxu0 0.0
        %1314 = vmatprep.subr.mxu0 0.0
        %1315 = vmatpush1.msra.mxu0 0.0
        %1316 = vmatprep.subr.mxu0 0.0
        %1317 = vmatpush1.msra.mxu0 0.0
        %1318 = vmatprep.subr.mxu0 0.0
        %1319 = vmatpush1.msra.mxu0 0.0
        %1320 = vmatprep.subr.mxu0 0.0
        %1321 = vmatpush1.msra.mxu0 0.0
        %1322 = vmatprep.subr.mxu0 0.0
        %1323 = vmatpush1.msra.mxu0 0.0
        %1324 = vmatprep.subr.mxu0 0.0
        %1325 = vmatpush1.msra.mxu0 0.0
        %1326 = vmatprep.subr.mxu0 0.0
        %1327 = vmatpush1.msra.mxu0 0.0
        %1328 = vmatprep.subr.mxu0 0.0
        %1329 = vmatpush1.msra.mxu0 0.0
        %1330 = vmatprep.subr.mxu0 0.0
        %1331 = vmatpush1.msra.mxu0 0.0
        %1332 = vmatprep.subr.mxu0 0.0
        %1333 = vmatpush1.msra.mxu0 0.0
        %1334 = vmatprep.subr.mxu0 0.0
        %1335 = vmatpush1.msra.mxu0 0.0
        %1336 = vmatprep.subr.mxu0 0.0
        %1337 = vmatpush1.msra.mxu0 0.0
        %1338 = vmatprep.mubr.f32.mxu0 0.0
        %1339 = vmatmul.mubr.f32.gmra.mrb[0].mxu0 %v1270
        %v1340 = vpop.f32.mrb[0].mxu0
        %v1341 = vadd.f32 %v1264, %v1340
        %v1342 = vpop.f32.mrb[0].mxu0
        %1343 = vdwg.mxu0
        %v1344 = vld [vmem:[#allocation2] sm:$0xff]
        %v1345 = vld [vmem:[#allocation2 + $0x8] sm:$0xff]
        %v1347 = vsel %vm330, %v1341, 0
        %1349 = vmatprep.subr.mxu0 0.0
        %1350 = vmatpush1.msra.mxu0 %v1344
        %1351 = vmatprep.subr.mxu0 0.0
        %1352 = vmatpush1.msra.mxu0 %v1345
        %1353 = vmatprep.subr.mxu0 0.0
        %1354 = vmatpush1.msra.mxu0 0.0
        %1355 = vmatprep.subr.mxu0 0.0
        %1356 = vmatpush1.msra.mxu0 0.0
        %1357 = vmatprep.subr.mxu0 0.0
        %1358 = vmatpush1.msra.mxu0 0.0
        %1359 = vmatprep.subr.mxu0 0.0
        %1360 = vmatpush1.msra.mxu0 0.0
        %1361 = vmatprep.subr.mxu0 0.0
        %1362 = vmatpush1.msra.mxu0 0.0
        %1363 = vmatprep.subr.mxu0 0.0
        %1364 = vmatpush1.msra.mxu0 0.0
        %1365 = vmatprep.subr.mxu0 0.0
        %1366 = vmatpush1.msra.mxu0 0.0
        %1367 = vmatprep.subr.mxu0 0.0
        %1368 = vmatpush1.msra.mxu0 0.0
        %1369 = vmatprep.subr.mxu0 0.0
        %1370 = vmatpush1.msra.mxu0 0.0
        %1371 = vmatprep.subr.mxu0 0.0
        %1372 = vmatpush1.msra.mxu0 0.0
        %1373 = vmatprep.subr.mxu0 0.0
        %1374 = vmatpush1.msra.mxu0 0.0
        %1375 = vmatprep.subr.mxu0 0.0
        %1376 = vmatpush1.msra.mxu0 0.0
        %1377 = vmatprep.subr.mxu0 0.0
        %1378 = vmatpush1.msra.mxu0 0.0
        %1379 = vmatprep.subr.mxu0 0.0
        %1380 = vmatpush1.msra.mxu0 0.0
        %1381 = vmatprep.subr.mxu0 0.0
        %1382 = vmatpush1.msra.mxu0 0.0
        %1383 = vmatprep.subr.mxu0 0.0
        %1384 = vmatpush1.msra.mxu0 0.0
        %1385 = vmatprep.subr.mxu0 0.0
        %1386 = vmatpush1.msra.mxu0 0.0
        %1387 = vmatprep.subr.mxu0 0.0
        %1388 = vmatpush1.msra.mxu0 0.0
        %1389 = vmatprep.subr.mxu0 0.0
        %1390 = vmatpush1.msra.mxu0 0.0
        %1391 = vmatprep.subr.mxu0 0.0
        %1392 = vmatpush1.msra.mxu0 0.0
        %1393 = vmatprep.subr.mxu0 0.0
        %1394 = vmatpush1.msra.mxu0 0.0
        %1395 = vmatprep.subr.mxu0 0.0
        %1396 = vmatpush1.msra.mxu0 0.0
        %1397 = vmatprep.subr.mxu0 0.0
        %1398 = vmatpush1.msra.mxu0 0.0
        %1399 = vmatprep.subr.mxu0 0.0
        %1400 = vmatpush1.msra.mxu0 0.0
        %1401 = vmatprep.subr.mxu0 0.0
        %1402 = vmatpush1.msra.mxu0 0.0
        %1403 = vmatprep.subr.mxu0 0.0
        %1404 = vmatpush1.msra.mxu0 0.0
        %1405 = vmatprep.subr.mxu0 0.0
        %1406 = vmatpush1.msra.mxu0 0.0
        %1407 = vmatprep.subr.mxu0 0.0
        %1408 = vmatpush1.msra.mxu0 0.0
        %1409 = vmatprep.subr.mxu0 0.0
        %1410 = vmatpush1.msra.mxu0 0.0
        %1411 = vmatprep.subr.mxu0 0.0
        %1412 = vmatpush1.msra.mxu0 0.0
        %1413 = vmatprep.mubr.f32.mxu0 0.0
        %1414 = vmatmul.mubr.f32.gmra.mrb[0].mxu0 %v1347
        %v1415 = vpop.f32.mrb[0].mxu0
        %v1416 = vadd.f32 0.0, %v1415
        %v1417 = vpop.f32.mrb[0].mxu0
        %1418 = vdwg.mxu0
        %1419 = vst.msk [vmem:[%s230 + $0x18] sm:$0xff] %vm404, %v1416
        %1421 = vrot.lane.b32.xlu0 %v1416, 32
        %v1422 = vpop.permute.xlu0 %1421
        %1424 = vst.msk [vmem:[%s230 + $0x18] sm:$0xff] %vm410, %v1422
        %v1425 = vld [vmem:[%s239] sm:$0xf]
        %v1426 = vld [vmem:[%s1] sm:$0xff]
        %v1427 = vld [vmem:[%s3] sm:$0xff]
        %1429 = vset.pattern.permute.xlu0 0
        %1430 = vperm.xlu0 %1429, %v1427
        %v1431 = vpop.permute.xlu0 %1430
        %1434 = vrot.lane.b32.xlu0 %v1425, 16
        %v1435 = vpop.permute.xlu0 %1434
        %v1437 = vsel %vm250, %v1426, 0
        %v1439 = vsel %vm254, %v1435, 0
        %1441 = vmatprep.subr.mxu0 0.0
        %1442 = vmatpush1.msra.mxu0 %v1439
        %1443 = vmatprep.subr.mxu0 0.0
        %1444 = vmatpush1.msra.mxu0 0.0
        %1445 = vmatprep.subr.mxu0 0.0
        %1446 = vmatpush1.msra.mxu0 0.0
        %1447 = vmatprep.subr.mxu0 0.0
        %1448 = vmatpush1.msra.mxu0 0.0
        %1449 = vmatprep.subr.mxu0 0.0
        %1450 = vmatpush1.msra.mxu0 0.0
        %1451 = vmatprep.subr.mxu0 0.0
        %1452 = vmatpush1.msra.mxu0 0.0
        %1453 = vmatprep.subr.mxu0 0.0
        %1454 = vmatpush1.msra.mxu0 0.0
        %1455 = vmatprep.subr.mxu0 0.0
        %1456 = vmatpush1.msra.mxu0 0.0
        %1457 = vmatprep.subr.mxu0 0.0
        %1458 = vmatpush1.msra.mxu0 0.0
        %1459 = vmatprep.subr.mxu0 0.0
        %1460 = vmatpush1.msra.mxu0 0.0
        %1461 = vmatprep.subr.mxu0 0.0
        %1462 = vmatpush1.msra.mxu0 0.0
        %1463 = vmatprep.subr.mxu0 0.0
        %1464 = vmatpush1.msra.mxu0 0.0
        %1465 = vmatprep.subr.mxu0 0.0
        %1466 = vmatpush1.msra.mxu0 0.0
        %1467 = vmatprep.subr.mxu0 0.0
        %1468 = vmatpush1.msra.mxu0 0.0
        %1469 = vmatprep.subr.mxu0 0.0
        %1470 = vmatpush1.msra.mxu0 0.0
        %1471 = vmatprep.subr.mxu0 0.0
        %1472 = vmatpush1.msra.mxu0 0.0
        %1473 = vmatprep.subr.mxu0 0.0
        %1474 = vmatpush1.msra.mxu0 0.0
        %1475 = vmatprep.subr.mxu0 0.0
        %1476 = vmatpush1.msra.mxu0 0.0
        %1477 = vmatprep.subr.mxu0 0.0
        %1478 = vmatpush1.msra.mxu0 0.0
        %1479 = vmatprep.subr.mxu0 0.0
        %1480 = vmatpush1.msra.mxu0 0.0
        %1481 = vmatprep.subr.mxu0 0.0
        %1482 = vmatpush1.msra.mxu0 0.0
        %1483 = vmatprep.subr.mxu0 0.0
        %1484 = vmatpush1.msra.mxu0 0.0
        %1485 = vmatprep.subr.mxu0 0.0
        %1486 = vmatpush1.msra.mxu0 0.0
        %1487 = vmatprep.subr.mxu0 0.0
        %1488 = vmatpush1.msra.mxu0 0.0
        %1489 = vmatprep.subr.mxu0 0.0
        %1490 = vmatpush1.msra.mxu0 0.0
        %1491 = vmatprep.subr.mxu0 0.0
        %1492 = vmatpush1.msra.mxu0 0.0
        %1493 = vmatprep.subr.mxu0 0.0
        %1494 = vmatpush1.msra.mxu0 0.0
        %1495 = vmatprep.subr.mxu0 0.0
        %1496 = vmatpush1.msra.mxu0 0.0
        %1497 = vmatprep.subr.mxu0 0.0
        %1498 = vmatpush1.msra.mxu0 0.0
        %1499 = vmatprep.subr.mxu0 0.0
        %1500 = vmatpush1.msra.mxu0 0.0
        %1501 = vmatprep.subr.mxu0 0.0
        %1502 = vmatpush1.msra.mxu0 0.0
        %1503 = vmatprep.subr.mxu0 0.0
        %1504 = vmatpush1.msra.mxu0 0.0
        %1505 = vmatprep.mubr.f32.mxu0 0.0
        %1506 = vmatmul.mubr.f32.gmra.mrb[0].mxu0 %v1437
        %v1507 = vpop.f32.mrb[0].mxu0
        %v1508 = vadd.f32 %v1431, %v1507
        %v1509 = vpop.f32.mrb[0].mxu0
        %1510 = vdwg.mxu0
        %v1511 = vld [vmem:[#allocation2] sm:$0xff]
        %v1512 = vld [vmem:[#allocation2 + $0x8] sm:$0xff]
        %v1514 = vsel %vm330, %v1508, 0
        %1516 = vmatprep.subr.mxu0 0.0
        %1517 = vmatpush1.msra.mxu0 %v1511
        %1518 = vmatprep.subr.mxu0 0.0
        %1519 = vmatpush1.msra.mxu0 %v1512
        %1520 = vmatprep.subr.mxu0 0.0
        %1521 = vmatpush1.msra.mxu0 0.0
        %1522 = vmatprep.subr.mxu0 0.0
        %1523 = vmatpush1.msra.mxu0 0.0
        %1524 = vmatprep.subr.mxu0 0.0
        %1525 = vmatpush1.msra.mxu0 0.0
        %1526 = vmatprep.subr.mxu0 0.0
        %1527 = vmatpush1.msra.mxu0 0.0
        %1528 = vmatprep.subr.mxu0 0.0
        %1529 = vmatpush1.msra.mxu0 0.0
        %1530 = vmatprep.subr.mxu0 0.0
        %1531 = vmatpush1.msra.mxu0 0.0
        %1532 = vmatprep.subr.mxu0 0.0
        %1533 = vmatpush1.msra.mxu0 0.0
        %1534 = vmatprep.subr.mxu0 0.0
        %1535 = vmatpush1.msra.mxu0 0.0
        %1536 = vmatprep.subr.mxu0 0.0
        %1537 = vmatpush1.msra.mxu0 0.0
        %1538 = vmatprep.subr.mxu0 0.0
        %1539 = vmatpush1.msra.mxu0 0.0
        %1540 = vmatprep.subr.mxu0 0.0
        %1541 = vmatpush1.msra.mxu0 0.0
        %1542 = vmatprep.subr.mxu0 0.0
        %1543 = vmatpush1.msra.mxu0 0.0
        %1544 = vmatprep.subr.mxu0 0.0
        %1545 = vmatpush1.msra.mxu0 0.0
        %1546 = vmatprep.subr.mxu0 0.0
        %1547 = vmatpush1.msra.mxu0 0.0
        %1548 = vmatprep.subr.mxu0 0.0
        %1549 = vmatpush1.msra.mxu0 0.0
        %1550 = vmatprep.subr.mxu0 0.0
        %1551 = vmatpush1.msra.mxu0 0.0
        %1552 = vmatprep.subr.mxu0 0.0
        %1553 = vmatpush1.msra.mxu0 0.0
        %1554 = vmatprep.subr.mxu0 0.0
        %1555 = vmatpush1.msra.mxu0 0.0
        %1556 = vmatprep.subr.mxu0 0.0
        %1557 = vmatpush1.msra.mxu0 0.0
        %1558 = vmatprep.subr.mxu0 0.0
        %1559 = vmatpush1.msra.mxu0 0.0
        %1560 = vmatprep.subr.mxu0 0.0
        %1561 = vmatpush1.msra.mxu0 0.0
        %1562 = vmatprep.subr.mxu0 0.0
        %1563 = vmatpush1.msra.mxu0 0.0
        %1564 = vmatprep.subr.mxu0 0.0
        %1565 = vmatpush1.msra.mxu0 0.0
        %1566 = vmatprep.subr.mxu0 0.0
        %1567 = vmatpush1.msra.mxu0 0.0
        %1568 = vmatprep.subr.mxu0 0.0
        %1569 = vmatpush1.msra.mxu0 0.0
        %1570 = vmatprep.subr.mxu0 0.0
        %1571 = vmatpush1.msra.mxu0 0.0
        %1572 = vmatprep.subr.mxu0 0.0
        %1573 = vmatpush1.msra.mxu0 0.0
        %1574 = vmatprep.subr.mxu0 0.0
        %1575 = vmatpush1.msra.mxu0 0.0
        %1576 = vmatprep.subr.mxu0 0.0
        %1577 = vmatpush1.msra.mxu0 0.0
        %1578 = vmatprep.subr.mxu0 0.0
        %1579 = vmatpush1.msra.mxu0 0.0
        %1580 = vmatprep.mubr.f32.mxu0 0.0
        %1581 = vmatmul.mubr.f32.gmra.mrb[0].mxu0 %v1514
        %v1582 = vpop.f32.mrb[0].mxu0
        %v1583 = vadd.f32 0.0, %v1582
        %v1584 = vpop.f32.mrb[0].mxu0
        %1585 = vdwg.mxu0
        %1587 = vrot.lane.b32.xlu0 %v1583, 64
        %v1588 = vpop.permute.xlu0 %1587
        %1590 = vst.msk [vmem:[%s230 + $0x18] sm:$0xff] %vm577, %v1588
        %1591 = vrot.lane.b32.xlu0 %v1583, 96
        %v1592 = vpop.permute.xlu0 %1591
        %1594 = vst.msk [vmem:[%s230 + $0x18] sm:$0xff] %vm582, %v1592
        %v1595 = vld [vmem:[%s239 + $0x4] sm:$0xf]
        %v1596 = vld [vmem:[%s1] sm:$0xff]
        %v1597 = vld [vmem:[%s3] sm:$0xff]
        %1599 = vset.pattern.permute.xlu0 0
        %1600 = vperm.xlu0 %1599, %v1597
        %v1601 = vpop.permute.xlu0 %1600
        %v1604 = vsel %vm250, %v1596, 0
        %v1607 = vsel %vm254, %v1595, 0
        %1609 = vmatprep.subr.mxu0 0.0
        %1610 = vmatpush1.msra.mxu0 %v1607
        %1611 = vmatprep.subr.mxu0 0.0
        %1612 = vmatpush1.msra.mxu0 0.0
        %1613 = vmatprep.subr.mxu0 0.0
        %1614 = vmatpush1.msra.mxu0 0.0
        %1615 = vmatprep.subr.mxu0 0.0
        %1616 = vmatpush1.msra.mxu0 0.0
        %1617 = vmatprep.subr.mxu0 0.0
        %1618 = vmatpush1.msra.mxu0 0.0
        %1619 = vmatprep.subr.mxu0 0.0
        %1620 = vmatpush1.msra.mxu0 0.0
        %1621 = vmatprep.subr.mxu0 0.0
        %1622 = vmatpush1.msra.mxu0 0.0
        %1623 = vmatprep.subr.mxu0 0.0
        %1624 = vmatpush1.msra.mxu0 0.0
        %1625 = vmatprep.subr.mxu0 0.0
        %1626 = vmatpush1.msra.mxu0 0.0
        %1627 = vmatprep.subr.mxu0 0.0
        %1628 = vmatpush1.msra.mxu0 0.0
        %1629 = vmatprep.subr.mxu0 0.0
        %1630 = vmatpush1.msra.mxu0 0.0
        %1631 = vmatprep.subr.mxu0 0.0
        %1632 = vmatpush1.msra.mxu0 0.0
        %1633 = vmatprep.subr.mxu0 0.0
        %1634 = vmatpush1.msra.mxu0 0.0
        %1635 = vmatprep.subr.mxu0 0.0
        %1636 = vmatpush1.msra.mxu0 0.0
        %1637 = vmatprep.subr.mxu0 0.0
        %1638 = vmatpush1.msra.mxu0 0.0
        %1639 = vmatprep.subr.mxu0 0.0
        %1640 = vmatpush1.msra.mxu0 0.0
        %1641 = vmatprep.subr.mxu0 0.0
        %1642 = vmatpush1.msra.mxu0 0.0
        %1643 = vmatprep.subr.mxu0 0.0
        %1644 = vmatpush1.msra.mxu0 0.0
        %1645 = vmatprep.subr.mxu0 0.0
        %1646 = vmatpush1.msra.mxu0 0.0
        %1647 = vmatprep.subr.mxu0 0.0
        %1648 = vmatpush1.msra.mxu0 0.0
        %1649 = vmatprep.subr.mxu0 0.0
        %1650 = vmatpush1.msra.mxu0 0.0
        %1651 = vmatprep.subr.mxu0 0.0
        %1652 = vmatpush1.msra.mxu0 0.0
        %1653 = vmatprep.subr.mxu0 0.0
        %1654 = vmatpush1.msra.mxu0 0.0
        %1655 = vmatprep.subr.mxu0 0.0
        %1656 = vmatpush1.msra.mxu0 0.0
        %1657 = vmatprep.subr.mxu0 0.0
        %1658 = vmatpush1.msra.mxu0 0.0
        %1659 = vmatprep.subr.mxu0 0.0
        %1660 = vmatpush1.msra.mxu0 0.0
        %1661 = vmatprep.subr.mxu0 0.0
        %1662 = vmatpush1.msra.mxu0 0.0
        %1663 = vmatprep.subr.mxu0 0.0
        %1664 = vmatpush1.msra.mxu0 0.0
        %1665 = vmatprep.subr.mxu0 0.0
        %1666 = vmatpush1.msra.mxu0 0.0
        %1667 = vmatprep.subr.mxu0 0.0
        %1668 = vmatpush1.msra.mxu0 0.0
        %1669 = vmatprep.subr.mxu0 0.0
        %1670 = vmatpush1.msra.mxu0 0.0
        %1671 = vmatprep.subr.mxu0 0.0
        %1672 = vmatpush1.msra.mxu0 0.0
        %1673 = vmatprep.mubr.f32.mxu0 0.0
        %1674 = vmatmul.mubr.f32.gmra.mrb[0].mxu0 %v1604
        %v1675 = vpop.f32.mrb[0].mxu0
        %v1676 = vadd.f32 %v1601, %v1675
        %v1677 = vpop.f32.mrb[0].mxu0
        %1678 = vdwg.mxu0
        %v1679 = vld [vmem:[#allocation2] sm:$0xff]
        %v1680 = vld [vmem:[#allocation2 + $0x8] sm:$0xff]
        %v1682 = vsel %vm330, %v1676, 0
        %1684 = vmatprep.subr.mxu0 0.0
        %1685 = vmatpush1.msra.mxu0 %v1679
        %1686 = vmatprep.subr.mxu0 0.0
        %1687 = vmatpush1.msra.mxu0 %v1680
        %1688 = vmatprep.subr.mxu0 0.0
        %1689 = vmatpush1.msra.mxu0 0.0
        %1690 = vmatprep.subr.mxu0 0.0
        %1691 = vmatpush1.msra.mxu0 0.0
        %1692 = vmatprep.subr.mxu0 0.0
        %1693 = vmatpush1.msra.mxu0 0.0
        %1694 = vmatprep.subr.mxu0 0.0
        %1695 = vmatpush1.msra.mxu0 0.0
        %1696 = vmatprep.subr.mxu0 0.0
        %1697 = vmatpush1.msra.mxu0 0.0
        %1698 = vmatprep.subr.mxu0 0.0
        %1699 = vmatpush1.msra.mxu0 0.0
        %1700 = vmatprep.subr.mxu0 0.0
        %1701 = vmatpush1.msra.mxu0 0.0
        %1702 = vmatprep.subr.mxu0 0.0
        %1703 = vmatpush1.msra.mxu0 0.0
        %1704 = vmatprep.subr.mxu0 0.0
        %1705 = vmatpush1.msra.mxu0 0.0
        %1706 = vmatprep.subr.mxu0 0.0
        %1707 = vmatpush1.msra.mxu0 0.0
        %1708 = vmatprep.subr.mxu0 0.0
        %1709 = vmatpush1.msra.mxu0 0.0
        %1710 = vmatprep.subr.mxu0 0.0
        %1711 = vmatpush1.msra.mxu0 0.0
        %1712 = vmatprep.subr.mxu0 0.0
        %1713 = vmatpush1.msra.mxu0 0.0
        %1714 = vmatprep.subr.mxu0 0.0
        %1715 = vmatpush1.msra.mxu0 0.0
        %1716 = vmatprep.subr.mxu0 0.0
        %1717 = vmatpush1.msra.mxu0 0.0
        %1718 = vmatprep.subr.mxu0 0.0
        %1719 = vmatpush1.msra.mxu0 0.0
        %1720 = vmatprep.subr.mxu0 0.0
        %1721 = vmatpush1.msra.mxu0 0.0
        %1722 = vmatprep.subr.mxu0 0.0
        %1723 = vmatpush1.msra.mxu0 0.0
        %1724 = vmatprep.subr.mxu0 0.0
        %1725 = vmatpush1.msra.mxu0 0.0
        %1726 = vmatprep.subr.mxu0 0.0
        %1727 = vmatpush1.msra.mxu0 0.0
        %1728 = vmatprep.subr.mxu0 0.0
        %1729 = vmatpush1.msra.mxu0 0.0
        %1730 = vmatprep.subr.mxu0 0.0
        %1731 = vmatpush1.msra.mxu0 0.0
        %1732 = vmatprep.subr.mxu0 0.0
        %1733 = vmatpush1.msra.mxu0 0.0
        %1734 = vmatprep.subr.mxu0 0.0
        %1735 = vmatpush1.msra.mxu0 0.0
        %1736 = vmatprep.subr.mxu0 0.0
        %1737 = vmatpush1.msra.mxu0 0.0
        %1738 = vmatprep.subr.mxu0 0.0
        %1739 = vmatpush1.msra.mxu0 0.0
        %1740 = vmatprep.subr.mxu0 0.0
        %1741 = vmatpush1.msra.mxu0 0.0
        %1742 = vmatprep.subr.mxu0 0.0
        %1743 = vmatpush1.msra.mxu0 0.0
        %1744 = vmatprep.subr.mxu0 0.0
        %1745 = vmatpush1.msra.mxu0 0.0
        %1746 = vmatprep.subr.mxu0 0.0
        %1747 = vmatpush1.msra.mxu0 0.0
        %1748 = vmatprep.mubr.f32.mxu0 0.0
        %1749 = vmatmul.mubr.f32.gmra.mrb[0].mxu0 %v1682
        %v1750 = vpop.f32.mrb[0].mxu0
        %v1751 = vadd.f32 0.0, %v1750
        %v1752 = vpop.f32.mrb[0].mxu0
        %1753 = vdwg.mxu0
        %1754 = vst.msk [vmem:[%s230 + $0x20] sm:$0xff] %vm404, %v1751
        %1756 = vrot.lane.b32.xlu0 %v1751, 32
        %v1757 = vpop.permute.xlu0 %1756
        %1759 = vst.msk [vmem:[%s230 + $0x20] sm:$0xff] %vm410, %v1757
        %v1760 = vld [vmem:[%s239 + $0x4] sm:$0xf]
        %v1761 = vld [vmem:[%s1] sm:$0xff]
        %v1762 = vld [vmem:[%s3] sm:$0xff]
        %1764 = vset.pattern.permute.xlu0 0
        %1765 = vperm.xlu0 %1764, %v1762
        %v1766 = vpop.permute.xlu0 %1765
        %1769 = vrot.lane.b32.xlu0 %v1760, 112
        %v1770 = vpop.permute.xlu0 %1769
        %v1772 = vsel %vm250, %v1761, 0
        %v1774 = vsel %vm254, %v1770, 0
        %1776 = vmatprep.subr.mxu0 0.0
        %1777 = vmatpush1.msra.mxu0 %v1774
        %1778 = vmatprep.subr.mxu0 0.0
        %1779 = vmatpush1.msra.mxu0 0.0
        %1780 = vmatprep.subr.mxu0 0.0
        %1781 = vmatpush1.msra.mxu0 0.0
        %1782 = vmatprep.subr.mxu0 0.0
        %1783 = vmatpush1.msra.mxu0 0.0
        %1784 = vmatprep.subr.mxu0 0.0
        %1785 = vmatpush1.msra.mxu0 0.0
        %1786 = vmatprep.subr.mxu0 0.0
        %1787 = vmatpush1.msra.mxu0 0.0
        %1788 = vmatprep.subr.mxu0 0.0
        %1789 = vmatpush1.msra.mxu0 0.0
        %1790 = vmatprep.subr.mxu0 0.0
        %1791 = vmatpush1.msra.mxu0 0.0
        %1792 = vmatprep.subr.mxu0 0.0
        %1793 = vmatpush1.msra.mxu0 0.0
        %1794 = vmatprep.subr.mxu0 0.0
        %1795 = vmatpush1.msra.mxu0 0.0
        %1796 = vmatprep.subr.mxu0 0.0
        %1797 = vmatpush1.msra.mxu0 0.0
        %1798 = vmatprep.subr.mxu0 0.0
        %1799 = vmatpush1.msra.mxu0 0.0
        %1800 = vmatprep.subr.mxu0 0.0
        %1801 = vmatpush1.msra.mxu0 0.0
        %1802 = vmatprep.subr.mxu0 0.0
        %1803 = vmatpush1.msra.mxu0 0.0
        %1804 = vmatprep.subr.mxu0 0.0
        %1805 = vmatpush1.msra.mxu0 0.0
        %1806 = vmatprep.subr.mxu0 0.0
        %1807 = vmatpush1.msra.mxu0 0.0
        %1808 = vmatprep.subr.mxu0 0.0
        %1809 = vmatpush1.msra.mxu0 0.0
        %1810 = vmatprep.subr.mxu0 0.0
        %1811 = vmatpush1.msra.mxu0 0.0
        %1812 = vmatprep.subr.mxu0 0.0
        %1813 = vmatpush1.msra.mxu0 0.0
        %1814 = vmatprep.subr.mxu0 0.0
        %1815 = vmatpush1.msra.mxu0 0.0
        %1816 = vmatprep.subr.mxu0 0.0
        %1817 = vmatpush1.msra.mxu0 0.0
        %1818 = vmatprep.subr.mxu0 0.0
        %1819 = vmatpush1.msra.mxu0 0.0
        %1820 = vmatprep.subr.mxu0 0.0
        %1821 = vmatpush1.msra.mxu0 0.0
        %1822 = vmatprep.subr.mxu0 0.0
        %1823 = vmatpush1.msra.mxu0 0.0
        %1824 = vmatprep.subr.mxu0 0.0
        %1825 = vmatpush1.msra.mxu0 0.0
        %1826 = vmatprep.subr.mxu0 0.0
        %1827 = vmatpush1.msra.mxu0 0.0
        %1828 = vmatprep.subr.mxu0 0.0
        %1829 = vmatpush1.msra.mxu0 0.0
        %1830 = vmatprep.subr.mxu0 0.0
        %1831 = vmatpush1.msra.mxu0 0.0
        %1832 = vmatprep.subr.mxu0 0.0
        %1833 = vmatpush1.msra.mxu0 0.0
        %1834 = vmatprep.subr.mxu0 0.0
        %1835 = vmatpush1.msra.mxu0 0.0
        %1836 = vmatprep.subr.mxu0 0.0
        %1837 = vmatpush1.msra.mxu0 0.0
        %1838 = vmatprep.subr.mxu0 0.0
        %1839 = vmatpush1.msra.mxu0 0.0
        %1840 = vmatprep.mubr.f32.mxu0 0.0
        %1841 = vmatmul.mubr.f32.gmra.mrb[0].mxu0 %v1772
        %v1842 = vpop.f32.mrb[0].mxu0
        %v1843 = vadd.f32 %v1766, %v1842
        %v1844 = vpop.f32.mrb[0].mxu0
        %1845 = vdwg.mxu0
        %v1846 = vld [vmem:[#allocation2] sm:$0xff]
        %v1847 = vld [vmem:[#allocation2 + $0x8] sm:$0xff]
        %v1849 = vsel %vm330, %v1843, 0
        %1851 = vmatprep.subr.mxu0 0.0
        %1852 = vmatpush1.msra.mxu0 %v1846
        %1853 = vmatprep.subr.mxu0 0.0
        %1854 = vmatpush1.msra.mxu0 %v1847
        %1855 = vmatprep.subr.mxu0 0.0
        %1856 = vmatpush1.msra.mxu0 0.0
        %1857 = vmatprep.subr.mxu0 0.0
        %1858 = vmatpush1.msra.mxu0 0.0
        %1859 = vmatprep.subr.mxu0 0.0
        %1860 = vmatpush1.msra.mxu0 0.0
        %1861 = vmatprep.subr.mxu0 0.0
        %1862 = vmatpush1.msra.mxu0 0.0
        %1863 = vmatprep.subr.mxu0 0.0
        %1864 = vmatpush1.msra.mxu0 0.0
        %1865 = vmatprep.subr.mxu0 0.0
        %1866 = vmatpush1.msra.mxu0 0.0
        %1867 = vmatprep.subr.mxu0 0.0
        %1868 = vmatpush1.msra.mxu0 0.0
        %1869 = vmatprep.subr.mxu0 0.0
        %1870 = vmatpush1.msra.mxu0 0.0
        %1871 = vmatprep.subr.mxu0 0.0
        %1872 = vmatpush1.msra.mxu0 0.0
        %1873 = vmatprep.subr.mxu0 0.0
        %1874 = vmatpush1.msra.mxu0 0.0
        %1875 = vmatprep.subr.mxu0 0.0
        %1876 = vmatpush1.msra.mxu0 0.0
        %1877 = vmatprep.subr.mxu0 0.0
        %1878 = vmatpush1.msra.mxu0 0.0
        %1879 = vmatprep.subr.mxu0 0.0
        %1880 = vmatpush1.msra.mxu0 0.0
        %1881 = vmatprep.subr.mxu0 0.0
        %1882 = vmatpush1.msra.mxu0 0.0
        %1883 = vmatprep.subr.mxu0 0.0
        %1884 = vmatpush1.msra.mxu0 0.0
        %1885 = vmatprep.subr.mxu0 0.0
        %1886 = vmatpush1.msra.mxu0 0.0
        %1887 = vmatprep.subr.mxu0 0.0
        %1888 = vmatpush1.msra.mxu0 0.0
        %1889 = vmatprep.subr.mxu0 0.0
        %1890 = vmatpush1.msra.mxu0 0.0
        %1891 = vmatprep.subr.mxu0 0.0
        %1892 = vmatpush1.msra.mxu0 0.0
        %1893 = vmatprep.subr.mxu0 0.0
        %1894 = vmatpush1.msra.mxu0 0.0
        %1895 = vmatprep.subr.mxu0 0.0
        %1896 = vmatpush1.msra.mxu0 0.0
        %1897 = vmatprep.subr.mxu0 0.0
        %1898 = vmatpush1.msra.mxu0 0.0
        %1899 = vmatprep.subr.mxu0 0.0
        %1900 = vmatpush1.msra.mxu0 0.0
        %1901 = vmatprep.subr.mxu0 0.0
        %1902 = vmatpush1.msra.mxu0 0.0
        %1903 = vmatprep.subr.mxu0 0.0
        %1904 = vmatpush1.msra.mxu0 0.0
        %1905 = vmatprep.subr.mxu0 0.0
        %1906 = vmatpush1.msra.mxu0 0.0
        %1907 = vmatprep.subr.mxu0 0.0
        %1908 = vmatpush1.msra.mxu0 0.0
        %1909 = vmatprep.subr.mxu0 0.0
        %1910 = vmatpush1.msra.mxu0 0.0
        %1911 = vmatprep.subr.mxu0 0.0
        %1912 = vmatpush1.msra.mxu0 0.0
        %1913 = vmatprep.subr.mxu0 0.0
        %1914 = vmatpush1.msra.mxu0 0.0
        %1915 = vmatprep.mubr.f32.mxu0 0.0
        %1916 = vmatmul.mubr.f32.gmra.mrb[0].mxu0 %v1849
        %v1917 = vpop.f32.mrb[0].mxu0
        %v1918 = vadd.f32 0.0, %v1917
        %v1919 = vpop.f32.mrb[0].mxu0
        %1920 = vdwg.mxu0
        %1922 = vrot.lane.b32.xlu0 %v1918, 64
        %v1923 = vpop.permute.xlu0 %1922
        %1925 = vst.msk [vmem:[%s230 + $0x20] sm:$0xff] %vm577, %v1923
        %1926 = vrot.lane.b32.xlu0 %v1918, 96
        %v1927 = vpop.permute.xlu0 %1926
        %1929 = vst.msk [vmem:[%s230 + $0x20] sm:$0xff] %vm582, %v1927
        %v1930 = vld [vmem:[%s239 + $0x4] sm:$0xf]
        %v1931 = vld [vmem:[%s1] sm:$0xff]
        %v1932 = vld [vmem:[%s3] sm:$0xff]
        %1934 = vset.pattern.permute.xlu0 0
        %1935 = vperm.xlu0 %1934, %v1932
        %v1936 = vpop.permute.xlu0 %1935
        %1939 = vrot.lane.b32.xlu0 %v1930, 96
        %v1940 = vpop.permute.xlu0 %1939
        %v1942 = vsel %vm250, %v1931, 0
        %v1944 = vsel %vm254, %v1940, 0
        %1946 = vmatprep.subr.mxu0 0.0
        %1947 = vmatpush1.msra.mxu0 %v1944
        %1948 = vmatprep.subr.mxu0 0.0
        %1949 = vmatpush1.msra.mxu0 0.0
        %1950 = vmatprep.subr.mxu0 0.0
        %1951 = vmatpush1.msra.mxu0 0.0
        %1952 = vmatprep.subr.mxu0 0.0
        %1953 = vmatpush1.msra.mxu0 0.0
        %1954 = vmatprep.subr.mxu0 0.0
        %1955 = vmatpush1.msra.mxu0 0.0
        %1956 = vmatprep.subr.mxu0 0.0
        %1957 = vmatpush1.msra.mxu0 0.0
        %1958 = vmatprep.subr.mxu0 0.0
        %1959 = vmatpush1.msra.mxu0 0.0
        %1960 = vmatprep.subr.mxu0 0.0
        %1961 = vmatpush1.msra.mxu0 0.0
        %1962 = vmatprep.subr.mxu0 0.0
        %1963 = vmatpush1.msra.mxu0 0.0
        %1964 = vmatprep.subr.mxu0 0.0
        %1965 = vmatpush1.msra.mxu0 0.0
        %1966 = vmatprep.subr.mxu0 0.0
        %1967 = vmatpush1.msra.mxu0 0.0
        %1968 = vmatprep.subr.mxu0 0.0
        %1969 = vmatpush1.msra.mxu0 0.0
        %1970 = vmatprep.subr.mxu0 0.0
        %1971 = vmatpush1.msra.mxu0 0.0
        %1972 = vmatprep.subr.mxu0 0.0
        %1973 = vmatpush1.msra.mxu0 0.0
        %1974 = vmatprep.subr.mxu0 0.0
        %1975 = vmatpush1.msra.mxu0 0.0
        %1976 = vmatprep.subr.mxu0 0.0
        %1977 = vmatpush1.msra.mxu0 0.0
        %1978 = vmatprep.subr.mxu0 0.0
        %1979 = vmatpush1.msra.mxu0 0.0
        %1980 = vmatprep.subr.mxu0 0.0
        %1981 = vmatpush1.msra.mxu0 0.0
        %1982 = vmatprep.subr.mxu0 0.0
        %1983 = vmatpush1.msra.mxu0 0.0
        %1984 = vmatprep.subr.mxu0 0.0
        %1985 = vmatpush1.msra.mxu0 0.0
        %1986 = vmatprep.subr.mxu0 0.0
        %1987 = vmatpush1.msra.mxu0 0.0
        %1988 = vmatprep.subr.mxu0 0.0
        %1989 = vmatpush1.msra.mxu0 0.0
        %1990 = vmatprep.subr.mxu0 0.0
        %1991 = vmatpush1.msra.mxu0 0.0
        %1992 = vmatprep.subr.mxu0 0.0
        %1993 = vmatpush1.msra.mxu0 0.0
        %1994 = vmatprep.subr.mxu0 0.0
        %1995 = vmatpush1.msra.mxu0 0.0
        %1996 = vmatprep.subr.mxu0 0.0
        %1997 = vmatpush1.msra.mxu0 0.0
        %1998 = vmatprep.subr.mxu0 0.0
        %1999 = vmatpush1.msra.mxu0 0.0
        %2000 = vmatprep.subr.mxu0 0.0
        %2001 = vmatpush1.msra.mxu0 0.0
        %2002 = vmatprep.subr.mxu0 0.0
        %2003 = vmatpush1.msra.mxu0 0.0
        %2004 = vmatprep.subr.mxu0 0.0
        %2005 = vmatpush1.msra.mxu0 0.0
        %2006 = vmatprep.subr.mxu0 0.0
        %2007 = vmatpush1.msra.mxu0 0.0
        %2008 = vmatprep.subr.mxu0 0.0
        %2009 = vmatpush1.msra.mxu0 0.0
        %2010 = vmatprep.mubr.f32.mxu0 0.0
        %2011 = vmatmul.mubr.f32.gmra.mrb[0].mxu0 %v1942
        %v2012 = vpop.f32.mrb[0].mxu0
        %v2013 = vadd.f32 %v1936, %v2012
        %v2014 = vpop.f32.mrb[0].mxu0
        %2015 = vdwg.mxu0
        %v2016 = vld [vmem:[#allocation2] sm:$0xff]
        %v2017 = vld [vmem:[#allocation2 + $0x8] sm:$0xff]
        %v2019 = vsel %vm330, %v2013, 0
        %2021 = vmatprep.subr.mxu0 0.0
        %2022 = vmatpush1.msra.mxu0 %v2016
        %2023 = vmatprep.subr.mxu0 0.0
        %2024 = vmatpush1.msra.mxu0 %v2017
        %2025 = vmatprep.subr.mxu0 0.0
        %2026 = vmatpush1.msra.mxu0 0.0
        %2027 = vmatprep.subr.mxu0 0.0
        %2028 = vmatpush1.msra.mxu0 0.0
        %2029 = vmatprep.subr.mxu0 0.0
        %2030 = vmatpush1.msra.mxu0 0.0
        %2031 = vmatprep.subr.mxu0 0.0
        %2032 = vmatpush1.msra.mxu0 0.0
        %2033 = vmatprep.subr.mxu0 0.0
        %2034 = vmatpush1.msra.mxu0 0.0
        %2035 = vmatprep.subr.mxu0 0.0
        %2036 = vmatpush1.msra.mxu0 0.0
        %2037 = vmatprep.subr.mxu0 0.0
        %2038 = vmatpush1.msra.mxu0 0.0
        %2039 = vmatprep.subr.mxu0 0.0
        %2040 = vmatpush1.msra.mxu0 0.0
        %2041 = vmatprep.subr.mxu0 0.0
        %2042 = vmatpush1.msra.mxu0 0.0
        %2043 = vmatprep.subr.mxu0 0.0
        %2044 = vmatpush1.msra.mxu0 0.0
        %2045 = vmatprep.subr.mxu0 0.0
        %2046 = vmatpush1.msra.mxu0 0.0
        %2047 = vmatprep.subr.mxu0 0.0
        %2048 = vmatpush1.msra.mxu0 0.0
        %2049 = vmatprep.subr.mxu0 0.0
        %2050 = vmatpush1.msra.mxu0 0.0
        %2051 = vmatprep.subr.mxu0 0.0
        %2052 = vmatpush1.msra.mxu0 0.0
        %2053 = vmatprep.subr.mxu0 0.0
        %2054 = vmatpush1.msra.mxu0 0.0
        %2055 = vmatprep.subr.mxu0 0.0
        %2056 = vmatpush1.msra.mxu0 0.0
        %2057 = vmatprep.subr.mxu0 0.0
        %2058 = vmatpush1.msra.mxu0 0.0
        %2059 = vmatprep.subr.mxu0 0.0
        %2060 = vmatpush1.msra.mxu0 0.0
        %2061 = vmatprep.subr.mxu0 0.0
        %2062 = vmatpush1.msra.mxu0 0.0
        %2063 = vmatprep.subr.mxu0 0.0
        %2064 = vmatpush1.msra.mxu0 0.0
        %2065 = vmatprep.subr.mxu0 0.0
        %2066 = vmatpush1.msra.mxu0 0.0
        %2067 = vmatprep.subr.mxu0 0.0
        %2068 = vmatpush1.msra.mxu0 0.0
        %2069 = vmatprep.subr.mxu0 0.0
        %2070 = vmatpush1.msra.mxu0 0.0
        %2071 = vmatprep.subr.mxu0 0.0
        %2072 = vmatpush1.msra.mxu0 0.0
        %2073 = vmatprep.subr.mxu0 0.0
        %2074 = vmatpush1.msra.mxu0 0.0
        %2075 = vmatprep.subr.mxu0 0.0
        %2076 = vmatpush1.msra.mxu0 0.0
        %2077 = vmatprep.subr.mxu0 0.0
        %2078 = vmatpush1.msra.mxu0 0.0
        %2079 = vmatprep.subr.mxu0 0.0
        %2080 = vmatpush1.msra.mxu0 0.0
        %2081 = vmatprep.subr.mxu0 0.0
        %2082 = vmatpush1.msra.mxu0 0.0
        %2083 = vmatprep.subr.mxu0 0.0
        %2084 = vmatpush1.msra.mxu0 0.0
        %2085 = vmatprep.mubr.f32.mxu0 0.0
        %2086 = vmatmul.mubr.f32.gmra.mrb[0].mxu0 %v2019
        %v2087 = vpop.f32.mrb[0].mxu0
        %v2088 = vadd.f32 0.0, %v2087
        %v2089 = vpop.f32.mrb[0].mxu0
        %2090 = vdwg.mxu0
        %2091 = vst.msk [vmem:[%s230 + $0x28] sm:$0xff] %vm404, %v2088
        %2093 = vrot.lane.b32.xlu0 %v2088, 32
        %v2094 = vpop.permute.xlu0 %2093
        %2096 = vst.msk [vmem:[%s230 + $0x28] sm:$0xff] %vm410, %v2094
        %v2097 = vld [vmem:[%s239 + $0x4] sm:$0xf]
        %v2098 = vld [vmem:[%s1] sm:$0xff]
        %v2099 = vld [vmem:[%s3] sm:$0xff]
        %2101 = vset.pattern.permute.xlu0 0
        %2102 = vperm.xlu0 %2101, %v2099
        %v2103 = vpop.permute.xlu0 %2102
        %2106 = vrot.lane.b32.xlu0 %v2097, 80
        %v2107 = vpop.permute.xlu0 %2106
        %v2109 = vsel %vm250, %v2098, 0
        %v2111 = vsel %vm254, %v2107, 0
        %2113 = vmatprep.subr.mxu0 0.0
        %2114 = vmatpush1.msra.mxu0 %v2111
        %2115 = vmatprep.subr.mxu0 0.0
        %2116 = vmatpush1.msra.mxu0 0.0
        %2117 = vmatprep.subr.mxu0 0.0
        %2118 = vmatpush1.msra.mxu0 0.0
        %2119 = vmatprep.subr.mxu0 0.0
        %2120 = vmatpush1.msra.mxu0 0.0
        %2121 = vmatprep.subr.mxu0 0.0
        %2122 = vmatpush1.msra.mxu0 0.0
        %2123 = vmatprep.subr.mxu0 0.0
        %2124 = vmatpush1.msra.mxu0 0.0
        %2125 = vmatprep.subr.mxu0 0.0
        %2126 = vmatpush1.msra.mxu0 0.0
        %2127 = vmatprep.subr.mxu0 0.0
        %2128 = vmatpush1.msra.mxu0 0.0
        %2129 = vmatprep.subr.mxu0 0.0
        %2130 = vmatpush1.msra.mxu0 0.0
        %2131 = vmatprep.subr.mxu0 0.0
        %2132 = vmatpush1.msra.mxu0 0.0
        %2133 = vmatprep.subr.mxu0 0.0
        %2134 = vmatpush1.msra.mxu0 0.0
        %2135 = vmatprep.subr.mxu0 0.0
        %2136 = vmatpush1.msra.mxu0 0.0
        %2137 = vmatprep.subr.mxu0 0.0
        %2138 = vmatpush1.msra.mxu0 0.0
        %2139 = vmatprep.subr.mxu0 0.0
        %2140 = vmatpush1.msra.mxu0 0.0
        %2141 = vmatprep.subr.mxu0 0.0
        %2142 = vmatpush1.msra.mxu0 0.0
        %2143 = vmatprep.subr.mxu0 0.0
        %2144 = vmatpush1.msra.mxu0 0.0
        %2145 = vmatprep.subr.mxu0 0.0
        %2146 = vmatpush1.msra.mxu0 0.0
        %2147 = vmatprep.subr.mxu0 0.0
        %2148 = vmatpush1.msra.mxu0 0.0
        %2149 = vmatprep.subr.mxu0 0.0
        %2150 = vmatpush1.msra.mxu0 0.0
        %2151 = vmatprep.subr.mxu0 0.0
        %2152 = vmatpush1.msra.mxu0 0.0
        %2153 = vmatprep.subr.mxu0 0.0
        %2154 = vmatpush1.msra.mxu0 0.0
        %2155 = vmatprep.subr.mxu0 0.0
        %2156 = vmatpush1.msra.mxu0 0.0
        %2157 = vmatprep.subr.mxu0 0.0
        %2158 = vmatpush1.msra.mxu0 0.0
        %2159 = vmatprep.subr.mxu0 0.0
        %2160 = vmatpush1.msra.mxu0 0.0
        %2161 = vmatprep.subr.mxu0 0.0
        %2162 = vmatpush1.msra.mxu0 0.0
        %2163 = vmatprep.subr.mxu0 0.0
        %2164 = vmatpush1.msra.mxu0 0.0
        %2165 = vmatprep.subr.mxu0 0.0
        %2166 = vmatpush1.msra.mxu0 0.0
        %2167 = vmatprep.subr.mxu0 0.0
        %2168 = vmatpush1.msra.mxu0 0.0
        %2169 = vmatprep.subr.mxu0 0.0
        %2170 = vmatpush1.msra.mxu0 0.0
        %2171 = vmatprep.subr.mxu0 0.0
        %2172 = vmatpush1.msra.mxu0 0.0
        %2173 = vmatprep.subr.mxu0 0.0
        %2174 = vmatpush1.msra.mxu0 0.0
        %2175 = vmatprep.subr.mxu0 0.0
        %2176 = vmatpush1.msra.mxu0 0.0
        %2177 = vmatprep.mubr.f32.mxu0 0.0
        %2178 = vmatmul.mubr.f32.gmra.mrb[0].mxu0 %v2109
        %v2179 = vpop.f32.mrb[0].mxu0
        %v2180 = vadd.f32 %v2103, %v2179
        %v2181 = vpop.f32.mrb[0].mxu0
        %2182 = vdwg.mxu0
        %v2183 = vld [vmem:[#allocation2] sm:$0xff]
        %v2184 = vld [vmem:[#allocation2 + $0x8] sm:$0xff]
        %v2186 = vsel %vm330, %v2180, 0
        %2188 = vmatprep.subr.mxu0 0.0
        %2189 = vmatpush1.msra.mxu0 %v2183
        %2190 = vmatprep.subr.mxu0 0.0
        %2191 = vmatpush1.msra.mxu0 %v2184
        %2192 = vmatprep.subr.mxu0 0.0
        %2193 = vmatpush1.msra.mxu0 0.0
        %2194 = vmatprep.subr.mxu0 0.0
        %2195 = vmatpush1.msra.mxu0 0.0
        %2196 = vmatprep.subr.mxu0 0.0
        %2197 = vmatpush1.msra.mxu0 0.0
        %2198 = vmatprep.subr.mxu0 0.0
        %2199 = vmatpush1.msra.mxu0 0.0
        %2200 = vmatprep.subr.mxu0 0.0
        %2201 = vmatpush1.msra.mxu0 0.0
        %2202 = vmatprep.subr.mxu0 0.0
        %2203 = vmatpush1.msra.mxu0 0.0
        %2204 = vmatprep.subr.mxu0 0.0
        %2205 = vmatpush1.msra.mxu0 0.0
        %2206 = vmatprep.subr.mxu0 0.0
        %2207 = vmatpush1.msra.mxu0 0.0
        %2208 = vmatprep.subr.mxu0 0.0
        %2209 = vmatpush1.msra.mxu0 0.0
        %2210 = vmatprep.subr.mxu0 0.0
        %2211 = vmatpush1.msra.mxu0 0.0
        %2212 = vmatprep.subr.mxu0 0.0
        %2213 = vmatpush1.msra.mxu0 0.0
        %2214 = vmatprep.subr.mxu0 0.0
        %2215 = vmatpush1.msra.mxu0 0.0
        %2216 = vmatprep.subr.mxu0 0.0
        %2217 = vmatpush1.msra.mxu0 0.0
        %2218 = vmatprep.subr.mxu0 0.0
        %2219 = vmatpush1.msra.mxu0 0.0
        %2220 = vmatprep.subr.mxu0 0.0
        %2221 = vmatpush1.msra.mxu0 0.0
        %2222 = vmatprep.subr.mxu0 0.0
        %2223 = vmatpush1.msra.mxu0 0.0
        %2224 = vmatprep.subr.mxu0 0.0
        %2225 = vmatpush1.msra.mxu0 0.0
        %2226 = vmatprep.subr.mxu0 0.0
        %2227 = vmatpush1.msra.mxu0 0.0
        %2228 = vmatprep.subr.mxu0 0.0
        %2229 = vmatpush1.msra.mxu0 0.0
        %2230 = vmatprep.subr.mxu0 0.0
        %2231 = vmatpush1.msra.mxu0 0.0
        %2232 = vmatprep.subr.mxu0 0.0
        %2233 = vmatpush1.msra.mxu0 0.0
        %2234 = vmatprep.subr.mxu0 0.0
        %2235 = vmatpush1.msra.mxu0 0.0
        %2236 = vmatprep.subr.mxu0 0.0
        %2237 = vmatpush1.msra.mxu0 0.0
        %2238 = vmatprep.subr.mxu0 0.0
        %2239 = vmatpush1.msra.mxu0 0.0
        %2240 = vmatprep.subr.mxu0 0.0
        %2241 = vmatpush1.msra.mxu0 0.0
        %2242 = vmatprep.subr.mxu0 0.0
        %2243 = vmatpush1.msra.mxu0 0.0
        %2244 = vmatprep.subr.mxu0 0.0
        %2245 = vmatpush1.msra.mxu0 0.0
        %2246 = vmatprep.subr.mxu0 0.0
        %2247 = vmatpush1.msra.mxu0 0.0
        %2248 = vmatprep.subr.mxu0 0.0
        %2249 = vmatpush1.msra.mxu0 0.0
        %2250 = vmatprep.subr.mxu0 0.0
        %2251 = vmatpush1.msra.mxu0 0.0
        %2252 = vmatprep.mubr.f32.mxu0 0.0
        %2253 = vmatmul.mubr.f32.gmra.mrb[0].mxu0 %v2186
        %v2254 = vpop.f32.mrb[0].mxu0
        %v2255 = vadd.f32 0.0, %v2254
        %v2256 = vpop.f32.mrb[0].mxu0
        %2257 = vdwg.mxu0
        %2259 = vrot.lane.b32.xlu0 %v2255, 64
        %v2260 = vpop.permute.xlu0 %2259
        %2262 = vst.msk [vmem:[%s230 + $0x28] sm:$0xff] %vm577, %v2260
        %2263 = vrot.lane.b32.xlu0 %v2255, 96
        %v2264 = vpop.permute.xlu0 %2263
        %2266 = vst.msk [vmem:[%s230 + $0x28] sm:$0xff] %vm582, %v2264
        %v2267 = vld [vmem:[%s239 + $0x4] sm:$0xf]
        %v2268 = vld [vmem:[%s1] sm:$0xff]
        %v2269 = vld [vmem:[%s3] sm:$0xff]
        %2271 = vset.pattern.permute.xlu0 0
        %2272 = vperm.xlu0 %2271, %v2269
        %v2273 = vpop.permute.xlu0 %2272
        %2276 = vrot.lane.b32.xlu0 %v2267, 64
        %v2277 = vpop.permute.xlu0 %2276
        %v2279 = vsel %vm250, %v2268, 0
        %v2281 = vsel %vm254, %v2277, 0
        %2283 = vmatprep.subr.mxu0 0.0
        %2284 = vmatpush1.msra.mxu0 %v2281
        %2285 = vmatprep.subr.mxu0 0.0
        %2286 = vmatpush1.msra.mxu0 0.0
        %2287 = vmatprep.subr.mxu0 0.0
        %2288 = vmatpush1.msra.mxu0 0.0
        %2289 = vmatprep.subr.mxu0 0.0
        %2290 = vmatpush1.msra.mxu0 0.0
        %2291 = vmatprep.subr.mxu0 0.0
        %2292 = vmatpush1.msra.mxu0 0.0
        %2293 = vmatprep.subr.mxu0 0.0
        %2294 = vmatpush1.msra.mxu0 0.0
        %2295 = vmatprep.subr.mxu0 0.0
        %2296 = vmatpush1.msra.mxu0 0.0
        %2297 = vmatprep.subr.mxu0 0.0
        %2298 = vmatpush1.msra.mxu0 0.0
        %2299 = vmatprep.subr.mxu0 0.0
        %2300 = vmatpush1.msra.mxu0 0.0
        %2301 = vmatprep.subr.mxu0 0.0
        %2302 = vmatpush1.msra.mxu0 0.0
        %2303 = vmatprep.subr.mxu0 0.0
        %2304 = vmatpush1.msra.mxu0 0.0
        %2305 = vmatprep.subr.mxu0 0.0
        %2306 = vmatpush1.msra.mxu0 0.0
        %2307 = vmatprep.subr.mxu0 0.0
        %2308 = vmatpush1.msra.mxu0 0.0
        %2309 = vmatprep.subr.mxu0 0.0
        %2310 = vmatpush1.msra.mxu0 0.0
        %2311 = vmatprep.subr.mxu0 0.0
        %2312 = vmatpush1.msra.mxu0 0.0
        %2313 = vmatprep.subr.mxu0 0.0
        %2314 = vmatpush1.msra.mxu0 0.0
        %2315 = vmatprep.subr.mxu0 0.0
        %2316 = vmatpush1.msra.mxu0 0.0
        %2317 = vmatprep.subr.mxu0 0.0
        %2318 = vmatpush1.msra.mxu0 0.0
        %2319 = vmatprep.subr.mxu0 0.0
        %2320 = vmatpush1.msra.mxu0 0.0
        %2321 = vmatprep.subr.mxu0 0.0
        %2322 = vmatpush1.msra.mxu0 0.0
        %2323 = vmatprep.subr.mxu0 0.0
        %2324 = vmatpush1.msra.mxu0 0.0
        %2325 = vmatprep.subr.mxu0 0.0
        %2326 = vmatpush1.msra.mxu0 0.0
        %2327 = vmatprep.subr.mxu0 0.0
        %2328 = vmatpush1.msra.mxu0 0.0
        %2329 = vmatprep.subr.mxu0 0.0
        %2330 = vmatpush1.msra.mxu0 0.0
        %2331 = vmatprep.subr.mxu0 0.0
        %2332 = vmatpush1.msra.mxu0 0.0
        %2333 = vmatprep.subr.mxu0 0.0
        %2334 = vmatpush1.msra.mxu0 0.0
        %2335 = vmatprep.subr.mxu0 0.0
        %2336 = vmatpush1.msra.mxu0 0.0
        %2337 = vmatprep.subr.mxu0 0.0
        %2338 = vmatpush1.msra.mxu0 0.0
        %2339 = vmatprep.subr.mxu0 0.0
        %2340 = vmatpush1.msra.mxu0 0.0
        %2341 = vmatprep.subr.mxu0 0.0
        %2342 = vmatpush1.msra.mxu0 0.0
        %2343 = vmatprep.subr.mxu0 0.0
        %2344 = vmatpush1.msra.mxu0 0.0
        %2345 = vmatprep.subr.mxu0 0.0
        %2346 = vmatpush1.msra.mxu0 0.0
        %2347 = vmatprep.mubr.f32.mxu0 0.0
        %2348 = vmatmul.mubr.f32.gmra.mrb[0].mxu0 %v2279
        %v2349 = vpop.f32.mrb[0].mxu0
        %v2350 = vadd.f32 %v2273, %v2349
        %v2351 = vpop.f32.mrb[0].mxu0
        %2352 = vdwg.mxu0
        %v2353 = vld [vmem:[#allocation2] sm:$0xff]
        %v2354 = vld [vmem:[#allocation2 + $0x8] sm:$0xff]
        %v2356 = vsel %vm330, %v2350, 0
        %2358 = vmatprep.subr.mxu0 0.0
        %2359 = vmatpush1.msra.mxu0 %v2353
        %2360 = vmatprep.subr.mxu0 0.0
        %2361 = vmatpush1.msra.mxu0 %v2354
        %2362 = vmatprep.subr.mxu0 0.0
        %2363 = vmatpush1.msra.mxu0 0.0
        %2364 = vmatprep.subr.mxu0 0.0
        %2365 = vmatpush1.msra.mxu0 0.0
        %2366 = vmatprep.subr.mxu0 0.0
        %2367 = vmatpush1.msra.mxu0 0.0
        %2368 = vmatprep.subr.mxu0 0.0
        %2369 = vmatpush1.msra.mxu0 0.0
        %2370 = vmatprep.subr.mxu0 0.0
        %2371 = vmatpush1.msra.mxu0 0.0
        %2372 = vmatprep.subr.mxu0 0.0
        %2373 = vmatpush1.msra.mxu0 0.0
        %2374 = vmatprep.subr.mxu0 0.0
        %2375 = vmatpush1.msra.mxu0 0.0
        %2376 = vmatprep.subr.mxu0 0.0
        %2377 = vmatpush1.msra.mxu0 0.0
        %2378 = vmatprep.subr.mxu0 0.0
        %2379 = vmatpush1.msra.mxu0 0.0
        %2380 = vmatprep.subr.mxu0 0.0
        %2381 = vmatpush1.msra.mxu0 0.0
        %2382 = vmatprep.subr.mxu0 0.0
        %2383 = vmatpush1.msra.mxu0 0.0
        %2384 = vmatprep.subr.mxu0 0.0
        %2385 = vmatpush1.msra.mxu0 0.0
        %2386 = vmatprep.subr.mxu0 0.0
        %2387 = vmatpush1.msra.mxu0 0.0
        %2388 = vmatprep.subr.mxu0 0.0
        %2389 = vmatpush1.msra.mxu0 0.0
        %2390 = vmatprep.subr.mxu0 0.0
        %2391 = vmatpush1.msra.mxu0 0.0
        %2392 = vmatprep.subr.mxu0 0.0
        %2393 = vmatpush1.msra.mxu0 0.0
        %2394 = vmatprep.subr.mxu0 0.0
        %2395 = vmatpush1.msra.mxu0 0.0
        %2396 = vmatprep.subr.mxu0 0.0
        %2397 = vmatpush1.msra.mxu0 0.0
        %2398 = vmatprep.subr.mxu0 0.0
        %2399 = vmatpush1.msra.mxu0 0.0
        %2400 = vmatprep.subr.mxu0 0.0
        %2401 = vmatpush1.msra.mxu0 0.0
        %2402 = vmatprep.subr.mxu0 0.0
        %2403 = vmatpush1.msra.mxu0 0.0
        %2404 = vmatprep.subr.mxu0 0.0
        %2405 = vmatpush1.msra.mxu0 0.0
        %2406 = vmatprep.subr.mxu0 0.0
        %2407 = vmatpush1.msra.mxu0 0.0
        %2408 = vmatprep.subr.mxu0 0.0
        %2409 = vmatpush1.msra.mxu0 0.0
        %2410 = vmatprep.subr.mxu0 0.0
        %2411 = vmatpush1.msra.mxu0 0.0
        %2412 = vmatprep.subr.mxu0 0.0
        %2413 = vmatpush1.msra.mxu0 0.0
        %2414 = vmatprep.subr.mxu0 0.0
        %2415 = vmatpush1.msra.mxu0 0.0
        %2416 = vmatprep.subr.mxu0 0.0
        %2417 = vmatpush1.msra.mxu0 0.0
        %2418 = vmatprep.subr.mxu0 0.0
        %2419 = vmatpush1.msra.mxu0 0.0
        %2420 = vmatprep.subr.mxu0 0.0
        %2421 = vmatpush1.msra.mxu0 0.0
        %2422 = vmatprep.mubr.f32.mxu0 0.0
        %2423 = vmatmul.mubr.f32.gmra.mrb[0].mxu0 %v2356
        %v2424 = vpop.f32.mrb[0].mxu0
        %v2425 = vadd.f32 0.0, %v2424
        %v2426 = vpop.f32.mrb[0].mxu0
        %2427 = vdwg.mxu0
        %2428 = vst.msk [vmem:[%s230 + $0x30] sm:$0xff] %vm404, %v2425
        %2430 = vrot.lane.b32.xlu0 %v2425, 32
        %v2431 = vpop.permute.xlu0 %2430
        %2433 = vst.msk [vmem:[%s230 + $0x30] sm:$0xff] %vm410, %v2431
        %v2434 = vld [vmem:[%s239 + $0x4] sm:$0xf]
        %v2435 = vld [vmem:[%s1] sm:$0xff]
        %v2436 = vld [vmem:[%s3] sm:$0xff]
        %2438 = vset.pattern.permute.xlu0 0
        %2439 = vperm.xlu0 %2438, %v2436
        %v2440 = vpop.permute.xlu0 %2439
        %2443 = vrot.lane.b32.xlu0 %v2434, 48
        %v2444 = vpop.permute.xlu0 %2443
        %v2446 = vsel %vm250, %v2435, 0
        %v2448 = vsel %vm254, %v2444, 0
        %2450 = vmatprep.subr.mxu0 0.0
        %2451 = vmatpush1.msra.mxu0 %v2448
        %2452 = vmatprep.subr.mxu0 0.0
        %2453 = vmatpush1.msra.mxu0 0.0
        %2454 = vmatprep.subr.mxu0 0.0
        %2455 = vmatpush1.msra.mxu0 0.0
        %2456 = vmatprep.subr.mxu0 0.0
        %2457 = vmatpush1.msra.mxu0 0.0
        %2458 = vmatprep.subr.mxu0 0.0
        %2459 = vmatpush1.msra.mxu0 0.0
        %2460 = vmatprep.subr.mxu0 0.0
        %2461 = vmatpush1.msra.mxu0 0.0
        %2462 = vmatprep.subr.mxu0 0.0
        %2463 = vmatpush1.msra.mxu0 0.0
        %2464 = vmatprep.subr.mxu0 0.0
        %2465 = vmatpush1.msra.mxu0 0.0
        %2466 = vmatprep.subr.mxu0 0.0
        %2467 = vmatpush1.msra.mxu0 0.0
        %2468 = vmatprep.subr.mxu0 0.0
        %2469 = vmatpush1.msra.mxu0 0.0
        %2470 = vmatprep.subr.mxu0 0.0
        %2471 = vmatpush1.msra.mxu0 0.0
        %2472 = vmatprep.subr.mxu0 0.0
        %2473 = vmatpush1.msra.mxu0 0.0
        %2474 = vmatprep.subr.mxu0 0.0
        %2475 = vmatpush1.msra.mxu0 0.0
        %2476 = vmatprep.subr.mxu0 0.0
        %2477 = vmatpush1.msra.mxu0 0.0
        %2478 = vmatprep.subr.mxu0 0.0
        %2479 = vmatpush1.msra.mxu0 0.0
        %2480 = vmatprep.subr.mxu0 0.0
        %2481 = vmatpush1.msra.mxu0 0.0
        %2482 = vmatprep.subr.mxu0 0.0
        %2483 = vmatpush1.msra.mxu0 0.0
        %2484 = vmatprep.subr.mxu0 0.0
        %2485 = vmatpush1.msra.mxu0 0.0
        %2486 = vmatprep.subr.mxu0 0.0
        %2487 = vmatpush1.msra.mxu0 0.0
        %2488 = vmatprep.subr.mxu0 0.0
        %2489 = vmatpush1.msra.mxu0 0.0
        %2490 = vmatprep.subr.mxu0 0.0
        %2491 = vmatpush1.msra.mxu0 0.0
        %2492 = vmatprep.subr.mxu0 0.0
        %2493 = vmatpush1.msra.mxu0 0.0
        %2494 = vmatprep.subr.mxu0 0.0
        %2495 = vmatpush1.msra.mxu0 0.0
        %2496 = vmatprep.subr.mxu0 0.0
        %2497 = vmatpush1.msra.mxu0 0.0
        %2498 = vmatprep.subr.mxu0 0.0
        %2499 = vmatpush1.msra.mxu0 0.0
        %2500 = vmatprep.subr.mxu0 0.0
        %2501 = vmatpush1.msra.mxu0 0.0
        %2502 = vmatprep.subr.mxu0 0.0
        %2503 = vmatpush1.msra.mxu0 0.0
        %2504 = vmatprep.subr.mxu0 0.0
        %2505 = vmatpush1.msra.mxu0 0.0
        %2506 = vmatprep.subr.mxu0 0.0
        %2507 = vmatpush1.msra.mxu0 0.0
        %2508 = vmatprep.subr.mxu0 0.0
        %2509 = vmatpush1.msra.mxu0 0.0
        %2510 = vmatprep.subr.mxu0 0.0
        %2511 = vmatpush1.msra.mxu0 0.0
        %2512 = vmatprep.subr.mxu0 0.0
        %2513 = vmatpush1.msra.mxu0 0.0
        %2514 = vmatprep.mubr.f32.mxu0 0.0
        %2515 = vmatmul.mubr.f32.gmra.mrb[0].mxu0 %v2446
        %v2516 = vpop.f32.mrb[0].mxu0
        %v2517 = vadd.f32 %v2440, %v2516
        %v2518 = vpop.f32.mrb[0].mxu0
        %2519 = vdwg.mxu0
        %v2520 = vld [vmem:[#allocation2] sm:$0xff]
        %v2521 = vld [vmem:[#allocation2 + $0x8] sm:$0xff]
        %v2523 = vsel %vm330, %v2517, 0
        %2525 = vmatprep.subr.mxu0 0.0
        %2526 = vmatpush1.msra.mxu0 %v2520
        %2527 = vmatprep.subr.mxu0 0.0
        %2528 = vmatpush1.msra.mxu0 %v2521
        %2529 = vmatprep.subr.mxu0 0.0
        %2530 = vmatpush1.msra.mxu0 0.0
        %2531 = vmatprep.subr.mxu0 0.0
        %2532 = vmatpush1.msra.mxu0 0.0
        %2533 = vmatprep.subr.mxu0 0.0
        %2534 = vmatpush1.msra.mxu0 0.0
        %2535 = vmatprep.subr.mxu0 0.0
        %2536 = vmatpush1.msra.mxu0 0.0
        %2537 = vmatprep.subr.mxu0 0.0
        %2538 = vmatpush1.msra.mxu0 0.0
        %2539 = vmatprep.subr.mxu0 0.0
        %2540 = vmatpush1.msra.mxu0 0.0
        %2541 = vmatprep.subr.mxu0 0.0
        %2542 = vmatpush1.msra.mxu0 0.0
        %2543 = vmatprep.subr.mxu0 0.0
        %2544 = vmatpush1.msra.mxu0 0.0
        %2545 = vmatprep.subr.mxu0 0.0
        %2546 = vmatpush1.msra.mxu0 0.0
        %2547 = vmatprep.subr.mxu0 0.0
        %2548 = vmatpush1.msra.mxu0 0.0
        %2549 = vmatprep.subr.mxu0 0.0
        %2550 = vmatpush1.msra.mxu0 0.0
        %2551 = vmatprep.subr.mxu0 0.0
        %2552 = vmatpush1.msra.mxu0 0.0
        %2553 = vmatprep.subr.mxu0 0.0
        %2554 = vmatpush1.msra.mxu0 0.0
        %2555 = vmatprep.subr.mxu0 0.0
        %2556 = vmatpush1.msra.mxu0 0.0
        %2557 = vmatprep.subr.mxu0 0.0
        %2558 = vmatpush1.msra.mxu0 0.0
        %2559 = vmatprep.subr.mxu0 0.0
        %2560 = vmatpush1.msra.mxu0 0.0
        %2561 = vmatprep.subr.mxu0 0.0
        %2562 = vmatpush1.msra.mxu0 0.0
        %2563 = vmatprep.subr.mxu0 0.0
        %2564 = vmatpush1.msra.mxu0 0.0
        %2565 = vmatprep.subr.mxu0 0.0
        %2566 = vmatpush1.msra.mxu0 0.0
        %2567 = vmatprep.subr.mxu0 0.0
        %2568 = vmatpush1.msra.mxu0 0.0
        %2569 = vmatprep.subr.mxu0 0.0
        %2570 = vmatpush1.msra.mxu0 0.0
        %2571 = vmatprep.subr.mxu0 0.0
        %2572 = vmatpush1.msra.mxu0 0.0
        %2573 = vmatprep.subr.mxu0 0.0
        %2574 = vmatpush1.msra.mxu0 0.0
        %2575 = vmatprep.subr.mxu0 0.0
        %2576 = vmatpush1.msra.mxu0 0.0
        %2577 = vmatprep.subr.mxu0 0.0
        %2578 = vmatpush1.msra.mxu0 0.0
        %2579 = vmatprep.subr.mxu0 0.0
        %2580 = vmatpush1.msra.mxu0 0.0
        %2581 = vmatprep.subr.mxu0 0.0
        %2582 = vmatpush1.msra.mxu0 0.0
        %2583 = vmatprep.subr.mxu0 0.0
        %2584 = vmatpush1.msra.mxu0 0.0
        %2585 = vmatprep.subr.mxu0 0.0
        %2586 = vmatpush1.msra.mxu0 0.0
        %2587 = vmatprep.subr.mxu0 0.0
        %2588 = vmatpush1.msra.mxu0 0.0
        %2589 = vmatprep.mubr.f32.mxu0 0.0
        %2590 = vmatmul.mubr.f32.gmra.mrb[0].mxu0 %v2523
        %v2591 = vpop.f32.mrb[0].mxu0
        %v2592 = vadd.f32 0.0, %v2591
        %v2593 = vpop.f32.mrb[0].mxu0
        %2594 = vdwg.mxu0
        %2596 = vrot.lane.b32.xlu0 %v2592, 64
        %v2597 = vpop.permute.xlu0 %2596
        %2599 = vst.msk [vmem:[%s230 + $0x30] sm:$0xff] %vm577, %v2597
        %2600 = vrot.lane.b32.xlu0 %v2592, 96
        %v2601 = vpop.permute.xlu0 %2600
        %2603 = vst.msk [vmem:[%s230 + $0x30] sm:$0xff] %vm582, %v2601
        %v2604 = vld [vmem:[%s239 + $0x4] sm:$0xf]
        %v2605 = vld [vmem:[%s1] sm:$0xff]
        %v2606 = vld [vmem:[%s3] sm:$0xff]
        %2608 = vset.pattern.permute.xlu0 0
        %2609 = vperm.xlu0 %2608, %v2606
        %v2610 = vpop.permute.xlu0 %2609
        %2613 = vrot.lane.b32.xlu0 %v2604, 32
        %v2614 = vpop.permute.xlu0 %2613
        %v2616 = vsel %vm250, %v2605, 0
        %v2618 = vsel %vm254, %v2614, 0
        %2620 = vmatprep.subr.mxu0 0.0
        %2621 = vmatpush1.msra.mxu0 %v2618
        %2622 = vmatprep.subr.mxu0 0.0
        %2623 = vmatpush1.msra.mxu0 0.0
        %2624 = vmatprep.subr.mxu0 0.0
        %2625 = vmatpush1.msra.mxu0 0.0
        %2626 = vmatprep.subr.mxu0 0.0
        %2627 = vmatpush1.msra.mxu0 0.0
        %2628 = vmatprep.subr.mxu0 0.0
        %2629 = vmatpush1.msra.mxu0 0.0
        %2630 = vmatprep.subr.mxu0 0.0
        %2631 = vmatpush1.msra.mxu0 0.0
        %2632 = vmatprep.subr.mxu0 0.0
        %2633 = vmatpush1.msra.mxu0 0.0
        %2634 = vmatprep.subr.mxu0 0.0
        %2635 = vmatpush1.msra.mxu0 0.0
        %2636 = vmatprep.subr.mxu0 0.0
        %2637 = vmatpush1.msra.mxu0 0.0
        %2638 = vmatprep.subr.mxu0 0.0
        %2639 = vmatpush1.msra.mxu0 0.0
        %2640 = vmatprep.subr.mxu0 0.0
        %2641 = vmatpush1.msra.mxu0 0.0
        %2642 = vmatprep.subr.mxu0 0.0
        %2643 = vmatpush1.msra.mxu0 0.0
        %2644 = vmatprep.subr.mxu0 0.0
        %2645 = vmatpush1.msra.mxu0 0.0
        %2646 = vmatprep.subr.mxu0 0.0
        %2647 = vmatpush1.msra.mxu0 0.0
        %2648 = vmatprep.subr.mxu0 0.0
        %2649 = vmatpush1.msra.mxu0 0.0
        %2650 = vmatprep.subr.mxu0 0.0
        %2651 = vmatpush1.msra.mxu0 0.0
        %2652 = vmatprep.subr.mxu0 0.0
        %2653 = vmatpush1.msra.mxu0 0.0
        %2654 = vmatprep.subr.mxu0 0.0
        %2655 = vmatpush1.msra.mxu0 0.0
        %2656 = vmatprep.subr.mxu0 0.0
        %2657 = vmatpush1.msra.mxu0 0.0
        %2658 = vmatprep.subr.mxu0 0.0
        %2659 = vmatpush1.msra.mxu0 0.0
        %2660 = vmatprep.subr.mxu0 0.0
        %2661 = vmatpush1.msra.mxu0 0.0
        %2662 = vmatprep.subr.mxu0 0.0
        %2663 = vmatpush1.msra.mxu0 0.0
        %2664 = vmatprep.subr.mxu0 0.0
        %2665 = vmatpush1.msra.mxu0 0.0
        %2666 = vmatprep.subr.mxu0 0.0
        %2667 = vmatpush1.msra.mxu0 0.0
        %2668 = vmatprep.subr.mxu0 0.0
        %2669 = vmatpush1.msra.mxu0 0.0
        %2670 = vmatprep.subr.mxu0 0.0
        %2671 = vmatpush1.msra.mxu0 0.0
        %2672 = vmatprep.subr.mxu0 0.0
        %2673 = vmatpush1.msra.mxu0 0.0
        %2674 = vmatprep.subr.mxu0 0.0
        %2675 = vmatpush1.msra.mxu0 0.0
        %2676 = vmatprep.subr.mxu0 0.0
        %2677 = vmatpush1.msra.mxu0 0.0
        %2678 = vmatprep.subr.mxu0 0.0
        %2679 = vmatpush1.msra.mxu0 0.0
        %2680 = vmatprep.subr.mxu0 0.0
        %2681 = vmatpush1.msra.mxu0 0.0
        %2682 = vmatprep.subr.mxu0 0.0
        %2683 = vmatpush1.msra.mxu0 0.0
        %2684 = vmatprep.mubr.f32.mxu0 0.0
        %2685 = vmatmul.mubr.f32.gmra.mrb[0].mxu0 %v2616
        %v2686 = vpop.f32.mrb[0].mxu0
        %v2687 = vadd.f32 %v2610, %v2686
        %v2688 = vpop.f32.mrb[0].mxu0
        %2689 = vdwg.mxu0
        %v2690 = vld [vmem:[#allocation2] sm:$0xff]
        %v2691 = vld [vmem:[#allocation2 + $0x8] sm:$0xff]
        %v2693 = vsel %vm330, %v2687, 0
        %2695 = vmatprep.subr.mxu0 0.0
        %2696 = vmatpush1.msra.mxu0 %v2690
        %2697 = vmatprep.subr.mxu0 0.0
        %2698 = vmatpush1.msra.mxu0 %v2691
        %2699 = vmatprep.subr.mxu0 0.0
        %2700 = vmatpush1.msra.mxu0 0.0
        %2701 = vmatprep.subr.mxu0 0.0
        %2702 = vmatpush1.msra.mxu0 0.0
        %2703 = vmatprep.subr.mxu0 0.0
        %2704 = vmatpush1.msra.mxu0 0.0
        %2705 = vmatprep.subr.mxu0 0.0
        %2706 = vmatpush1.msra.mxu0 0.0
        %2707 = vmatprep.subr.mxu0 0.0
        %2708 = vmatpush1.msra.mxu0 0.0
        %2709 = vmatprep.subr.mxu0 0.0
        %2710 = vmatpush1.msra.mxu0 0.0
        %2711 = vmatprep.subr.mxu0 0.0
        %2712 = vmatpush1.msra.mxu0 0.0
        %2713 = vmatprep.subr.mxu0 0.0
        %2714 = vmatpush1.msra.mxu0 0.0
        %2715 = vmatprep.subr.mxu0 0.0
        %2716 = vmatpush1.msra.mxu0 0.0
        %2717 = vmatprep.subr.mxu0 0.0
        %2718 = vmatpush1.msra.mxu0 0.0
        %2719 = vmatprep.subr.mxu0 0.0
        %2720 = vmatpush1.msra.mxu0 0.0
        %2721 = vmatprep.subr.mxu0 0.0
        %2722 = vmatpush1.msra.mxu0 0.0
        %2723 = vmatprep.subr.mxu0 0.0
        %2724 = vmatpush1.msra.mxu0 0.0
        %2725 = vmatprep.subr.mxu0 0.0
        %2726 = vmatpush1.msra.mxu0 0.0
        %2727 = vmatprep.subr.mxu0 0.0
        %2728 = vmatpush1.msra.mxu0 0.0
        %2729 = vmatprep.subr.mxu0 0.0
        %2730 = vmatpush1.msra.mxu0 0.0
        %2731 = vmatprep.subr.mxu0 0.0
        %2732 = vmatpush1.msra.mxu0 0.0
        %2733 = vmatprep.subr.mxu0 0.0
        %2734 = vmatpush1.msra.mxu0 0.0
        %2735 = vmatprep.subr.mxu0 0.0
        %2736 = vmatpush1.msra.mxu0 0.0
        %2737 = vmatprep.subr.mxu0 0.0
        %2738 = vmatpush1.msra.mxu0 0.0
        %2739 = vmatprep.subr.mxu0 0.0
        %2740 = vmatpush1.msra.mxu0 0.0
        %2741 = vmatprep.subr.mxu0 0.0
        %2742 = vmatpush1.msra.mxu0 0.0
        %2743 = vmatprep.subr.mxu0 0.0
        %2744 = vmatpush1.msra.mxu0 0.0
        %2745 = vmatprep.subr.mxu0 0.0
        %2746 = vmatpush1.msra.mxu0 0.0
        %2747 = vmatprep.subr.mxu0 0.0
        %2748 = vmatpush1.msra.mxu0 0.0
        %2749 = vmatprep.subr.mxu0 0.0
        %2750 = vmatpush1.msra.mxu0 0.0
        %2751 = vmatprep.subr.mxu0 0.0
        %2752 = vmatpush1.msra.mxu0 0.0
        %2753 = vmatprep.subr.mxu0 0.0
        %2754 = vmatpush1.msra.mxu0 0.0
        %2755 = vmatprep.subr.mxu0 0.0
        %2756 = vmatpush1.msra.mxu0 0.0
        %2757 = vmatprep.subr.mxu0 0.0
        %2758 = vmatpush1.msra.mxu0 0.0
        %2759 = vmatprep.mubr.f32.mxu0 0.0
        %2760 = vmatmul.mubr.f32.gmra.mrb[0].mxu0 %v2693
        %v2761 = vpop.f32.mrb[0].mxu0
        %v2762 = vadd.f32 0.0, %v2761
        %v2763 = vpop.f32.mrb[0].mxu0
        %2764 = vdwg.mxu0
        %2765 = vst.msk [vmem:[%s230 + $0x38] sm:$0xff] %vm404, %v2762
        %2767 = vrot.lane.b32.xlu0 %v2762, 32
        %v2768 = vpop.permute.xlu0 %2767
        %2770 = vst.msk [vmem:[%s230 + $0x38] sm:$0xff] %vm410, %v2768
        %v2771 = vld [vmem:[%s239 + $0x4] sm:$0xf]
        %v2772 = vld [vmem:[%s1] sm:$0xff]
        %v2773 = vld [vmem:[%s3] sm:$0xff]
        %2775 = vset.pattern.permute.xlu0 0
        %2776 = vperm.xlu0 %2775, %v2773
        %v2777 = vpop.permute.xlu0 %2776
        %2780 = vrot.lane.b32.xlu0 %v2771, 16
        %v2781 = vpop.permute.xlu0 %2780
        %v2783 = vsel %vm250, %v2772, 0
        %v2785 = vsel %vm254, %v2781, 0
        %2787 = vmatprep.subr.mxu0 0.0
        %2788 = vmatpush1.msra.mxu0 %v2785
        %2789 = vmatprep.subr.mxu0 0.0
        %2790 = vmatpush1.msra.mxu0 0.0
        %2791 = vmatprep.subr.mxu0 0.0
        %2792 = vmatpush1.msra.mxu0 0.0
        %2793 = vmatprep.subr.mxu0 0.0
        %2794 = vmatpush1.msra.mxu0 0.0
        %2795 = vmatprep.subr.mxu0 0.0
        %2796 = vmatpush1.msra.mxu0 0.0
        %2797 = vmatprep.subr.mxu0 0.0
        %2798 = vmatpush1.msra.mxu0 0.0
        %2799 = vmatprep.subr.mxu0 0.0
        %2800 = vmatpush1.msra.mxu0 0.0
        %2801 = vmatprep.subr.mxu0 0.0
        %2802 = vmatpush1.msra.mxu0 0.0
        %2803 = vmatprep.subr.mxu0 0.0
        %2804 = vmatpush1.msra.mxu0 0.0
        %2805 = vmatprep.subr.mxu0 0.0
        %2806 = vmatpush1.msra.mxu0 0.0
        %2807 = vmatprep.subr.mxu0 0.0
        %2808 = vmatpush1.msra.mxu0 0.0
        %2809 = vmatprep.subr.mxu0 0.0
        %2810 = vmatpush1.msra.mxu0 0.0
        %2811 = vmatprep.subr.mxu0 0.0
        %2812 = vmatpush1.msra.mxu0 0.0
        %2813 = vmatprep.subr.mxu0 0.0
        %2814 = vmatpush1.msra.mxu0 0.0
        %2815 = vmatprep.subr.mxu0 0.0
        %2816 = vmatpush1.msra.mxu0 0.0
        %2817 = vmatprep.subr.mxu0 0.0
        %2818 = vmatpush1.msra.mxu0 0.0
        %2819 = vmatprep.subr.mxu0 0.0
        %2820 = vmatpush1.msra.mxu0 0.0
        %2821 = vmatprep.subr.mxu0 0.0
        %2822 = vmatpush1.msra.mxu0 0.0
        %2823 = vmatprep.subr.mxu0 0.0
        %2824 = vmatpush1.msra.mxu0 0.0
        %2825 = vmatprep.subr.mxu0 0.0
        %2826 = vmatpush1.msra.mxu0 0.0
        %2827 = vmatprep.subr.mxu0 0.0
        %2828 = vmatpush1.msra.mxu0 0.0
        %2829 = vmatprep.subr.mxu0 0.0
        %2830 = vmatpush1.msra.mxu0 0.0
        %2831 = vmatprep.subr.mxu0 0.0
        %2832 = vmatpush1.msra.mxu0 0.0
        %2833 = vmatprep.subr.mxu0 0.0
        %2834 = vmatpush1.msra.mxu0 0.0
        %2835 = vmatprep.subr.mxu0 0.0
        %2836 = vmatpush1.msra.mxu0 0.0
        %2837 = vmatprep.subr.mxu0 0.0
        %2838 = vmatpush1.msra.mxu0 0.0
        %2839 = vmatprep.subr.mxu0 0.0
        %2840 = vmatpush1.msra.mxu0 0.0
        %2841 = vmatprep.subr.mxu0 0.0
        %2842 = vmatpush1.msra.mxu0 0.0
        %2843 = vmatprep.subr.mxu0 0.0
        %2844 = vmatpush1.msra.mxu0 0.0
        %2845 = vmatprep.subr.mxu0 0.0
        %2846 = vmatpush1.msra.mxu0 0.0
        %2847 = vmatprep.subr.mxu0 0.0
        %2848 = vmatpush1.msra.mxu0 0.0
        %2849 = vmatprep.subr.mxu0 0.0
        %2850 = vmatpush1.msra.mxu0 0.0
        %2851 = vmatprep.mubr.f32.mxu0 0.0
        %2852 = vmatmul.mubr.f32.gmra.mrb[0].mxu0 %v2783
        %v2853 = vpop.f32.mrb[0].mxu0
        %v2854 = vadd.f32 %v2777, %v2853
        %v2855 = vpop.f32.mrb[0].mxu0
        %2856 = vdwg.mxu0
        %v2857 = vld [vmem:[#allocation2] sm:$0xff]
        %v2858 = vld [vmem:[#allocation2 + $0x8] sm:$0xff]
        %v2860 = vsel %vm330, %v2854, 0
        %2862 = vmatprep.subr.mxu0 0.0
        %2863 = vmatpush1.msra.mxu0 %v2857
        %2864 = vmatprep.subr.mxu0 0.0
        %2865 = vmatpush1.msra.mxu0 %v2858
        %2866 = vmatprep.subr.mxu0 0.0
        %2867 = vmatpush1.msra.mxu0 0.0
        %2868 = vmatprep.subr.mxu0 0.0
        %2869 = vmatpush1.msra.mxu0 0.0
        %2870 = vmatprep.subr.mxu0 0.0
        %2871 = vmatpush1.msra.mxu0 0.0
        %2872 = vmatprep.subr.mxu0 0.0
        %2873 = vmatpush1.msra.mxu0 0.0
        %2874 = vmatprep.subr.mxu0 0.0
        %2875 = vmatpush1.msra.mxu0 0.0
        %2876 = vmatprep.subr.mxu0 0.0
        %2877 = vmatpush1.msra.mxu0 0.0
        %2878 = vmatprep.subr.mxu0 0.0
        %2879 = vmatpush1.msra.mxu0 0.0
        %2880 = vmatprep.subr.mxu0 0.0
        %2881 = vmatpush1.msra.mxu0 0.0
        %2882 = vmatprep.subr.mxu0 0.0
        %2883 = vmatpush1.msra.mxu0 0.0
        %2884 = vmatprep.subr.mxu0 0.0
        %2885 = vmatpush1.msra.mxu0 0.0
        %2886 = vmatprep.subr.mxu0 0.0
        %2887 = vmatpush1.msra.mxu0 0.0
        %2888 = vmatprep.subr.mxu0 0.0
        %2889 = vmatpush1.msra.mxu0 0.0
        %2890 = vmatprep.subr.mxu0 0.0
        %2891 = vmatpush1.msra.mxu0 0.0
        %2892 = vmatprep.subr.mxu0 0.0
        %2893 = vmatpush1.msra.mxu0 0.0
        %2894 = vmatprep.subr.mxu0 0.0
        %2895 = vmatpush1.msra.mxu0 0.0
        %2896 = vmatprep.subr.mxu0 0.0
        %2897 = vmatpush1.msra.mxu0 0.0
        %2898 = vmatprep.subr.mxu0 0.0
        %2899 = vmatpush1.msra.mxu0 0.0
        %2900 = vmatprep.subr.mxu0 0.0
        %2901 = vmatpush1.msra.mxu0 0.0
        %2902 = vmatprep.subr.mxu0 0.0
        %2903 = vmatpush1.msra.mxu0 0.0
        %2904 = vmatprep.subr.mxu0 0.0
        %2905 = vmatpush1.msra.mxu0 0.0
        %2906 = vmatprep.subr.mxu0 0.0
        %2907 = vmatpush1.msra.mxu0 0.0
        %2908 = vmatprep.subr.mxu0 0.0
        %2909 = vmatpush1.msra.mxu0 0.0
        %2910 = vmatprep.subr.mxu0 0.0
        %2911 = vmatpush1.msra.mxu0 0.0
        %2912 = vmatprep.subr.mxu0 0.0
        %2913 = vmatpush1.msra.mxu0 0.0
        %2914 = vmatprep.subr.mxu0 0.0
        %2915 = vmatpush1.msra.mxu0 0.0
        %2916 = vmatprep.subr.mxu0 0.0
        %2917 = vmatpush1.msra.mxu0 0.0
        %2918 = vmatprep.subr.mxu0 0.0
        %2919 = vmatpush1.msra.mxu0 0.0
        %2920 = vmatprep.subr.mxu0 0.0
        %2921 = vmatpush1.msra.mxu0 0.0
        %2922 = vmatprep.subr.mxu0 0.0
        %2923 = vmatpush1.msra.mxu0 0.0
        %2924 = vmatprep.subr.mxu0 0.0
        %2925 = vmatpush1.msra.mxu0 0.0
        %2926 = vmatprep.mubr.f32.mxu0 0.0
        %2927 = vmatmul.mubr.f32.gmra.mrb[0].mxu0 %v2860
        %v2928 = vpop.f32.mrb[0].mxu0
        %v2929 = vadd.f32 0.0, %v2928
        %v2930 = vpop.f32.mrb[0].mxu0
        %2931 = vdwg.mxu0
        %2933 = vrot.lane.b32.xlu0 %v2929, 64
        %v2934 = vpop.permute.xlu0 %2933
        %2936 = vst.msk [vmem:[%s230 + $0x38] sm:$0xff] %vm577, %v2934
        %2937 = vrot.lane.b32.xlu0 %v2929, 96
        %v2938 = vpop.permute.xlu0 %2937
        %2940 = vst.msk [vmem:[%s230 + $0x38] sm:$0xff] %vm582, %v2938
        %s2941 = sand.u32 %s132, 1
        %s2942 = scalar_lea.sflag [#allocation4], %s2941
        %s2943 = sand.u32 %s132, 1
        %s2944 = smul.addr %s2943, 64
        %s2945 = scalar_lea.vmem [#allocation5], %s2944
        // Predicated region
        $region41: #{tpu_custom_call.1} parent=35 // pred_check
          %p2946 = pneg %p142
        $region42: #{tpu_custom_call.1} parent=35 // pred_check_branch
          %2948 = sbr.rel (%p2946) target = $region44
        $region43: #{tpu_custom_call.1} parent=35 // pred_region
          %s2949 = smul.u32 8, %s24
          %s2951 = ssub.s32 1024, 1024
          %2952 = vsyncadd %s2942, %s2951
          %s2953 = smul.addr %s23, 8
          %s2954 = sadd.s32 %s2949, %s2953
          %s2955 = smul.addr %s2954, 128
          %s2956 = scalar_lea.hbm %s4, %s2955
          %s2958 = sshll.u32 %s2945, 4
          %s2959 = int_to_ptr.vmem [resolvable:$true] %s2958
          %2961 = dma.vmem_to_hbm [thread:$0]  %s2959, 1024, %s2956, %s2942
        $region44: #{tpu_custom_call.1} parent=35 // pred_fallthru
          _
      $region36: #{tpu_custom_call.1} parent=5 // pred_fallthru
        _
      %p2962 = scmp.le.s32.totalorder 2, %s14
      // Predicated region
      $region45: #{tpu_custom_call.1} parent=5 // pred_check
        %p2963 = pneg %p2962
      $region46: #{tpu_custom_call.1} parent=5 // pred_check_branch
        %2965 = sbr.rel (%p2963) target = $region48
      $region47: #{tpu_custom_call.1} parent=5 // pred_region
        %s2966 = ssub.s32 %s14, 2
        // Predicated region
        $region49: #{tpu_custom_call.1} parent=47 // pred_check
          %p2967 = pneg %p148
        $region50: #{tpu_custom_call.1} parent=47 // pred_check_branch
          %2969 = sbr.rel (%p2967) target = $region52
        $region51: #{tpu_custom_call.1} parent=47 // pred_region
          %s2970 = sand.u32 %s133, 1
          %s2971 = scalar_lea.sflag [#allocation4], %s2970
          %s2972 = sand.u32 %s133, 1
          %s2973 = smul.addr %s2972, 64
          %s2974 = scalar_lea.vmem [#allocation5], %s2973
          %2975 = dma.done %s2971, 1024
        $region52: #{tpu_custom_call.1} parent=47 // pred_fallthru
          _
      $region48: #{tpu_custom_call.1} parent=5 // pred_fallthru
        _
    $region6: #{tpu_custom_call.1} parent=1 // loop_footer
      %s18 = sadd.s32 1, %s14
    $region7: #{tpu_custom_call.1} parent=1 // loop_footer_branch
      %13 = sbr.rel target = $region3
    $region8: #{tpu_custom_call.1} parent=1 // loop_exit
      _
    %2976 = vsyncpa [#allocation3], 1
    %s2977 = scalar_lea.sflag [#allocation3], 1
    %2978 = vsyncpa %s2977, 1
    %2979 = vsyncpa [#allocation4], 1
    %s2980 = scalar_lea.sflag [#allocation4], 1
    %2981 = vsyncpa %s2980, 1

</llo_original>
